<compile_context>
chip_gen: v7x
topology: tpu7x:2x2x1
jax: 0.10.0
libtpu: 0.0.40
codegen_flags: <defaults>
</compile_context>

<pallas_src>
import jax
import jax.numpy as jnp
from jax.experimental import pallas as pl
from jax.experimental.pallas import tpu as pltpu


def _refine_reciprocal(x):
    """EUP approximate reciprocal + one Newton step (near f32-exact)."""
    inv = pl.reciprocal(x, approx=True)
    return inv * (2.0 - x * inv)


def biattention_kernel(x_ref, m_ref, mask_ref, wi_ref, wm_ref, scale_ref,
                       out_ref, xs_sc, m_sc, l_sc, acc_sc):
    # Block views for one (batch-tile, Lm-tile) grid step:
    #   x_ref     (Bt, Li,  D)     resident across the Lm axis
    #   m_ref     (Bt, TLm, D)     current memory tile
    #   mask_ref  (Bt, 1,  TLm)    0/1 mask over this memory tile
    #   wi_ref    (1, 1, D)        input_linear weight  (Linear(D,1,bias=False))
    #   wm_ref    (1, 1, D)        memory_linear weight
    #   scale_ref (1, 1, D)        dot_scale
    #   out_ref   (Bt, Li, 4*D)    written once, at the last Lm step
    # Scratch (persists across the Lm axis):
    #   xs_sc     (Bt, Li, D) bf16   (x*scale + w_mem): the bf16 MXU LHS
    #   m_sc      (Bt, Li, 1) f32    running row max of masked scores
    #   l_sc      (Bt, Li, 1) f32    running softmax denominator
    #   acc_sc    (Bt, Li, D) f32    running (un-normalized) P @ mem
    km = pl.program_id(1)
    D = x_ref.shape[-1]

    @pl.when(km == 0)
    def _init():
        x_f32 = x_ref[...].astype(jnp.float32)
        scale = scale_ref[...].astype(jnp.float32)          # (1, 1, D)
        w_mem = wm_ref[...].astype(jnp.float32)             # (1, 1, D)
        # memory_dot folded into the cross matmul:
        #   sum_d (x*scale + w_mem)[i,d] * mem[j,d] = cross[i,j] + memory_dot[j]
        xs_sc[...] = (x_f32 * scale + w_mem).astype(jnp.bfloat16)
        m_sc[...] = jnp.full(m_sc.shape, -jnp.inf, dtype=jnp.float32)
        l_sc[...] = jnp.zeros(l_sc.shape, dtype=jnp.float32)
        acc_sc[...] = jnp.zeros(acc_sc.shape, dtype=jnp.float32)

    mem_bf16 = m_ref[...].astype(jnp.bfloat16)              # (Bt, TLm, D)
    msk = mask_ref[...].astype(jnp.float32)                 # (Bt, 1, TLm)

    # Cross scores (+ folded memory_dot): bf16 MXU operands, f32 accumulation.
    s = jnp.einsum("bld,bmd->blm", xs_sc[...], mem_bf16,
                   preferred_element_type=jnp.float32)      # (Bt, Li, TLm) f32

    # The -1e30 mask bias must stay f32 (bf16 would overflow to -inf).
    # input_dot (per-row constant) is intentionally NOT added here.
    att = s - 1e30 * (1.0 - msk)                            # (Bt, Li, TLm) f32

    # Online-softmax (flash) update.
    m_prev = m_sc[...]
    m_new = jnp.maximum(m_prev, jnp.max(att, axis=-1, keepdims=True))
    alpha = jnp.exp(m_prev - m_new)                         # (Bt, Li, 1)
    p = jnp.exp(att - m_new)                                # f32 exp (v5e-safe)
    l_sc[...] = alpha * l_sc[...] + jnp.sum(p, axis=-1, keepdims=True)
    acc_sc[...] = alpha * acc_sc[...] + jnp.einsum(
        "blm,bmd->bld", p.astype(jnp.bfloat16), mem_bf16,
        preferred_element_type=jnp.float32)                 # bf16 MXU, f32 acc
    m_sc[...] = m_new

    @pl.when(km == pl.num_programs(1) - 1)
    def _finalize():
        x_in = x_ref[...]                                   # (Bt, Li, D)
        x_f32 = x_in.astype(jnp.float32)
        w_in = wi_ref[...].astype(jnp.float32)              # (1, 1, D)

        # Deferred normalization: scale over (Li, D), not (Li, Lm).
        out1 = acc_sc[...] * _refine_reciprocal(l_sc[...])  # (Bt, Li, D) f32

        # Second softmax over input rows of max_j(att_full):
        #   max_j(att_full[i,:]) = running_max[i] + input_dot[i]
        # input_dot on the VPU/XLU: mul + lane reduce (keepdims, stays 3-D).
        input_dot = jnp.sum(x_f32 * w_in, axis=-1, keepdims=True)   # (Bt, Li, 1)
        row_max = m_sc[...] + input_dot                     # (Bt, Li, 1)
        m2 = jnp.max(row_max, axis=1, keepdims=True)        # (Bt, 1, 1)
        p2 = jnp.exp(row_max - m2)                          # (Bt, Li, 1)
        denom2 = jnp.sum(p2, axis=1, keepdims=True)         # (Bt, 1, 1)
        # out2 = sum_i softmax_i * x_i : broadcast-mul + sublane reduce
        # (no degenerate M=1 matmul, no transpose).
        out2 = (jnp.sum(p2 * x_f32, axis=1, keepdims=True)
                * _refine_reciprocal(denom2))               # (Bt, 1, D) f32

        # Direct lane-dense slab stores — no (Li, 4D) concat temporary.
        odt = out_ref.dtype
        out_ref[:, :, 0:D] = x_in.astype(odt)               # pass-through, exact
        out_ref[:, :, D:2 * D] = out1.astype(odt)
        out_ref[:, :, 2 * D:3 * D] = (x_f32 * out1).astype(odt)
        out_ref[:, :, 3 * D:4 * D] = (out2 * out1).astype(odt)


def bi_attention(x, mem, mask, w_in, w_mem, dot_scale, *,
                 block_b=None, block_lm=None):
    B, Li, D = x.shape
    Lm = mem.shape[1]

    if block_b is None:
        block_b = B if B <= 8 else 1          # amortize per-step overhead
    if block_lm is None:
        block_lm = min(Lm, 512)               # bound VMEM: O(Li*TLm + Li*D)
    assert B % block_b == 0, "choose/pad block_b to divide B"
    assert Lm % block_lm == 0, "choose/pad block_lm to divide Lm"

    mask3 = mask.reshape(B, 1, Lm).astype(jnp.float32)
    w_in3 = w_in.reshape(1, 1, D).astype(jnp.float32)
    w_mem3 = w_mem.reshape(1, 1, D).astype(jnp.float32)
    ds3 = dot_scale.reshape(1, 1, D).astype(jnp.float32)

    grid = (B // block_b, Lm // block_lm)     # reduction (Lm) axis last

    return pl.pallas_call(
        biattention_kernel,
        out_shape=jax.ShapeDtypeStruct((B, Li, 4 * D), x.dtype),
        grid_spec=pltpu.PrefetchScalarGridSpec(
            num_scalar_prefetch=0,
            grid=grid,
            in_specs=[
                pl.BlockSpec((block_b, Li, D), lambda b, k: (b, 0, 0)),        # x (resident over Lm)
                pl.BlockSpec((block_b, block_lm, D), lambda b, k: (b, k, 0)),  # memory tile
                pl.BlockSpec((block_b, 1, block_lm), lambda b, k: (b, 0, k)),  # mask tile
                pl.BlockSpec((1, 1, D), lambda b, k: (0, 0, 0)),               # w_in   (resident)
                pl.BlockSpec((1, 1, D), lambda b, k: (0, 0, 0)),               # w_mem  (resident)
                pl.BlockSpec((1, 1, D), lambda b, k: (0, 0, 0)),               # dot_scale
            ],
            out_specs=pl.BlockSpec((block_b, Li, 4 * D), lambda b, k: (b, 0, 0)),
            scratch_shapes=[
                pltpu.VMEM((block_b, Li, D), jnp.bfloat16),   # xs (bf16 MXU LHS)
                pltpu.VMEM((block_b, Li, 1), jnp.float32),    # running max
                pltpu.VMEM((block_b, Li, 1), jnp.float32),    # running denom
                pltpu.VMEM((block_b, Li, D), jnp.float32),    # running P @ mem
            ],
        ),
        compiler_params=pltpu.CompilerParams(
            dimension_semantics=("parallel", "arbitrary")),
    )(x, mem, mask3, w_in3, w_mem3, ds3)


def ref_bi_attention(x, mem, mask, w_in, w_mem, dot_scale):
    """Pure-JAX reference mirroring the PyTorch forward (eval mode)."""
    input_dot = jnp.einsum("bld,d->bl", x, w_in)[..., None]          # (B, Li, 1)
    memory_dot = jnp.einsum("bmd,d->bm", mem, w_mem)[:, None, :]     # (B, 1, Lm)
    cross = jnp.einsum("bld,bmd->blm", x * dot_scale, mem)           # (B, Li, Lm)
    att = input_dot + memory_dot + cross - 1e30 * (1.0 - mask[:, None, :])
    w1 = jax.nn.softmax(att, axis=-1)
    out1 = jnp.einsum("blm,bmd->bld", w1, mem)
    w2 = jax.nn.softmax(jnp.max(att, axis=-1), axis=-1)[:, None, :]  # (B, 1, Li)
    out2 = jnp.einsum("bol,bld->bod", w2, x)                         # (B, 1, D)
    return jnp.concatenate([x, out1, x * out1, out2 * out1], axis=-1)


if __name__ == "__main__":
    # Lane/sublane-aligned small shapes; Lm > block_lm so the online-softmax
    # (flash) path runs over more than one Lm step.
    B, Li, Lm, D = 2, 128, 256, 128

    key = jax.random.PRNGKey(0)
    k_x, k_m, k_wi, k_wm, k_ds, k_mask = jax.random.split(key, 6)

    x = jax.random.normal(k_x, (B, Li, D), dtype=jnp.float32)
    mem = jax.random.normal(k_m, (B, Lm, D), dtype=jnp.float32)

    # nn.Linear(D, 1, bias=False) default init: U(-1/sqrt(D), 1/sqrt(D))
    bound = 1.0 / (D ** 0.5)
    w_in = jax.random.uniform(k_wi, (D,), minval=-bound, maxval=bound, dtype=jnp.float32)
    w_mem = jax.random.uniform(k_wm, (D,), minval=-bound, maxval=bound, dtype=jnp.float32)
    # dot_scale: Tensor(D).uniform_(1/sqrt(D)) == U(0, 1/sqrt(D))
    dot_scale = jax.random.uniform(k_ds, (D,), minval=0.0, maxval=bound, dtype=jnp.float32)

    # 0/1 mask over memory positions, guaranteed non-empty per row.
    mask = (jax.random.uniform(k_mask, (B, Lm)) > 0.3).astype(jnp.float32)
    mask = mask.at[:, 0].set(1.0)

    out = bi_attention(x, mem, mask, w_in, w_mem, dot_scale,
                       block_b=2, block_lm=128)
    out = jax.block_until_ready(out)

    ref = ref_bi_attention(x, mem, mask, w_in, w_mem, dot_scale)
    assert out.shape == (B, Li, 4 * D)
    # Tolerance covers the bf16 MXU operands (per perf guidance); the softmax
    # reciprocals are Newton-refined, so they contribute only ~f32-level error.
    assert jnp.allclose(out, ref, atol=2e-2, rtol=2e-2), "Pallas kernel mismatch vs JAX reference"

    print("KERNEL_OK")
</pallas_src>

<mosaic_0001>
module attributes {stable_mosaic.version = 11 : i64} {
  func.func @biattention_kernel(%arg0: i32, %arg1: i32, %arg2: memref<2x128x128xf32, #tpu.memory_space<vmem>>, %arg3: memref<2x128x128xf32, #tpu.memory_space<vmem>>, %arg4: memref<2x1x128xf32, #tpu.memory_space<vmem>>, %arg5: memref<1x1x128xf32, #tpu.memory_space<vmem>>, %arg6: memref<1x1x128xf32, #tpu.memory_space<vmem>>, %arg7: memref<1x1x128xf32, #tpu.memory_space<vmem>>, %arg8: memref<2x128x512xf32, #tpu.memory_space<vmem>>, %arg9: memref<2x128x128xbf16, #tpu.memory_space<vmem>>, %arg10: memref<2x128x1xf32, #tpu.memory_space<vmem>>, %arg11: memref<2x128x1xf32, #tpu.memory_space<vmem>>, %arg12: memref<2x128x128xf32, #tpu.memory_space<vmem>>) attributes {dimension_semantics = [#tpu.dimension_semantics<parallel>, #tpu.dimension_semantics<arbitrary>], iteration_bounds = array<i64: 1, 2>, scalar_prefetch = 0 : i64, scratch_operands = 4 : i64, tpu.core_type = #tpu.core_type<tc>, window_params = [{transform_indices = @transform_0, window_bounds = array<i64: 2, 128, 128>}, {transform_indices = @transform_1, window_bounds = array<i64: 2, 128, 128>}, {transform_indices = @transform_2, window_bounds = array<i64: 2, 1, 128>}, {pipeline_mode = #tpu.pipeline_mode<synchronous>, transform_indices = @transform_3, window_bounds = array<i64: 1, 1, 128>}, {pipeline_mode = #tpu.pipeline_mode<synchronous>, transform_indices = @transform_4, window_bounds = array<i64: 1, 1, 128>}, {pipeline_mode = #tpu.pipeline_mode<synchronous>, transform_indices = @transform_5, window_bounds = array<i64: 1, 1, 128>}, {transform_indices = @transform_6, window_bounds = array<i64: 2, 128, 512>}]} {
    %c0_i32 = arith.constant 0 : i32
    %0 = arith.cmpi eq, %arg1, %c0_i32 : i32
    %1 = arith.extui %0 : i1 to i32
    %c0_i32_0 = arith.constant 0 : i32
    %2 = arith.cmpi ne, %1, %c0_i32_0 : i32
    scf.if %2 {
      %c0_33 = arith.constant 0 : index
      %c0_34 = arith.constant 0 : index
      %c0_35 = arith.constant 0 : index
      %40 = vector.load %arg2[%c0_33, %c0_34, %c0_35] : memref<2x128x128xf32, #tpu.memory_space<vmem>>, vector<2x128x128xf32>
      %c0_36 = arith.constant 0 : index
      %c0_37 = arith.constant 0 : index
      %c0_38 = arith.constant 0 : index
      %41 = vector.load %arg7[%c0_36, %c0_37, %c0_38] : memref<1x1x128xf32, #tpu.memory_space<vmem>>, vector<1x1x128xf32>
      %c0_39 = arith.constant 0 : index
      %c0_40 = arith.constant 0 : index
      %c0_41 = arith.constant 0 : index
      %42 = vector.load %arg6[%c0_39, %c0_40, %c0_41] : memref<1x1x128xf32, #tpu.memory_space<vmem>>, vector<1x1x128xf32>
      %43 = vector.broadcast %41 : vector<1x1x128xf32> to vector<2x128x128xf32>
      %44 = arith.mulf %40, %43 : vector<2x128x128xf32>
      %45 = vector.broadcast %42 : vector<1x1x128xf32> to vector<2x128x128xf32>
      %46 = arith.addf %44, %45 : vector<2x128x128xf32>
      %47 = arith.truncf %46 : vector<2x128x128xf32> to vector<2x128x128xbf16>
      %c0_42 = arith.constant 0 : index
      %c0_43 = arith.constant 0 : index
      %c0_44 = arith.constant 0 : index
      %48 = vector.load %arg9[%c0_42, %c0_43, %c0_44] : memref<2x128x128xbf16, #tpu.memory_space<vmem>>, vector<2x128x128xbf16>
      tpu.vector_store %arg9[%c0_42, %c0_43, %c0_44], %47 {strides = array<i32>} : memref<2x128x128xbf16, #tpu.memory_space<vmem>>, vector<2x128x128xbf16>,
      %cst_45 = arith.constant 0xFF800000 : f32
      %49 = vector.broadcast %cst_45 : f32 to vector<2x128x1xf32>
      %c0_46 = arith.constant 0 : index
      %c0_47 = arith.constant 0 : index
      %c0_48 = arith.constant 0 : index
      %50 = vector.load %arg10[%c0_46, %c0_47, %c0_48] : memref<2x128x1xf32, #tpu.memory_space<vmem>>, vector<2x128x1xf32>
      tpu.vector_store %arg10[%c0_46, %c0_47, %c0_48], %49 {strides = array<i32>} : memref<2x128x1xf32, #tpu.memory_space<vmem>>, vector<2x128x1xf32>,
      %cst_49 = arith.constant 0.000000e+00 : f32
      %51 = vector.broadcast %cst_49 : f32 to vector<2x128x1xf32>
      %c0_50 = arith.constant 0 : index
      %c0_51 = arith.constant 0 : index
      %c0_52 = arith.constant 0 : index
      %52 = vector.load %arg11[%c0_50, %c0_51, %c0_52] : memref<2x128x1xf32, #tpu.memory_space<vmem>>, vector<2x128x1xf32>
      tpu.vector_store %arg11[%c0_50, %c0_51, %c0_52], %51 {strides = array<i32>} : memref<2x128x1xf32, #tpu.memory_space<vmem>>, vector<2x128x1xf32>,
      %cst_53 = arith.constant 0.000000e+00 : f32
      %53 = vector.broadcast %cst_53 : f32 to vector<2x128x128xf32>
      %c0_54 = arith.constant 0 : index
      %c0_55 = arith.constant 0 : index
      %c0_56 = arith.constant 0 : index
      %54 = vector.load %arg12[%c0_54, %c0_55, %c0_56] : memref<2x128x128xf32, #tpu.memory_space<vmem>>, vector<2x128x128xf32>
      tpu.vector_store %arg12[%c0_54, %c0_55, %c0_56], %53 {strides = array<i32>} : memref<2x128x128xf32, #tpu.memory_space<vmem>>, vector<2x128x128xf32>,
    } else {
    }
    %c0 = arith.constant 0 : index
    %c0_1 = arith.constant 0 : index
    %c0_2 = arith.constant 0 : index
    %3 = vector.load %arg3[%c0, %c0_1, %c0_2] : memref<2x128x128xf32, #tpu.memory_space<vmem>>, vector<2x128x128xf32>
    %4 = arith.truncf %3 : vector<2x128x128xf32> to vector<2x128x128xbf16>
    %c0_3 = arith.constant 0 : index
    %c0_4 = arith.constant 0 : index
    %c0_5 = arith.constant 0 : index
    %5 = vector.load %arg4[%c0_3, %c0_4, %c0_5] : memref<2x1x128xf32, #tpu.memory_space<vmem>>, vector<2x1x128xf32>
    %c0_6 = arith.constant 0 : index
    %c0_7 = arith.constant 0 : index
    %c0_8 = arith.constant 0 : index
    %6 = vector.load %arg9[%c0_6, %c0_7, %c0_8] : memref<2x128x128xbf16, #tpu.memory_space<vmem>>, vector<2x128x128xbf16>
    "tpu.trace_start"() <{level = 10 : i32, message = "bld,bmd->blm"}> : () -> ()
    %cst = arith.constant dense<0.000000e+00> : vector<2x128x128xf32>
    %7 = tpu.matmul %6, %4, %cst {dimension_numbers = #tpu.dot_dimension_numbers<[2], [2], [1], [1], [0, 0, 0, 1, 1, 1], [0], [0]>} : vector<2x128x128xbf16>, vector<2x128x128xbf16>, vector<2x128x128xf32> -> vector<2x128x128xf32>
    "tpu.trace_stop"() : () -> ()
    %cst_9 = arith.constant 1.000000e+00 : f32
    %8 = vector.broadcast %cst_9 : f32 to vector<2x1x128xf32>
    %9 = arith.subf %8, %5 : vector<2x1x128xf32>
    %cst_10 = arith.constant 1.000000e+30 : f32
    %10 = vector.broadcast %cst_10 : f32 to vector<2x1x128xf32>
    %11 = arith.mulf %10, %9 : vector<2x1x128xf32>
    %12 = vector.broadcast %11 : vector<2x1x128xf32> to vector<2x128x128xf32>
    %13 = arith.subf %7, %12 : vector<2x128x128xf32>
    %c0_11 = arith.constant 0 : index
    %c0_12 = arith.constant 0 : index
    %c0_13 = arith.constant 0 : index
    %14 = vector.load %arg10[%c0_11, %c0_12, %c0_13] : memref<2x128x1xf32, #tpu.memory_space<vmem>>, vector<2x128x1xf32>
    %cst_14 = arith.constant dense<0xFF800000> : vector<2x128xf32>
    %15 = vector.multi_reduction <maximumf>, %13, %cst_14 [2] : vector<2x128x128xf32> to vector<2x128xf32>
    %16 = vector.shape_cast %15 : vector<2x128xf32> to vector<2x128x1xf32>
    %17 = arith.maximumf %14, %16 : vector<2x128x1xf32>
    %18 = arith.subf %14, %17 : vector<2x128x1xf32>
    %19 = math.exp %18 : vector<2x128x1xf32>
    %20 = vector.broadcast %17 : vector<2x128x1xf32> to vector<2x128x128xf32>
    %21 = arith.subf %13, %20 : vector<2x128x128xf32>
    %22 = math.exp %21 : vector<2x128x128xf32>
    %c0_15 = arith.constant 0 : index
    %c0_16 = arith.constant 0 : index
    %c0_17 = arith.constant 0 : index
    %23 = vector.load %arg11[%c0_15, %c0_16, %c0_17] : memref<2x128x1xf32, #tpu.memory_space<vmem>>, vector<2x128x1xf32>
    %24 = arith.mulf %19, %23 : vector<2x128x1xf32>
    %cst_18 = arith.constant dense<0.000000e+00> : vector<2x128xf32>
    %25 = vector.multi_reduction <add>, %22, %cst_18 [2] : vector<2x128x128xf32> to vector<2x128xf32>
    %26 = vector.shape_cast %25 : vector<2x128xf32> to vector<2x128x1xf32>
    %27 = arith.addf %24, %26 : vector<2x128x1xf32>
    %c0_19 = arith.constant 0 : index
    %c0_20 = arith.constant 0 : index
    %c0_21 = arith.constant 0 : index
    %28 = vector.load %arg11[%c0_19, %c0_20, %c0_21] : memref<2x128x1xf32, #tpu.memory_space<vmem>>, vector<2x128x1xf32>
    tpu.vector_store %arg11[%c0_19, %c0_20, %c0_21], %27 {strides = array<i32>} : memref<2x128x1xf32, #tpu.memory_space<vmem>>, vector<2x128x1xf32>,
    %c0_22 = arith.constant 0 : index
    %c0_23 = arith.constant 0 : index
    %c0_24 = arith.constant 0 : index
    %29 = vector.load %arg12[%c0_22, %c0_23, %c0_24] : memref<2x128x128xf32, #tpu.memory_space<vmem>>, vector<2x128x128xf32>
    %30 = vector.broadcast %19 : vector<2x128x1xf32> to vector<2x128x128xf32>
    %31 = arith.mulf %30, %29 : vector<2x128x128xf32>
    %32 = arith.truncf %22 : vector<2x128x128xf32> to vector<2x128x128xbf16>
    "tpu.trace_start"() <{level = 10 : i32, message = "blm,bmd->bld"}> : () -> ()
    %cst_25 = arith.constant dense<0.000000e+00> : vector<2x128x128xf32>
    %33 = tpu.matmul %32, %4, %cst_25 {dimension_numbers = #tpu.dot_dimension_numbers<[2], [1], [1], [2], [0, 0, 0, 1, 1, 2], [0], [0]>} : vector<2x128x128xbf16>, vector<2x128x128xbf16>, vector<2x128x128xf32> -> vector<2x128x128xf32>
    "tpu.trace_stop"() : () -> ()
    %34 = arith.addf %31, %33 : vector<2x128x128xf32>
    %c0_26 = arith.constant 0 : index
    %c0_27 = arith.constant 0 : index
    %c0_28 = arith.constant 0 : index
    %35 = vector.load %arg12[%c0_26, %c0_27, %c0_28] : memref<2x128x128xf32, #tpu.memory_space<vmem>>, vector<2x128x128xf32>
    tpu.vector_store %arg12[%c0_26, %c0_27, %c0_28], %34 {strides = array<i32>} : memref<2x128x128xf32, #tpu.memory_space<vmem>>, vector<2x128x128xf32>,
    %c0_29 = arith.constant 0 : index
    %c0_30 = arith.constant 0 : index
    %c0_31 = arith.constant 0 : index
    %36 = vector.load %arg10[%c0_29, %c0_30, %c0_31] : memref<2x128x1xf32, #tpu.memory_space<vmem>>, vector<2x128x1xf32>
    tpu.vector_store %arg10[%c0_29, %c0_30, %c0_31], %17 {strides = array<i32>} : memref<2x128x1xf32, #tpu.memory_space<vmem>>, vector<2x128x1xf32>,
    %c1_i32 = arith.constant 1 : i32
    %37 = arith.cmpi eq, %arg1, %c1_i32 : i32
    %38 = arith.extui %37 : i1 to i32
    %c0_i32_32 = arith.constant 0 : i32
    %39 = arith.cmpi ne, %38, %c0_i32_32 : i32
    scf.if %39 {
      %c0_33 = arith.constant 0 : index
      %c0_34 = arith.constant 0 : index
      %c0_35 = arith.constant 0 : index
      %40 = vector.load %arg2[%c0_33, %c0_34, %c0_35] : memref<2x128x128xf32, #tpu.memory_space<vmem>>, vector<2x128x128xf32>
      %c0_36 = arith.constant 0 : index
      %c0_37 = arith.constant 0 : index
      %c0_38 = arith.constant 0 : index
      %41 = vector.load %arg5[%c0_36, %c0_37, %c0_38] : memref<1x1x128xf32, #tpu.memory_space<vmem>>, vector<1x1x128xf32>
      %c0_39 = arith.constant 0 : index
      %c0_40 = arith.constant 0 : index
      %c0_41 = arith.constant 0 : index
      %42 = vector.load %arg12[%c0_39, %c0_40, %c0_41] : memref<2x128x128xf32, #tpu.memory_space<vmem>>, vector<2x128x128xf32>
      %c0_42 = arith.constant 0 : index
      %c0_43 = arith.constant 0 : index
      %c0_44 = arith.constant 0 : index
      %43 = vector.load %arg11[%c0_42, %c0_43, %c0_44] : memref<2x128x1xf32, #tpu.memory_space<vmem>>, vector<2x128x1xf32>
      %44 = tpu.reciprocal %43 {approx = true} : vector<2x128x1xf32> -> vector<2x128x1xf32>
      %45 = arith.mulf %43, %44 : vector<2x128x1xf32>
      %cst_45 = arith.constant 2.000000e+00 : f32
      %46 = vector.broadcast %cst_45 : f32 to vector<2x128x1xf32>
      %47 = arith.subf %46, %45 : vector<2x128x1xf32>
      %48 = arith.mulf %44, %47 : vector<2x128x1xf32>
      %49 = vector.broadcast %48 : vector<2x128x1xf32> to vector<2x128x128xf32>
      %50 = arith.mulf %42, %49 : vector<2x128x128xf32>
      %51 = vector.broadcast %41 : vector<1x1x128xf32> to vector<2x128x128xf32>
      %52 = arith.mulf %40, %51 : vector<2x128x128xf32>
      %cst_46 = arith.constant dense<0.000000e+00> : vector<2x128xf32>
      %53 = vector.multi_reduction <add>, %52, %cst_46 [2] : vector<2x128x128xf32> to vector<2x128xf32>
      %54 = vector.shape_cast %53 : vector<2x128xf32> to vector<2x128x1xf32>
      %c0_47 = arith.constant 0 : index
      %c0_48 = arith.constant 0 : index
      %c0_49 = arith.constant 0 : index
      %55 = vector.load %arg10[%c0_47, %c0_48, %c0_49] : memref<2x128x1xf32, #tpu.memory_space<vmem>>, vector<2x128x1xf32>
      %56 = arith.addf %55, %54 : vector<2x128x1xf32>
      %cst_50 = arith.constant dense<0xFF800000> : vector<2x1xf32>
      %57 = vector.multi_reduction <maximumf>, %56, %cst_50 [1] : vector<2x128x1xf32> to vector<2x1xf32>
      %58 = vector.shape_cast %57 : vector<2x1xf32> to vector<2x1x1xf32>
      %59 = vector.broadcast %58 : vector<2x1x1xf32> to vector<2x128x1xf32>
      %60 = arith.subf %56, %59 : vector<2x128x1xf32>
      %61 = math.exp %60 : vector<2x128x1xf32>
      %cst_51 = arith.constant dense<0.000000e+00> : vector<2x1xf32>
      %62 = vector.multi_reduction <add>, %61, %cst_51 [1] : vector<2x128x1xf32> to vector<2x1xf32>
      %63 = vector.shape_cast %62 : vector<2x1xf32> to vector<2x1x1xf32>
      %64 = vector.broadcast %61 : vector<2x128x1xf32> to vector<2x128x128xf32>
      %65 = arith.mulf %64, %40 : vector<2x128x128xf32>
      %cst_52 = arith.constant dense<0.000000e+00> : vector<2x128xf32>
      %66 = vector.multi_reduction <add>, %65, %cst_52 [1] : vector<2x128x128xf32> to vector<2x128xf32>
      %67 = vector.shape_cast %66 : vector<2x128xf32> to vector<2x1x128xf32>
      %68 = tpu.reciprocal %63 {approx = true} : vector<2x1x1xf32> -> vector<2x1x1xf32>
      %69 = arith.mulf %63, %68 : vector<2x1x1xf32>
      %cst_53 = arith.constant 2.000000e+00 : f32
      %70 = vector.broadcast %cst_53 : f32 to vector<2x1x1xf32>
      %71 = arith.subf %70, %69 : vector<2x1x1xf32>
      %72 = arith.mulf %68, %71 : vector<2x1x1xf32>
      %73 = vector.broadcast %72 : vector<2x1x1xf32> to vector<2x1x128xf32>
      %74 = arith.mulf %67, %73 : vector<2x1x128xf32>
      %c0_54 = arith.constant 0 : index
      %c0_55 = arith.constant 0 : index
      %c0_56 = arith.constant 0 : index
      %75 = vector.load %arg8[%c0_54, %c0_55, %c0_56] : memref<2x128x512xf32, #tpu.memory_space<vmem>>, vector<2x128x128xf32>
      tpu.vector_store %arg8[%c0_54, %c0_55, %c0_56], %40 {strides = array<i32>} : memref<2x128x512xf32, #tpu.memory_space<vmem>>, vector<2x128x128xf32>,
      %c0_57 = arith.constant 0 : index
      %c0_58 = arith.constant 0 : index
      %c128 = arith.constant 128 : index
      %76 = vector.load %arg8[%c0_57, %c0_58, %c128] : memref<2x128x512xf32, #tpu.memory_space<vmem>>, vector<2x128x128xf32>
      tpu.vector_store %arg8[%c0_57, %c0_58, %c128], %50 {strides = array<i32>} : memref<2x128x512xf32, #tpu.memory_space<vmem>>, vector<2x128x128xf32>,
      %77 = arith.mulf %40, %50 : vector<2x128x128xf32>
      %c0_59 = arith.constant 0 : index
      %c0_60 = arith.constant 0 : index
      %c256 = arith.constant 256 : index
      %78 = vector.load %arg8[%c0_59, %c0_60, %c256] : memref<2x128x512xf32, #tpu.memory_space<vmem>>, vector<2x128x128xf32>
      tpu.vector_store %arg8[%c0_59, %c0_60, %c256], %77 {strides = array<i32>} : memref<2x128x512xf32, #tpu.memory_space<vmem>>, vector<2x128x128xf32>,
      %79 = vector.broadcast %74 : vector<2x1x128xf32> to vector<2x128x128xf32>
      %80 = arith.mulf %79, %50 : vector<2x128x128xf32>
      %c0_61 = arith.constant 0 : index
      %c0_62 = arith.constant 0 : index
      %c384 = arith.constant 384 : index
      %81 = vector.load %arg8[%c0_61, %c0_62, %c384] : memref<2x128x512xf32, #tpu.memory_space<vmem>>, vector<2x128x128xf32>
      tpu.vector_store %arg8[%c0_61, %c0_62, %c384], %80 {strides = array<i32>} : memref<2x128x512xf32, #tpu.memory_space<vmem>>, vector<2x128x128xf32>,
    } else {
    }
    return
  }
  func.func @transform_0(%arg0: i32, %arg1: i32) -> (i32, i32, i32) {
    %c0_i32 = arith.constant 0 : i32
    %c0_i32_0 = arith.constant 0 : i32
    %c0_i32_1 = arith.constant 0 : i32
    return %arg0, %c0_i32, %c0_i32_0 : i32, i32, i32
  }
  func.func @transform_1(%arg0: i32, %arg1: i32) -> (i32, i32, i32) {
    %c0_i32 = arith.constant 0 : i32
    %c0_i32_0 = arith.constant 0 : i32
    return %arg0, %arg1, %c0_i32 : i32, i32, i32
  }
  func.func @transform_2(%arg0: i32, %arg1: i32) -> (i32, i32, i32) {
    %c0_i32 = arith.constant 0 : i32
    %c0_i32_0 = arith.constant 0 : i32
    return %arg0, %c0_i32, %arg1 : i32, i32, i32
  }
  func.func @transform_3(%arg0: i32, %arg1: i32) -> (i32, i32, i32) {
    %c0_i32 = arith.constant 0 : i32
    %c0_i32_0 = arith.constant 0 : i32
    %c0_i32_1 = arith.constant 0 : i32
    %c0_i32_2 = arith.constant 0 : i32
    return %c0_i32, %c0_i32_0, %c0_i32_1 : i32, i32, i32
  }
  func.func @transform_4(%arg0: i32, %arg1: i32) -> (i32, i32, i32) {
    %c0_i32 = arith.constant 0 : i32
    %c0_i32_0 = arith.constant 0 : i32
    %c0_i32_1 = arith.constant 0 : i32
    %c0_i32_2 = arith.constant 0 : i32
    return %c0_i32, %c0_i32_0, %c0_i32_1 : i32, i32, i32
  }
  func.func @transform_5(%arg0: i32, %arg1: i32) -> (i32, i32, i32) {
    %c0_i32 = arith.constant 0 : i32
    %c0_i32_0 = arith.constant 0 : i32
    %c0_i32_1 = arith.constant 0 : i32
    %c0_i32_2 = arith.constant 0 : i32
    return %c0_i32, %c0_i32_0, %c0_i32_1 : i32, i32, i32
  }
  func.func @transform_6(%arg0: i32, %arg1: i32) -> (i32, i32, i32) {
    %c0_i32 = arith.constant 0 : i32
    %c0_i32_0 = arith.constant 0 : i32
    %c0_i32_1 = arith.constant 0 : i32
    return %arg0, %c0_i32, %c0_i32_0 : i32, i32, i32
  }
}

</mosaic_0001>

<llo_original>
// kernel: tpu_custom_call.1
$region0: #{tpu_custom_call.1}
  #allocation0 [shape = 'u32[]', space=smem, size = 0x4, offset = 0x4, fixed_abs, tag = 'smem constant byte address 0x4 - core index']
  #allocation1 [shape = 'u32[144,128]{1,0:T(1,128)}', space=vmem, size = 0x12000, scoped, tag = 'internal scratch']
  #allocation2 [shape = 'bf16[2,128,128]{2,1,0:T(16,128)(2,1)}', space=vmem, size = 0x10000, scoped, tag = 'scratch operand']
  #allocation3 [shape = 'f32[2,128,1]{2,1,0:T(8,128)}', space=vmem, size = 0x20000, scoped, tag = 'scratch operand']
  #allocation4 [shape = 'f32[2,128,1]{2,1,0:T(8,128)}', space=vmem, size = 0x20000, scoped, tag = 'scratch operand']
  #allocation5 [shape = 'f32[2,128,128]{2,1,0:T(8,128)}', space=vmem, size = 0x20000, scoped, tag = 'scratch operand']
  #allocation13 [shape = 's32[]', space=sflag, size = 0x4, offset = 0, fixed_abs, tag = 'sflag constant byte address 0x0 - dummy sync flag']
  %s0 = inlined_call_operand.hbm [shape: f32[2,128,128], index: 0, kind: input, shape index: {}]
  %s1 = inlined_call_operand.hbm [shape: f32[2,256,128], index: 1, kind: input, shape index: {}]
  %s2 = inlined_call_operand.vmem [shape: f32[2,1,256], index: 2, kind: input, shape index: {}]
  %s3 = inlined_call_operand.vmem [shape: f32[1,1,128], index: 3, kind: input, shape index: {}]
  %s4 = inlined_call_operand.vmem [shape: f32[1,1,128], index: 4, kind: input, shape index: {}]
  %s5 = inlined_call_operand.vmem [shape: f32[1,1,128], index: 5, kind: input, shape index: {}]
  %s6 = inlined_call_operand.hbm [shape: f32[2,128,512], index: 6, kind: output, shape index: {}]
  %s7 = sld [smem:[#allocation0]]
  $region107: #{tpu_custom_call.1} parent=0
    _
  %s9 = ssub.s32 1, %s7
  %s10 = scalar_select 0, %s9, %s7
  $region1: #{tpu_custom_call.1} parent=0
    #allocation6 [shape = 'u8[131072]{0}', space=vmem, size = 0x20000, scoped, tag = 'input window, operand 0, single buffered']
    #allocation7 [shape = 's32[2]{0}', space=sflag, size = 0x8, scoped, tag = 'scoped memory for tpu_custom_call.1']
    #allocation8 [shape = 's32[2]{0}', space=sflag, size = 0x8, scoped, tag = 'scoped memory for tpu_custom_call.1']
    #allocation9 [shape = 'u8[262144]{0}', space=vmem, size = 0x40000, scoped, tag = 'input window, operand 1']
    #allocation10 [shape = 's32[2]{0}', space=sflag, size = 0x8, scoped, tag = 'scoped memory for tpu_custom_call.1']
    #allocation11 [shape = 'u8[2048]{0}', space=vmem, size = 0x800, scoped, tag = 'input window, operand 2']
    #allocation12 [shape = 'u8[524288]{0}', space=vmem, size = 0x80000, scoped, tag = 'output window, operand 0, single buffered']
    %11 = vsyncpa [#allocation7], 0
    %12 = vsyncpa [#allocation10], 0
    %s13 = scalar_lea.sflag [#allocation10], 1
    %14 = vsyncpa %s13, 0
    %15 = vsyncpa [#allocation8], 0
    loop: start=0, step=1, limit=4
    $region2: #{tpu_custom_call.1} parent=1 // loop_pre_header
      _
    $region3: #{tpu_custom_call.1} parent=1 // loop_header
      %s17 = sphi 0, %s21
      %p18 = scmp.ge.s32.totalorder %s17, 4
      %s24 = sphi 0, %s36
      %s25 = sphi 0, %s32
      %s26 = sphi 0, %s24
      %s27 = sphi 0, %s25
      %s28 = sphi 0, %s26
      %s29 = sphi 0, %s27
      %s39 = sphi 0, %s41
      %s42 = sphi 0, %s39
      %s43 = sphi 0, %s42
      %s59 = sphi 0, %s43
      %s67 = sphi 0, %s69
      %s70 = sphi 0, %s67
      %s71 = sphi 0, %s70
      %s87 = sphi 0, %s71
      %s95 = sphi 0, %s97
      %s98 = sphi 0, %s95
      %s99 = sphi 0, %s98
      %s115 = sphi 0, %s99
      %s119 = sphi 0, %s119
      %s121 = sphi 0, %s119
      %s122 = sphi 0, %s121
      %s136 = sphi 0, %s122
      %s140 = sphi 0, %s140
      %s142 = sphi 0, %s140
      %s143 = sphi 0, %s142
      %s157 = sphi 0, %s143
      %s161 = sphi 0, %s161
      %s163 = sphi 0, %s161
      %s164 = sphi 0, %s163
      %s178 = sphi 0, %s164
      %s184 = sphi 0, %s186
      %s187 = sphi 0, %s184
      %s188 = sphi 0, %s187
      %s204 = sphi 0, %s188
    $region4: #{tpu_custom_call.1} parent=1 // loop_header_branch
      %20 = sbr.rel (%p18) target = $region8
    $region5: #{tpu_custom_call.1} parent=1 // loop_body
      %s22 = ssub.s32 %s17, 1
      %s23 = ssub.s32 %s17, 2
      %s30 = sadd.s32 1, %s25
      %p31 = scmp.ge.s32.totalorder %s30, 2
      %s32 = scalar_select %p31, 0, %s30
      %s33 = sadd.s32 1, %s24
      %s34 = scalar_select %p31, %s33, %s24
      %p35 = scmp.ge.s32.totalorder %s34, 1
      %s36 = scalar_select %p35, 0, %s34
      %s37 = ssub.s32 %s24, %s36
      %p38 = scmp.eq.s32.totalorder %s37, 0
      %s40 = sadd.s32 %s39, 1
      %s41 = scalar_select %p38, %s39, %s40
      %p44 = pneg %p38
      %p45 = scmp.eq.s32.totalorder %s17, 1
      %p46 = por %p44, %p45
      %p47 = scmp.ne.s32.totalorder %s39, %s42
      %p48 = scmp.eq.s32.totalorder %s17, 0
      %p49 = por %p47, %p48
      %p50 = scmp.ne.s32.totalorder %s39, %s42
      %p51 = scmp.eq.s32.totalorder %s22, 1
      %p52 = por %p50, %p51
      %p53 = scmp.ne.s32.totalorder %s42, %s43
      %p54 = scmp.eq.s32.totalorder %s22, 0
      %p55 = por %p53, %p54
      %p56 = scmp.ne.s32.totalorder %s42, %s43
      %p57 = scmp.eq.s32.totalorder %s23, 1
      %p58 = por %p56, %p57
      %p60 = scmp.ne.s32.totalorder %s43, %s59
      %p61 = scmp.eq.s32.totalorder %s23, 0
      %p62 = por %p60, %p61
      %s63 = ssub.s32 %s24, %s36
      %s64 = ssub.s32 %s25, %s32
      %s65 = sor.u32 %s63, %s64
      %p66 = scmp.eq.s32.totalorder %s65, 0
      %s68 = sadd.s32 %s67, 1
      %s69 = scalar_select %p66, %s67, %s68
      %p72 = pneg %p66
      %p73 = scmp.eq.s32.totalorder %s17, 1
      %p74 = por %p72, %p73
      %p75 = scmp.ne.s32.totalorder %s67, %s70
      %p76 = scmp.eq.s32.totalorder %s17, 0
      %p77 = por %p75, %p76
      %p78 = scmp.ne.s32.totalorder %s67, %s70
      %p79 = scmp.eq.s32.totalorder %s22, 1
      %p80 = por %p78, %p79
      %p81 = scmp.ne.s32.totalorder %s70, %s71
      %p82 = scmp.eq.s32.totalorder %s22, 0
      %p83 = por %p81, %p82
      %p84 = scmp.ne.s32.totalorder %s70, %s71
      %p85 = scmp.eq.s32.totalorder %s23, 1
      %p86 = por %p84, %p85
      %p88 = scmp.ne.s32.totalorder %s71, %s87
      %p89 = scmp.eq.s32.totalorder %s23, 0
      %p90 = por %p88, %p89
      %s91 = ssub.s32 %s24, %s36
      %s92 = ssub.s32 %s25, %s32
      %s93 = sor.u32 %s91, %s92
      %p94 = scmp.eq.s32.totalorder %s93, 0
      %s96 = sadd.s32 %s95, 1
      %s97 = scalar_select %p94, %s95, %s96
      %p100 = pneg %p94
      %p101 = scmp.eq.s32.totalorder %s17, 1
      %p102 = por %p100, %p101
      %p103 = scmp.ne.s32.totalorder %s95, %s98
      %p104 = scmp.eq.s32.totalorder %s17, 0
      %p105 = por %p103, %p104
      %p106 = scmp.ne.s32.totalorder %s95, %s98
      %p107 = scmp.eq.s32.totalorder %s22, 1
      %p108 = por %p106, %p107
      %p109 = scmp.ne.s32.totalorder %s98, %s99
      %p110 = scmp.eq.s32.totalorder %s22, 0
      %p111 = por %p109, %p110
      %p112 = scmp.ne.s32.totalorder %s98, %s99
      %p113 = scmp.eq.s32.totalorder %s23, 1
      %p114 = por %p112, %p113
      %p116 = scmp.ne.s32.totalorder %s99, %s115
      %p117 = scmp.eq.s32.totalorder %s23, 0
      %p118 = por %p116, %p117
      %s120 = sadd.s32 %s119, 1
      %p123 = scmp.eq.s32.totalorder %s17, 1
      %p124 = scmp.ne.s32.totalorder %s119, %s121
      %p125 = scmp.eq.s32.totalorder %s17, 0
      %p126 = por %p124, %p125
      %p127 = scmp.ne.s32.totalorder %s119, %s121
      %p128 = scmp.eq.s32.totalorder %s22, 1
      %p129 = por %p127, %p128
      %p130 = scmp.ne.s32.totalorder %s121, %s122
      %p131 = scmp.eq.s32.totalorder %s22, 0
      %p132 = por %p130, %p131
      %p133 = scmp.ne.s32.totalorder %s121, %s122
      %p134 = scmp.eq.s32.totalorder %s23, 1
      %p135 = por %p133, %p134
      %p137 = scmp.ne.s32.totalorder %s122, %s136
      %p138 = scmp.eq.s32.totalorder %s23, 0
      %p139 = por %p137, %p138
      %s141 = sadd.s32 %s140, 1
      %p144 = scmp.eq.s32.totalorder %s17, 1
      %p145 = scmp.ne.s32.totalorder %s140, %s142
      %p146 = scmp.eq.s32.totalorder %s17, 0
      %p147 = por %p145, %p146
      %p148 = scmp.ne.s32.totalorder %s140, %s142
      %p149 = scmp.eq.s32.totalorder %s22, 1
      %p150 = por %p148, %p149
      %p151 = scmp.ne.s32.totalorder %s142, %s143
      %p152 = scmp.eq.s32.totalorder %s22, 0
      %p153 = por %p151, %p152
      %p154 = scmp.ne.s32.totalorder %s142, %s143
      %p155 = scmp.eq.s32.totalorder %s23, 1
      %p156 = por %p154, %p155
      %p158 = scmp.ne.s32.totalorder %s143, %s157
      %p159 = scmp.eq.s32.totalorder %s23, 0
      %p160 = por %p158, %p159
      %s162 = sadd.s32 %s161, 1
      %p165 = scmp.eq.s32.totalorder %s17, 1
      %p166 = scmp.ne.s32.totalorder %s161, %s163
      %p167 = scmp.eq.s32.totalorder %s17, 0
      %p168 = por %p166, %p167
      %p169 = scmp.ne.s32.totalorder %s161, %s163
      %p170 = scmp.eq.s32.totalorder %s22, 1
      %p171 = por %p169, %p170
      %p172 = scmp.ne.s32.totalorder %s163, %s164
      %p173 = scmp.eq.s32.totalorder %s22, 0
      %p174 = por %p172, %p173
      %p175 = scmp.ne.s32.totalorder %s163, %s164
      %p176 = scmp.eq.s32.totalorder %s23, 1
      %p177 = por %p175, %p176
      %p179 = scmp.ne.s32.totalorder %s164, %s178
      %p180 = scmp.eq.s32.totalorder %s23, 0
      %p181 = por %p179, %p180
      %s182 = ssub.s32 %s24, %s36
      %p183 = scmp.eq.s32.totalorder %s182, 0
      %s185 = sadd.s32 %s184, 1
      %s186 = scalar_select %p183, %s184, %s185
      %p189 = pneg %p183
      %p190 = scmp.eq.s32.totalorder %s17, 1
      %p191 = por %p189, %p190
      %p192 = scmp.ne.s32.totalorder %s184, %s187
      %p193 = scmp.eq.s32.totalorder %s17, 0
      %p194 = por %p192, %p193
      %p195 = scmp.ne.s32.totalorder %s184, %s187
      %p196 = scmp.eq.s32.totalorder %s22, 1
      %p197 = por %p195, %p196
      %p198 = scmp.ne.s32.totalorder %s187, %s188
      %p199 = scmp.eq.s32.totalorder %s22, 0
      %p200 = por %p198, %p199
      %p201 = scmp.ne.s32.totalorder %s187, %s188
      %p202 = scmp.eq.s32.totalorder %s23, 1
      %p203 = por %p201, %p202
      %p205 = scmp.ne.s32.totalorder %s188, %s204
      %p206 = scmp.eq.s32.totalorder %s23, 0
      %p207 = por %p205, %p206
      %p208 = scmp.le.s32.totalorder 1, %s17
      %p209 = scmp.lt.s32.totalorder %s17, 3
      %p210 = pnand %p208, %p209
      %p211 = pneg %p210
      // Predicated region
      $region9: #{tpu_custom_call.1} parent=5 // pred_check
        _
      $region10: #{tpu_custom_call.1} parent=5 // pred_check_branch
        %213 = sbr.rel (%p210) target = $region12
      $region11: #{tpu_custom_call.1} parent=5 // pred_region
        %s214 = ssub.s32 %s17, 1
        // Predicated region
        $region13: #{tpu_custom_call.1} parent=11 // pred_check
          %p215 = pneg %p55
        $region14: #{tpu_custom_call.1} parent=11 // pred_check_branch
          %217 = sbr.rel (%p215) target = $region16
        $region15: #{tpu_custom_call.1} parent=11 // pred_region
          %s218 = smul.u32 2, %s26
          %s220 = ssub.s32 4096, 4096
          %221 = vsyncadd [#allocation7], %s220
          %s222 = smul.addr %s218, 16
          %s223 = smul.addr %s222, 128
          %s224 = scalar_lea.hbm %s0, %s223
          %s225 = sshll.u32 [#allocation6], 4
          %s226 = int_to_ptr.vmem [resolvable:$true] %s225
          %231 = dma.hbm_to_vmem [thread:$0]  %s224, 4096, %s226, [#allocation7], 128, 128, 8
        $region16: #{tpu_custom_call.1} parent=11 // pred_fallthru
          _
        // Predicated region
        $region17: #{tpu_custom_call.1} parent=11 // pred_check
          %p232 = pneg %p132
        $region18: #{tpu_custom_call.1} parent=11 // pred_check_branch
          %234 = sbr.rel (%p232) target = $region20
        $region19: #{tpu_custom_call.1} parent=11 // pred_region
          _
        $region20: #{tpu_custom_call.1} parent=11 // pred_fallthru
          _
        // Predicated region
        $region21: #{tpu_custom_call.1} parent=11 // pred_check
          %p235 = pneg %p153
        $region22: #{tpu_custom_call.1} parent=11 // pred_check_branch
          %237 = sbr.rel (%p235) target = $region24
        $region23: #{tpu_custom_call.1} parent=11 // pred_region
          _
        $region24: #{tpu_custom_call.1} parent=11 // pred_fallthru
          _
        // Predicated region
        $region25: #{tpu_custom_call.1} parent=11 // pred_check
          %p238 = pneg %p174
        $region26: #{tpu_custom_call.1} parent=11 // pred_check_branch
          %240 = sbr.rel (%p238) target = $region28
        $region27: #{tpu_custom_call.1} parent=11 // pred_region
          _
        $region28: #{tpu_custom_call.1} parent=11 // pred_fallthru
          _
      $region12: #{tpu_custom_call.1} parent=5 // pred_fallthru
        _
      %p241 = scmp.lt.s32.totalorder %s17, 2
      // Predicated region
      $region29: #{tpu_custom_call.1} parent=5 // pred_check
        %p242 = pneg %p241
      $region30: #{tpu_custom_call.1} parent=5 // pred_check_branch
        %244 = sbr.rel (%p242) target = $region32
      $region31: #{tpu_custom_call.1} parent=5 // pred_region
        // Predicated region
        $region33: #{tpu_custom_call.1} parent=31 // pred_check
          %p245 = pneg %p77
        $region34: #{tpu_custom_call.1} parent=31 // pred_check_branch
          %247 = sbr.rel (%p245) target = $region36
        $region35: #{tpu_custom_call.1} parent=31 // pred_region
          #allocation14 [shape = 'u32[6]{0}', space=smem, size = 0x18, scoped, tag = 'DMA stride descriptor']
          %s248 = sand.u32 %s67, 1
          %s249 = scalar_lea.sflag [#allocation10], %s248
          %s250 = sand.u32 %s67, 1
          %s251 = smul.addr %s250, 256
          %s252 = scalar_lea.vmem [#allocation9], %s251
          %s253 = smul.u32 2, %s24
          %s254 = smul.u32 16, %s25
          %s256 = ssub.s32 4096, 4096
          %257 = vsyncadd %s249, %s256
          %s258 = smul.addr %s253, 32
          %s259 = sadd.s32 %s254, %s258
          %s260 = smul.addr %s259, 128
          %s261 = scalar_lea.hbm %s1, %s260
          %s263 = sshll.u32 1, 14
          %s264 = sxor.u32 4294967295, %s263
          %s266 = sld [smem:[#allocation0]]
          %s267 = sadd.s32 2, %s266
          %s269 = sshll.u32 7, 26
          %s270 = sxor.u32 4294967295, %s269
          %s271 = sand.u32 0, %s270
          %s272 = sshll.u32 %s267, 26
          %s273 = sor.u32 %s271, %s272
          %s274 = sshll.u32 %s252, 4
          %s275 = int_to_ptr.vmem [resolvable:$true] %s274
          %281 = sst [smem:[#allocation14]] 4096
          %s282 = scalar_lea.smem [#allocation14], 1
          %283 = sst [smem:[%s282]] 2048
          %s284 = scalar_lea.smem [#allocation14], 2
          %285 = sst [smem:[%s284]] 16
          %s286 = scalar_lea.smem [#allocation14], 3
          %287 = sst [smem:[%s286]] 128
          %s288 = scalar_lea.smem [#allocation14], 4
          %289 = sst [smem:[%s288]] 128
          %s290 = scalar_lea.smem [#allocation14], 5
          %291 = sst [smem:[%s290]] 8
          %293 = dma.general %s261, 4096, %s275, %s249, [#allocation13], [#allocation14], %s273, 0
        $region36: #{tpu_custom_call.1} parent=31 // pred_fallthru
          _
        // Predicated region
        $region37: #{tpu_custom_call.1} parent=31 // pred_check
          %p294 = pneg %p105
        $region38: #{tpu_custom_call.1} parent=31 // pred_check_branch
          %296 = sbr.rel (%p294) target = $region40
        $region39: #{tpu_custom_call.1} parent=31 // pred_region
          %s297 = sand.u32 %s95, 1
          %s298 = sand.u32 %s95, 1
          %s299 = smul.addr %s298, 2
          %s300 = scalar_lea.vmem [#allocation11], %s299
          %s301 = smul.u32 2, %s24
          %s302 = smul.addr %s301, 2
          %s303 = sadd.s32 %s25, %s302
          %s304 = scalar_lea.vmem %s2, %s303
          // Predicated region
          $region41: #{tpu_custom_call.1} parent=39 // pred_check
            _
          $region42: #{tpu_custom_call.1} parent=39 // pred_check_branch
            %306 = sbr.rel (0) target = $region44
          $region43: #{tpu_custom_call.1} parent=39 // pred_region
            // Predicated region
            $region45: #{tpu_custom_call.1} parent=43 // pred_check
              _
            $region46: #{tpu_custom_call.1} parent=43 // pred_check_branch
              %308 = sbr.rel target = $region48
            $region47: #{tpu_custom_call.1} parent=43 // pred_region
              // Predicated region
              $region60: #{tpu_custom_call.1} parent=47 // pred_check
                _
              $region61: #{tpu_custom_call.1} parent=47 // pred_check_branch
                %325 = sbr.rel (0) target = $region63
              $region62: #{tpu_custom_call.1} parent=47 // pred_region
                loop: start=0, step=1, limit=1
                $region64: #{tpu_custom_call.1} parent=62 // loop_pre_header
                  _
                $region65: #{tpu_custom_call.1} parent=62 // loop_header
                  %s328 = sphi 0, %s332
                  %p329 = scmp.ge.s32.totalorder %s328, 1
                  %s333 = sphi %s304, %s304
                  %s334 = sphi %s300, %s300
                $region66: #{tpu_custom_call.1} parent=62 // loop_header_branch
                  %331 = sbr.rel (%p329) target = $region70
                $region67: #{tpu_custom_call.1} parent=62 // loop_body
                  %v335 = vld [vmem:[%s333] sm:$0x1]
                  %336 = vst [vmem:[%s334] sm:$0x1] %v335
                  %v337 = vld [vmem:[%s333 + $0x2] sm:$0x1]
                  %338 = vst [vmem:[%s334 + $0x1] sm:$0x1] %v337
                $region68: #{tpu_custom_call.1} parent=62 // loop_footer
                  %s332 = sadd.s32 1, %s328
                $region69: #{tpu_custom_call.1} parent=62 // loop_footer_branch
                  %327 = sbr.rel target = $region65
                $region70: #{tpu_custom_call.1} parent=62 // loop_exit
                  _
              $region63: #{tpu_custom_call.1} parent=47 // pred_fallthru
                _
            $region48: #{tpu_custom_call.1} parent=43 // pred_fallthru
              _
            // Predicated region
            $region49: #{tpu_custom_call.1} parent=43 // pred_check
              _
            $region50: #{tpu_custom_call.1} parent=43 // pred_check_branch
              %310 = sbr.rel (0) target = $region52
            $region51: #{tpu_custom_call.1} parent=43 // pred_region
              loop: start=0, step=1, limit=1
              $region53: #{tpu_custom_call.1} parent=51 // loop_pre_header
                _
              $region54: #{tpu_custom_call.1} parent=51 // loop_header
                %s313 = sphi 0, %s317
                %p314 = scmp.ge.s32.totalorder %s313, 1
                %s318 = sphi %s304, %s304
                %s319 = sphi %s300, %s300
              $region55: #{tpu_custom_call.1} parent=51 // loop_header_branch
                %316 = sbr.rel (%p314) target = $region59
              $region56: #{tpu_custom_call.1} parent=51 // loop_body
                %v320 = vld [vmem:[%s318] sm:$0x1]
                %321 = vst [vmem:[%s319] sm:$0x1] %v320
                %v322 = vld [vmem:[%s318 + $0x2] sm:$0x1]
                %323 = vst [vmem:[%s319 + $0x1] sm:$0x1] %v322
              $region57: #{tpu_custom_call.1} parent=51 // loop_footer
                %s317 = sadd.s32 1, %s313
              $region58: #{tpu_custom_call.1} parent=51 // loop_footer_branch
                %312 = sbr.rel target = $region54
              $region59: #{tpu_custom_call.1} parent=51 // loop_exit
                _
            $region52: #{tpu_custom_call.1} parent=43 // pred_fallthru
              _
          $region44: #{tpu_custom_call.1} parent=39 // pred_fallthru
            _
          %339 = vnop
        $region40: #{tpu_custom_call.1} parent=31 // pred_fallthru
          _
      $region32: #{tpu_custom_call.1} parent=5 // pred_fallthru
        _
      %p340 = scmp.le.s32.totalorder 1, %s17
      %p341 = scmp.lt.s32.totalorder %s17, 3
      %p342 = pnand %p340, %p341
      %p343 = pneg %p342
      // Predicated region
      $region71: #{tpu_custom_call.1} parent=5 // pred_check
        _
      $region72: #{tpu_custom_call.1} parent=5 // pred_check_branch
        %345 = sbr.rel (%p342) target = $region74
      $region73: #{tpu_custom_call.1} parent=5 // pred_region
        %s346 = ssub.s32 %s17, 1
        // Predicated region
        $region75: #{tpu_custom_call.1} parent=73 // pred_check
          %p347 = pneg %p55
        $region76: #{tpu_custom_call.1} parent=73 // pred_check_branch
          %349 = sbr.rel (%p347) target = $region78
        $region77: #{tpu_custom_call.1} parent=73 // pred_region
          %350 = dma.done [#allocation7], 4096
        $region78: #{tpu_custom_call.1} parent=73 // pred_fallthru
          _
        %s351 = sand.u32 %s70, 1
        %s352 = scalar_lea.sflag [#allocation10], %s351
        %s353 = sand.u32 %s70, 1
        %s354 = smul.addr %s353, 256
        %s355 = scalar_lea.vmem [#allocation9], %s354
        // Predicated region
        $region79: #{tpu_custom_call.1} parent=73 // pred_check
          %p356 = pneg %p83
        $region80: #{tpu_custom_call.1} parent=73 // pred_check_branch
          %358 = sbr.rel (%p356) target = $region82
        $region81: #{tpu_custom_call.1} parent=73 // pred_region
          %359 = dma.done %s352, 4096
        $region82: #{tpu_custom_call.1} parent=73 // pred_fallthru
          _
        %s360 = sand.u32 %s98, 1
        %s361 = sand.u32 %s98, 1
        %s362 = smul.addr %s361, 2
        %s363 = scalar_lea.vmem [#allocation11], %s362
        // Predicated region
        $region83: #{tpu_custom_call.1} parent=73 // pred_check
          %p364 = pneg %p111
        $region84: #{tpu_custom_call.1} parent=73 // pred_check_branch
          %366 = sbr.rel (%p364) target = $region86
        $region85: #{tpu_custom_call.1} parent=73 // pred_region
          _
        $region86: #{tpu_custom_call.1} parent=73 // pred_fallthru
          _
        %p367 = pneg %p55
        %p368 = pneg %p52
        %s369 = sand.u32 %s70, 1
        %s370 = scalar_lea.sflag [#allocation10], %s369
        %s371 = sand.u32 %s70, 1
        %s372 = smul.addr %s371, 256
        %s373 = scalar_lea.vmem [#allocation9], %s372
        %p374 = pneg %p83
        %p375 = pneg %p80
        %s376 = sand.u32 %s98, 1
        %s377 = sand.u32 %s98, 1
        %s378 = smul.addr %s377, 2
        %s379 = scalar_lea.vmem [#allocation11], %s378
        %p380 = pneg %p111
        %p381 = pneg %p108
        %p382 = pneg %p132
        %p383 = pneg %p129
        %p384 = pneg %p153
        %p385 = pneg %p150
        %p386 = pneg %p174
        %p387 = pneg %p171
        %p388 = pneg %p200
        %p389 = pneg %p197
        %s390 = smul.u32 2, %s26
        %s391 = smul.u32 2, %s26
        %s392 = smul.u32 16, %s27
        %s393 = smul.u32 2, %s26
        %s394 = smul.u32 2, %s26
        %p396 = scmp.eq.s32.totalorder %s27, 0
        // Predicated region
        $region87: #{tpu_custom_call.1} parent=73 // pred_check
          %p397 = pneg %p396
        $region88: #{tpu_custom_call.1} parent=73 // pred_check_branch
          %399 = sbr.rel (%p397) target = $region90
        $region89: #{tpu_custom_call.1} parent=73 // pred_region
          %v400 = vld [vmem:[#allocation6] sm:$0xff]
          %v401 = vld [vmem:[#allocation6 + $0x8] sm:$0xff]
          %v402 = vld [vmem:[#allocation6 + $0x10] sm:$0xff]
          %v403 = vld [vmem:[#allocation6 + $0x18] sm:$0xff]
          %v404 = vld [vmem:[#allocation6 + $0x20] sm:$0xff]
          %v405 = vld [vmem:[#allocation6 + $0x28] sm:$0xff]
          %v406 = vld [vmem:[#allocation6 + $0x30] sm:$0xff]
          %v407 = vld [vmem:[#allocation6 + $0x38] sm:$0xff]
          %v408 = vld [vmem:[#allocation6 + $0x40] sm:$0xff]
          %v409 = vld [vmem:[#allocation6 + $0x48] sm:$0xff]
          %v410 = vld [vmem:[#allocation6 + $0x50] sm:$0xff]
          %v411 = vld [vmem:[#allocation6 + $0x58] sm:$0xff]
          %v412 = vld [vmem:[#allocation6 + $0x60] sm:$0xff]
          %v413 = vld [vmem:[#allocation6 + $0x68] sm:$0xff]
          %v414 = vld [vmem:[#allocation6 + $0x70] sm:$0xff]
          %v415 = vld [vmem:[#allocation6 + $0x78] sm:$0xff]
          %v416 = vld [vmem:[#allocation6 + $0x80] sm:$0xff]
          %v417 = vld [vmem:[#allocation6 + $0x88] sm:$0xff]
          %v418 = vld [vmem:[#allocation6 + $0x90] sm:$0xff]
          %v419 = vld [vmem:[#allocation6 + $0x98] sm:$0xff]
          %v420 = vld [vmem:[#allocation6 + $0xa0] sm:$0xff]
          %v421 = vld [vmem:[#allocation6 + $0xa8] sm:$0xff]
          %v422 = vld [vmem:[#allocation6 + $0xb0] sm:$0xff]
          %v423 = vld [vmem:[#allocation6 + $0xb8] sm:$0xff]
          %v424 = vld [vmem:[#allocation6 + $0xc0] sm:$0xff]
          %v425 = vld [vmem:[#allocation6 + $0xc8] sm:$0xff]
          %v426 = vld [vmem:[#allocation6 + $0xd0] sm:$0xff]
          %v427 = vld [vmem:[#allocation6 + $0xd8] sm:$0xff]
          %v428 = vld [vmem:[#allocation6 + $0xe0] sm:$0xff]
          %v429 = vld [vmem:[#allocation6 + $0xe8] sm:$0xff]
          %v430 = vld [vmem:[#allocation6 + $0xf0] sm:$0xff]
          %v431 = vld [vmem:[#allocation6 + $0xf8] sm:$0xff]
          %v432 = vld [vmem:[%s5] sm:$0x1]
          %v433 = vld [vmem:[%s4] sm:$0x1]
          %v435 = vlaneseq
          %v436 = vshrl.u32 %v435, 7
          %v437 = vsub.s32 0, %v436
          %v438 = vrot.slane %v432, %v437
          %v440 = vmul.f32 %v400, %v438
          %v441 = vmul.f32 %v401, %v438
          %v442 = vmul.f32 %v402, %v438
          %v443 = vmul.f32 %v403, %v438
          %v444 = vmul.f32 %v404, %v438
          %v445 = vmul.f32 %v405, %v438
          %v446 = vmul.f32 %v406, %v438
          %v447 = vmul.f32 %v407, %v438
          %v448 = vmul.f32 %v408, %v438
          %v449 = vmul.f32 %v409, %v438
          %v450 = vmul.f32 %v410, %v438
          %v451 = vmul.f32 %v411, %v438
          %v452 = vmul.f32 %v412, %v438
          %v453 = vmul.f32 %v413, %v438
          %v454 = vmul.f32 %v414, %v438
          %v455 = vmul.f32 %v415, %v438
          %v456 = vmul.f32 %v416, %v438
          %v457 = vmul.f32 %v417, %v438
          %v458 = vmul.f32 %v418, %v438
          %v459 = vmul.f32 %v419, %v438
          %v460 = vmul.f32 %v420, %v438
          %v461 = vmul.f32 %v421, %v438
          %v462 = vmul.f32 %v422, %v438
          %v463 = vmul.f32 %v423, %v438
          %v464 = vmul.f32 %v424, %v438
          %v465 = vmul.f32 %v425, %v438
          %v466 = vmul.f32 %v426, %v438
          %v467 = vmul.f32 %v427, %v438
          %v468 = vmul.f32 %v428, %v438
          %v469 = vmul.f32 %v429, %v438
          %v470 = vmul.f32 %v430, %v438
          %v471 = vmul.f32 %v431, %v438
          %v473 = vlaneseq
          %v474 = vshrl.u32 %v473, 7
          %v475 = vsub.s32 0, %v474
          %v476 = vrot.slane %v433, %v475
          %v478 = vadd.f32 %v440, %v476
          %v479 = vadd.f32 %v441, %v476
          %v480 = vadd.f32 %v442, %v476
          %v481 = vadd.f32 %v443, %v476
          %v482 = vadd.f32 %v444, %v476
          %v483 = vadd.f32 %v445, %v476
          %v484 = vadd.f32 %v446, %v476
          %v485 = vadd.f32 %v447, %v476
          %v486 = vadd.f32 %v448, %v476
          %v487 = vadd.f32 %v449, %v476
          %v488 = vadd.f32 %v450, %v476
          %v489 = vadd.f32 %v451, %v476
          %v490 = vadd.f32 %v452, %v476
          %v491 = vadd.f32 %v453, %v476
          %v492 = vadd.f32 %v454, %v476
          %v493 = vadd.f32 %v455, %v476
          %v494 = vadd.f32 %v456, %v476
          %v495 = vadd.f32 %v457, %v476
          %v496 = vadd.f32 %v458, %v476
          %v497 = vadd.f32 %v459, %v476
          %v498 = vadd.f32 %v460, %v476
          %v499 = vadd.f32 %v461, %v476
          %v500 = vadd.f32 %v462, %v476
          %v501 = vadd.f32 %v463, %v476
          %v502 = vadd.f32 %v464, %v476
          %v503 = vadd.f32 %v465, %v476
          %v504 = vadd.f32 %v466, %v476
          %v505 = vadd.f32 %v467, %v476
          %v506 = vadd.f32 %v468, %v476
          %v507 = vadd.f32 %v469, %v476
          %v508 = vadd.f32 %v470, %v476
          %v509 = vadd.f32 %v471, %v476
          %v510 = vpack.c.bf16 %v479, %v478
          %v511 = vpack.c.bf16 %v481, %v480
          %v512 = vpack.c.bf16 %v483, %v482
          %v513 = vpack.c.bf16 %v485, %v484
          %v514 = vpack.c.bf16 %v487, %v486
          %v515 = vpack.c.bf16 %v489, %v488
          %v516 = vpack.c.bf16 %v491, %v490
          %v517 = vpack.c.bf16 %v493, %v492
          %v518 = vpack.c.bf16 %v495, %v494
          %v519 = vpack.c.bf16 %v497, %v496
          %v520 = vpack.c.bf16 %v499, %v498
          %v521 = vpack.c.bf16 %v501, %v500
          %v522 = vpack.c.bf16 %v503, %v502
          %v523 = vpack.c.bf16 %v505, %v504
          %v524 = vpack.c.bf16 %v507, %v506
          %v525 = vpack.c.bf16 %v509, %v508
          %526 = vst [vmem:[#allocation2] sm:$0xff] %v510
          %527 = vst [vmem:[#allocation2 + $0x8] sm:$0xff] %v511
          %528 = vst [vmem:[#allocation2 + $0x10] sm:$0xff] %v512
          %529 = vst [vmem:[#allocation2 + $0x18] sm:$0xff] %v513
          %530 = vst [vmem:[#allocation2 + $0x20] sm:$0xff] %v514
          %531 = vst [vmem:[#allocation2 + $0x28] sm:$0xff] %v515
          %532 = vst [vmem:[#allocation2 + $0x30] sm:$0xff] %v516
          %533 = vst [vmem:[#allocation2 + $0x38] sm:$0xff] %v517
          %534 = vst [vmem:[#allocation2 + $0x40] sm:$0xff] %v518
          %535 = vst [vmem:[#allocation2 + $0x48] sm:$0xff] %v519
          %536 = vst [vmem:[#allocation2 + $0x50] sm:$0xff] %v520
          %537 = vst [vmem:[#allocation2 + $0x58] sm:$0xff] %v521
          %538 = vst [vmem:[#allocation2 + $0x60] sm:$0xff] %v522
          %539 = vst [vmem:[#allocation2 + $0x68] sm:$0xff] %v523
          %540 = vst [vmem:[#allocation2 + $0x70] sm:$0xff] %v524
          %541 = vst [vmem:[#allocation2 + $0x78] sm:$0xff] %v525
          %vm542 = vcmask 7168
          %543 = vst.msk [vmem:[#allocation3] sm:$0xff] %vm542, -inf
          %544 = vst.msk [vmem:[#allocation3 + $0x8] sm:$0xff] %vm542, -inf
          %545 = vst.msk [vmem:[#allocation3 + $0x10] sm:$0xff] %vm542, -inf
          %546 = vst.msk [vmem:[#allocation3 + $0x18] sm:$0xff] %vm542, -inf
          %547 = vst.msk [vmem:[#allocation3 + $0x20] sm:$0xff] %vm542, -inf
          %548 = vst.msk [vmem:[#allocation3 + $0x28] sm:$0xff] %vm542, -inf
          %549 = vst.msk [vmem:[#allocation3 + $0x30] sm:$0xff] %vm542, -inf
          %550 = vst.msk [vmem:[#allocation3 + $0x38] sm:$0xff] %vm542, -inf
          %551 = vst.msk [vmem:[#allocation3 + $0x40] sm:$0xff] %vm542, -inf
          %552 = vst.msk [vmem:[#allocation3 + $0x48] sm:$0xff] %vm542, -inf
          %553 = vst.msk [vmem:[#allocation3 + $0x50] sm:$0xff] %vm542, -inf
          %554 = vst.msk [vmem:[#allocation3 + $0x58] sm:$0xff] %vm542, -inf
          %555 = vst.msk [vmem:[#allocation3 + $0x60] sm:$0xff] %vm542, -inf
          %556 = vst.msk [vmem:[#allocation3 + $0x68] sm:$0xff] %vm542, -inf
          %557 = vst.msk [vmem:[#allocation3 + $0x70] sm:$0xff] %vm542, -inf
          %558 = vst.msk [vmem:[#allocation3 + $0x78] sm:$0xff] %vm542, -inf
          %559 = vst.msk [vmem:[#allocation3 + $0x80] sm:$0xff] %vm542, -inf
          %560 = vst.msk [vmem:[#allocation3 + $0x88] sm:$0xff] %vm542, -inf
          %561 = vst.msk [vmem:[#allocation3 + $0x90] sm:$0xff] %vm542, -inf
          %562 = vst.msk [vmem:[#allocation3 + $0x98] sm:$0xff] %vm542, -inf
          %563 = vst.msk [vmem:[#allocation3 + $0xa0] sm:$0xff] %vm542, -inf
          %564 = vst.msk [vmem:[#allocation3 + $0xa8] sm:$0xff] %vm542, -inf
          %565 = vst.msk [vmem:[#allocation3 + $0xb0] sm:$0xff] %vm542, -inf
          %566 = vst.msk [vmem:[#allocation3 + $0xb8] sm:$0xff] %vm542, -inf
          %567 = vst.msk [vmem:[#allocation3 + $0xc0] sm:$0xff] %vm542, -inf
          %568 = vst.msk [vmem:[#allocation3 + $0xc8] sm:$0xff] %vm542, -inf
          %569 = vst.msk [vmem:[#allocation3 + $0xd0] sm:$0xff] %vm542, -inf
          %570 = vst.msk [vmem:[#allocation3 + $0xd8] sm:$0xff] %vm542, -inf
          %571 = vst.msk [vmem:[#allocation3 + $0xe0] sm:$0xff] %vm542, -inf
          %572 = vst.msk [vmem:[#allocation3 + $0xe8] sm:$0xff] %vm542, -inf
          %573 = vst.msk [vmem:[#allocation3 + $0xf0] sm:$0xff] %vm542, -inf
          %574 = vst.msk [vmem:[#allocation3 + $0xf8] sm:$0xff] %vm542, -inf
          %575 = vst.msk [vmem:[#allocation4] sm:$0xff] %vm542, 0.0
          %576 = vst.msk [vmem:[#allocation4 + $0x8] sm:$0xff] %vm542, 0.0
          %577 = vst.msk [vmem:[#allocation4 + $0x10] sm:$0xff] %vm542, 0.0
          %578 = vst.msk [vmem:[#allocation4 + $0x18] sm:$0xff] %vm542, 0.0
          %579 = vst.msk [vmem:[#allocation4 + $0x20] sm:$0xff] %vm542, 0.0
          %580 = vst.msk [vmem:[#allocation4 + $0x28] sm:$0xff] %vm542, 0.0
          %581 = vst.msk [vmem:[#allocation4 + $0x30] sm:$0xff] %vm542, 0.0
          %582 = vst.msk [vmem:[#allocation4 + $0x38] sm:$0xff] %vm542, 0.0
          %583 = vst.msk [vmem:[#allocation4 + $0x40] sm:$0xff] %vm542, 0.0
          %584 = vst.msk [vmem:[#allocation4 + $0x48] sm:$0xff] %vm542, 0.0
          %585 = vst.msk [vmem:[#allocation4 + $0x50] sm:$0xff] %vm542, 0.0
          %586 = vst.msk [vmem:[#allocation4 + $0x58] sm:$0xff] %vm542, 0.0
          %587 = vst.msk [vmem:[#allocation4 + $0x60] sm:$0xff] %vm542, 0.0
          %588 = vst.msk [vmem:[#allocation4 + $0x68] sm:$0xff] %vm542, 0.0
          %589 = vst.msk [vmem:[#allocation4 + $0x70] sm:$0xff] %vm542, 0.0
          %590 = vst.msk [vmem:[#allocation4 + $0x78] sm:$0xff] %vm542, 0.0
          %591 = vst.msk [vmem:[#allocation4 + $0x80] sm:$0xff] %vm542, 0.0
          %592 = vst.msk [vmem:[#allocation4 + $0x88] sm:$0xff] %vm542, 0.0
          %593 = vst.msk [vmem:[#allocation4 + $0x90] sm:$0xff] %vm542, 0.0
          %594 = vst.msk [vmem:[#allocation4 + $0x98] sm:$0xff] %vm542, 0.0
          %595 = vst.msk [vmem:[#allocation4 + $0xa0] sm:$0xff] %vm542, 0.0
          %596 = vst.msk [vmem:[#allocation4 + $0xa8] sm:$0xff] %vm542, 0.0
          %597 = vst.msk [vmem:[#allocation4 + $0xb0] sm:$0xff] %vm542, 0.0
          %598 = vst.msk [vmem:[#allocation4 + $0xb8] sm:$0xff] %vm542, 0.0
          %599 = vst.msk [vmem:[#allocation4 + $0xc0] sm:$0xff] %vm542, 0.0
          %600 = vst.msk [vmem:[#allocation4 + $0xc8] sm:$0xff] %vm542, 0.0
          %601 = vst.msk [vmem:[#allocation4 + $0xd0] sm:$0xff] %vm542, 0.0
          %602 = vst.msk [vmem:[#allocation4 + $0xd8] sm:$0xff] %vm542, 0.0
          %603 = vst.msk [vmem:[#allocation4 + $0xe0] sm:$0xff] %vm542, 0.0
          %604 = vst.msk [vmem:[#allocation4 + $0xe8] sm:$0xff] %vm542, 0.0
          %605 = vst.msk [vmem:[#allocation4 + $0xf0] sm:$0xff] %vm542, 0.0
          %606 = vst.msk [vmem:[#allocation4 + $0xf8] sm:$0xff] %vm542, 0.0
          %607 = vst [vmem:[#allocation5] sm:$0xff] 0.0
          %608 = vst [vmem:[#allocation5 + $0x8] sm:$0xff] 0.0
          %609 = vst [vmem:[#allocation5 + $0x10] sm:$0xff] 0.0
          %610 = vst [vmem:[#allocation5 + $0x18] sm:$0xff] 0.0
          %611 = vst [vmem:[#allocation5 + $0x20] sm:$0xff] 0.0
          %612 = vst [vmem:[#allocation5 + $0x28] sm:$0xff] 0.0
          %613 = vst [vmem:[#allocation5 + $0x30] sm:$0xff] 0.0
          %614 = vst [vmem:[#allocation5 + $0x38] sm:$0xff] 0.0
          %615 = vst [vmem:[#allocation5 + $0x40] sm:$0xff] 0.0
          %616 = vst [vmem:[#allocation5 + $0x48] sm:$0xff] 0.0
          %617 = vst [vmem:[#allocation5 + $0x50] sm:$0xff] 0.0
          %618 = vst [vmem:[#allocation5 + $0x58] sm:$0xff] 0.0
          %619 = vst [vmem:[#allocation5 + $0x60] sm:$0xff] 0.0
          %620 = vst [vmem:[#allocation5 + $0x68] sm:$0xff] 0.0
          %621 = vst [vmem:[#allocation5 + $0x70] sm:$0xff] 0.0
          %622 = vst [vmem:[#allocation5 + $0x78] sm:$0xff] 0.0
          %623 = vst [vmem:[#allocation5 + $0x80] sm:$0xff] 0.0
          %624 = vst [vmem:[#allocation5 + $0x88] sm:$0xff] 0.0
          %625 = vst [vmem:[#allocation5 + $0x90] sm:$0xff] 0.0
          %626 = vst [vmem:[#allocation5 + $0x98] sm:$0xff] 0.0
          %627 = vst [vmem:[#allocation5 + $0xa0] sm:$0xff] 0.0
          %628 = vst [vmem:[#allocation5 + $0xa8] sm:$0xff] 0.0
          %629 = vst [vmem:[#allocation5 + $0xb0] sm:$0xff] 0.0
          %630 = vst [vmem:[#allocation5 + $0xb8] sm:$0xff] 0.0
          %631 = vst [vmem:[#allocation5 + $0xc0] sm:$0xff] 0.0
          %632 = vst [vmem:[#allocation5 + $0xc8] sm:$0xff] 0.0
          %633 = vst [vmem:[#allocation5 + $0xd0] sm:$0xff] 0.0
          %634 = vst [vmem:[#allocation5 + $0xd8] sm:$0xff] 0.0
          %635 = vst [vmem:[#allocation5 + $0xe0] sm:$0xff] 0.0
          %636 = vst [vmem:[#allocation5 + $0xe8] sm:$0xff] 0.0
          %637 = vst [vmem:[#allocation5 + $0xf0] sm:$0xff] 0.0
          %638 = vst [vmem:[#allocation5 + $0xf8] sm:$0xff] 0.0
        $region90: #{tpu_custom_call.1} parent=73 // pred_fallthru
          _
        %v639 = vld [vmem:[%s355] sm:$0xff]
        %v640 = vld [vmem:[%s355 + $0x8] sm:$0xff]
        %v641 = vld [vmem:[%s355 + $0x10] sm:$0xff]
        %v642 = vld [vmem:[%s355 + $0x18] sm:$0xff]
        %v643 = vld [vmem:[%s355 + $0x20] sm:$0xff]
        %v644 = vld [vmem:[%s355 + $0x28] sm:$0xff]
        %v645 = vld [vmem:[%s355 + $0x30] sm:$0xff]
        %v646 = vld [vmem:[%s355 + $0x38] sm:$0xff]
        %v647 = vld [vmem:[%s355 + $0x40] sm:$0xff]
        %v648 = vld [vmem:[%s355 + $0x48] sm:$0xff]
        %v649 = vld [vmem:[%s355 + $0x50] sm:$0xff]
        %v650 = vld [vmem:[%s355 + $0x58] sm:$0xff]
        %v651 = vld [vmem:[%s355 + $0x60] sm:$0xff]
        %v652 = vld [vmem:[%s355 + $0x68] sm:$0xff]
        %v653 = vld [vmem:[%s355 + $0x70] sm:$0xff]
        %v654 = vld [vmem:[%s355 + $0x78] sm:$0xff]
        %v655 = vld [vmem:[%s355 + $0x80] sm:$0xff]
        %v656 = vld [vmem:[%s355 + $0x88] sm:$0xff]
        %v657 = vld [vmem:[%s355 + $0x90] sm:$0xff]
        %v658 = vld [vmem:[%s355 + $0x98] sm:$0xff]
        %v659 = vld [vmem:[%s355 + $0xa0] sm:$0xff]
        %v660 = vld [vmem:[%s355 + $0xa8] sm:$0xff]
        %v661 = vld [vmem:[%s355 + $0xb0] sm:$0xff]
        %v662 = vld [vmem:[%s355 + $0xb8] sm:$0xff]
        %v663 = vld [vmem:[%s355 + $0xc0] sm:$0xff]
        %v664 = vld [vmem:[%s355 + $0xc8] sm:$0xff]
        %v665 = vld [vmem:[%s355 + $0xd0] sm:$0xff]
        %v666 = vld [vmem:[%s355 + $0xd8] sm:$0xff]
        %v667 = vld [vmem:[%s355 + $0xe0] sm:$0xff]
        %v668 = vld [vmem:[%s355 + $0xe8] sm:$0xff]
        %v669 = vld [vmem:[%s355 + $0xf0] sm:$0xff]
        %v670 = vld [vmem:[%s355 + $0xf8] sm:$0xff]
        %v671 = vpack.c.bf16 %v640, %v639
        %v672 = vpack.c.bf16 %v642, %v641
        %v673 = vpack.c.bf16 %v644, %v643
        %v674 = vpack.c.bf16 %v646, %v645
        %v675 = vpack.c.bf16 %v648, %v647
        %v676 = vpack.c.bf16 %v650, %v649
        %v677 = vpack.c.bf16 %v652, %v651
        %v678 = vpack.c.bf16 %v654, %v653
        %v679 = vpack.c.bf16 %v656, %v655
        %v680 = vpack.c.bf16 %v658, %v657
        %v681 = vpack.c.bf16 %v660, %v659
        %v682 = vpack.c.bf16 %v662, %v661
        %v683 = vpack.c.bf16 %v664, %v663
        %v684 = vpack.c.bf16 %v666, %v665
        %v685 = vpack.c.bf16 %v668, %v667
        %v686 = vpack.c.bf16 %v670, %v669
        %v687 = vld [vmem:[%s363] sm:$0x1]
        %v688 = vld [vmem:[%s363 + $0x1] sm:$0x1]
        %v689 = vld [vmem:[#allocation2] sm:$0xff]
        %v690 = vld [vmem:[#allocation2 + $0x8] sm:$0xff]
        %v691 = vld [vmem:[#allocation2 + $0x10] sm:$0xff]
        %v692 = vld [vmem:[#allocation2 + $0x18] sm:$0xff]
        %v693 = vld [vmem:[#allocation2 + $0x20] sm:$0xff]
        %v694 = vld [vmem:[#allocation2 + $0x28] sm:$0xff]
        %v695 = vld [vmem:[#allocation2 + $0x30] sm:$0xff]
        %v696 = vld [vmem:[#allocation2 + $0x38] sm:$0xff]
        %v697 = vld [vmem:[#allocation2 + $0x40] sm:$0xff]
        %v698 = vld [vmem:[#allocation2 + $0x48] sm:$0xff]
        %v699 = vld [vmem:[#allocation2 + $0x50] sm:$0xff]
        %v700 = vld [vmem:[#allocation2 + $0x58] sm:$0xff]
        %v701 = vld [vmem:[#allocation2 + $0x60] sm:$0xff]
        %v702 = vld [vmem:[#allocation2 + $0x68] sm:$0xff]
        %v703 = vld [vmem:[#allocation2 + $0x70] sm:$0xff]
        %v704 = vld [vmem:[#allocation2 + $0x78] sm:$0xff]
        %705 = vmatprep.subr.bf16.mxu0 0
        %706 = vmatpush1.bf16.xpose.msra.mxu0 %v671
        %707 = vmatprep.subr.bf16.mxu0 0
        %708 = vmatpush1.bf16.xpose.msra.mxu0 %v672
        %709 = vmatprep.subr.bf16.mxu0 0
        %710 = vmatpush1.bf16.xpose.msra.mxu0 %v673
        %711 = vmatprep.subr.bf16.mxu0 0
        %712 = vmatpush1.bf16.xpose.msra.mxu0 %v674
        %713 = vmatprep.subr.bf16.mxu0 0
        %714 = vmatpush1.bf16.xpose.msra.mxu0 %v675
        %715 = vmatprep.subr.bf16.mxu0 0
        %716 = vmatpush1.bf16.xpose.msra.mxu0 %v676
        %717 = vmatprep.subr.bf16.mxu0 0
        %718 = vmatpush1.bf16.xpose.msra.mxu0 %v677
        %719 = vmatprep.subr.bf16.mxu0 0
        %720 = vmatpush1.bf16.xpose.msra.mxu0 %v678
        %721 = vmatprep.subr.bf16.mxu0 0
        %722 = vmatpush1.bf16.xpose.msra.mxu0 0
        %723 = vmatprep.subr.bf16.mxu0 0
        %724 = vmatpush1.bf16.xpose.msra.mxu0 0
        %725 = vmatprep.subr.bf16.mxu0 0
        %726 = vmatpush1.bf16.xpose.msra.mxu0 0
        %727 = vmatprep.subr.bf16.mxu0 0
        %728 = vmatpush1.bf16.xpose.msra.mxu0 0
        %729 = vmatprep.subr.bf16.mxu0 0
        %730 = vmatpush1.bf16.xpose.msra.mxu0 0
        %731 = vmatprep.subr.bf16.mxu0 0
        %732 = vmatpush1.bf16.xpose.msra.mxu0 0
        %733 = vmatprep.subr.bf16.mxu0 0
        %734 = vmatpush1.bf16.xpose.msra.mxu0 0
        %735 = vmatprep.subr.bf16.mxu0 0
        %736 = vmatpush1.bf16.xpose.msra.mxu0 0
        %737 = vmatprep.mubr.bf16.mxu0 0
        %738 = vmatmul.mubr.bf16.gmra.mrb[0].mxu0 %v689
        %v739 = vpop.f32.mrb[0].mxu0
        %v740 = vadd.f32 0.0, %v739
        %v741 = vpop.f32.mrb[0].mxu0
        %v742 = vpop.f32.mrb[0].mxu0
        %v743 = vadd.f32 0.0, %v742
        %v744 = vpop.f32.mrb[0].mxu0
        %745 = vmatprep.mubr.bf16.mxu0 0
        %746 = vmatmul.mubr.bf16.gmra.mrb[0].mxu0 %v690
        %v747 = vpop.f32.mrb[0].mxu0
        %v748 = vadd.f32 0.0, %v747
        %v749 = vpop.f32.mrb[0].mxu0
        %v750 = vpop.f32.mrb[0].mxu0
        %v751 = vadd.f32 0.0, %v750
        %v752 = vpop.f32.mrb[0].mxu0
        %753 = vmatprep.mubr.bf16.mxu0 0
        %754 = vmatmul.mubr.bf16.gmra.mrb[0].mxu0 %v691
        %v755 = vpop.f32.mrb[0].mxu0
        %v756 = vadd.f32 0.0, %v755
        %v757 = vpop.f32.mrb[0].mxu0
        %v758 = vpop.f32.mrb[0].mxu0
        %v759 = vadd.f32 0.0, %v758
        %v760 = vpop.f32.mrb[0].mxu0
        %761 = vmatprep.mubr.bf16.mxu0 0
        %762 = vmatmul.mubr.bf16.gmra.mrb[0].mxu0 %v692
        %v763 = vpop.f32.mrb[0].mxu0
        %v764 = vadd.f32 0.0, %v763
        %v765 = vpop.f32.mrb[0].mxu0
        %v766 = vpop.f32.mrb[0].mxu0
        %v767 = vadd.f32 0.0, %v766
        %v768 = vpop.f32.mrb[0].mxu0
        %769 = vmatprep.mubr.bf16.mxu0 0
        %770 = vmatmul.mubr.bf16.gmra.mrb[0].mxu0 %v693
        %v771 = vpop.f32.mrb[0].mxu0
        %v772 = vadd.f32 0.0, %v771
        %v773 = vpop.f32.mrb[0].mxu0
        %v774 = vpop.f32.mrb[0].mxu0
        %v775 = vadd.f32 0.0, %v774
        %v776 = vpop.f32.mrb[0].mxu0
        %777 = vmatprep.mubr.bf16.mxu0 0
        %778 = vmatmul.mubr.bf16.gmra.mrb[0].mxu0 %v694
        %v779 = vpop.f32.mrb[0].mxu0
        %v780 = vadd.f32 0.0, %v779
        %v781 = vpop.f32.mrb[0].mxu0
        %v782 = vpop.f32.mrb[0].mxu0
        %v783 = vadd.f32 0.0, %v782
        %v784 = vpop.f32.mrb[0].mxu0
        %785 = vmatprep.mubr.bf16.mxu0 0
        %786 = vmatmul.mubr.bf16.gmra.mrb[0].mxu0 %v695
        %v787 = vpop.f32.mrb[0].mxu0
        %v788 = vadd.f32 0.0, %v787
        %v789 = vpop.f32.mrb[0].mxu0
        %v790 = vpop.f32.mrb[0].mxu0
        %v791 = vadd.f32 0.0, %v790
        %v792 = vpop.f32.mrb[0].mxu0
        %793 = vmatprep.mubr.bf16.mxu0 0
        %794 = vmatmul.mubr.bf16.gmra.mrb[0].mxu0 %v696
        %v795 = vpop.f32.mrb[0].mxu0
        %v796 = vadd.f32 0.0, %v795
        %v797 = vpop.f32.mrb[0].mxu0
        %v798 = vpop.f32.mrb[0].mxu0
        %v799 = vadd.f32 0.0, %v798
        %v800 = vpop.f32.mrb[0].mxu0
        %801 = vdwg.mxu0
        %802 = vmatprep.subr.bf16.mxu0 0
        %803 = vmatpush1.bf16.xpose.msra.mxu0 %v679
        %804 = vmatprep.subr.bf16.mxu0 0
        %805 = vmatpush1.bf16.xpose.msra.mxu0 %v680
        %806 = vmatprep.subr.bf16.mxu0 0
        %807 = vmatpush1.bf16.xpose.msra.mxu0 %v681
        %808 = vmatprep.subr.bf16.mxu0 0
        %809 = vmatpush1.bf16.xpose.msra.mxu0 %v682
        %810 = vmatprep.subr.bf16.mxu0 0
        %811 = vmatpush1.bf16.xpose.msra.mxu0 %v683
        %812 = vmatprep.subr.bf16.mxu0 0
        %813 = vmatpush1.bf16.xpose.msra.mxu0 %v684
        %814 = vmatprep.subr.bf16.mxu0 0
        %815 = vmatpush1.bf16.xpose.msra.mxu0 %v685
        %816 = vmatprep.subr.bf16.mxu0 0
        %817 = vmatpush1.bf16.xpose.msra.mxu0 %v686
        %818 = vmatprep.subr.bf16.mxu0 0
        %819 = vmatpush1.bf16.xpose.msra.mxu0 0
        %820 = vmatprep.subr.bf16.mxu0 0
        %821 = vmatpush1.bf16.xpose.msra.mxu0 0
        %822 = vmatprep.subr.bf16.mxu0 0
        %823 = vmatpush1.bf16.xpose.msra.mxu0 0
        %824 = vmatprep.subr.bf16.mxu0 0
        %825 = vmatpush1.bf16.xpose.msra.mxu0 0
        %826 = vmatprep.subr.bf16.mxu0 0
        %827 = vmatpush1.bf16.xpose.msra.mxu0 0
        %828 = vmatprep.subr.bf16.mxu0 0
        %829 = vmatpush1.bf16.xpose.msra.mxu0 0
        %830 = vmatprep.subr.bf16.mxu0 0
        %831 = vmatpush1.bf16.xpose.msra.mxu0 0
        %832 = vmatprep.subr.bf16.mxu0 0
        %833 = vmatpush1.bf16.xpose.msra.mxu0 0
        %834 = vmatprep.mubr.bf16.mxu0 0
        %835 = vmatmul.mubr.bf16.gmra.mrb[0].mxu0 %v697
        %v836 = vpop.f32.mrb[0].mxu0
        %v837 = vadd.f32 0.0, %v836
        %v838 = vpop.f32.mrb[0].mxu0
        %v839 = vpop.f32.mrb[0].mxu0
        %v840 = vadd.f32 0.0, %v839
        %v841 = vpop.f32.mrb[0].mxu0
        %842 = vmatprep.mubr.bf16.mxu0 0
        %843 = vmatmul.mubr.bf16.gmra.mrb[0].mxu0 %v698
        %v844 = vpop.f32.mrb[0].mxu0
        %v845 = vadd.f32 0.0, %v844
        %v846 = vpop.f32.mrb[0].mxu0
        %v847 = vpop.f32.mrb[0].mxu0
        %v848 = vadd.f32 0.0, %v847
        %v849 = vpop.f32.mrb[0].mxu0
        %850 = vmatprep.mubr.bf16.mxu0 0
        %851 = vmatmul.mubr.bf16.gmra.mrb[0].mxu0 %v699
        %v852 = vpop.f32.mrb[0].mxu0
        %v853 = vadd.f32 0.0, %v852
        %v854 = vpop.f32.mrb[0].mxu0
        %v855 = vpop.f32.mrb[0].mxu0
        %v856 = vadd.f32 0.0, %v855
        %v857 = vpop.f32.mrb[0].mxu0
        %858 = vmatprep.mubr.bf16.mxu0 0
        %859 = vmatmul.mubr.bf16.gmra.mrb[0].mxu0 %v700
        %v860 = vpop.f32.mrb[0].mxu0
        %v861 = vadd.f32 0.0, %v860
        %v862 = vpop.f32.mrb[0].mxu0
        %v863 = vpop.f32.mrb[0].mxu0
        %v864 = vadd.f32 0.0, %v863
        %v865 = vpop.f32.mrb[0].mxu0
        %866 = vmatprep.mubr.bf16.mxu0 0
        %867 = vmatmul.mubr.bf16.gmra.mrb[0].mxu0 %v701
        %v868 = vpop.f32.mrb[0].mxu0
        %v869 = vadd.f32 0.0, %v868
        %v870 = vpop.f32.mrb[0].mxu0
        %v871 = vpop.f32.mrb[0].mxu0
        %v872 = vadd.f32 0.0, %v871
        %v873 = vpop.f32.mrb[0].mxu0
        %874 = vmatprep.mubr.bf16.mxu0 0
        %875 = vmatmul.mubr.bf16.gmra.mrb[0].mxu0 %v702
        %v876 = vpop.f32.mrb[0].mxu0
        %v877 = vadd.f32 0.0, %v876
        %v878 = vpop.f32.mrb[0].mxu0
        %v879 = vpop.f32.mrb[0].mxu0
        %v880 = vadd.f32 0.0, %v879
        %v881 = vpop.f32.mrb[0].mxu0
        %882 = vmatprep.mubr.bf16.mxu0 0
        %883 = vmatmul.mubr.bf16.gmra.mrb[0].mxu0 %v703
        %v884 = vpop.f32.mrb[0].mxu0
        %v885 = vadd.f32 0.0, %v884
        %v886 = vpop.f32.mrb[0].mxu0
        %v887 = vpop.f32.mrb[0].mxu0
        %v888 = vadd.f32 0.0, %v887
        %v889 = vpop.f32.mrb[0].mxu0
        %890 = vmatprep.mubr.bf16.mxu0 0
        %891 = vmatmul.mubr.bf16.gmra.mrb[0].mxu0 %v704
        %v892 = vpop.f32.mrb[0].mxu0
        %v893 = vadd.f32 0.0, %v892
        %v894 = vpop.f32.mrb[0].mxu0
        %v895 = vpop.f32.mrb[0].mxu0
        %v896 = vadd.f32 0.0, %v895
        %v897 = vpop.f32.mrb[0].mxu0
        %898 = vdwg.mxu0
        %v899 = vsub.f32 1.0, %v687
        %v900 = vsub.f32 1.0, %v688
        %v901 = vmul.f32 %v899, 1e+30
        %v902 = vmul.f32 %v900, 1e+30
        %v905 = vlaneseq
        %v906 = vshrl.u32 %v905, 7
        %v907 = vsub.s32 0, %v906
        %v908 = vrot.slane %v901, %v907
        %v909 = vlaneseq
        %v910 = vshrl.u32 %v909, 7
        %v911 = vsub.s32 0, %v910
        %v912 = vrot.slane %v902, %v911
        %v915 = vsub.f32 %v740, %v908
        %v916 = vsub.f32 %v743, %v908
        %v917 = vsub.f32 %v748, %v908
        %v918 = vsub.f32 %v751, %v908
        %v919 = vsub.f32 %v756, %v908
        %v920 = vsub.f32 %v759, %v908
        %v921 = vsub.f32 %v764, %v908
        %v922 = vsub.f32 %v767, %v908
        %v923 = vsub.f32 %v772, %v908
        %v924 = vsub.f32 %v775, %v908
        %v925 = vsub.f32 %v780, %v908
        %v926 = vsub.f32 %v783, %v908
        %v927 = vsub.f32 %v788, %v908
        %v928 = vsub.f32 %v791, %v908
        %v929 = vsub.f32 %v796, %v908
        %v930 = vsub.f32 %v799, %v908
        %v931 = vsub.f32 %v837, %v912
        %v932 = vsub.f32 %v840, %v912
        %v933 = vsub.f32 %v845, %v912
        %v934 = vsub.f32 %v848, %v912
        %v935 = vsub.f32 %v853, %v912
        %v936 = vsub.f32 %v856, %v912
        %v937 = vsub.f32 %v861, %v912
        %v938 = vsub.f32 %v864, %v912
        %v939 = vsub.f32 %v869, %v912
        %v940 = vsub.f32 %v872, %v912
        %v941 = vsub.f32 %v877, %v912
        %v942 = vsub.f32 %v880, %v912
        %v943 = vsub.f32 %v885, %v912
        %v944 = vsub.f32 %v888, %v912
        %v945 = vsub.f32 %v893, %v912
        %v946 = vsub.f32 %v896, %v912
        %v947 = vld [vmem:[#allocation3] sm:$0xff]
        %v948 = vld [vmem:[#allocation3 + $0x8] sm:$0xff]
        %v949 = vld [vmem:[#allocation3 + $0x10] sm:$0xff]
        %v950 = vld [vmem:[#allocation3 + $0x18] sm:$0xff]
        %v951 = vld [vmem:[#allocation3 + $0x20] sm:$0xff]
        %v952 = vld [vmem:[#allocation3 + $0x28] sm:$0xff]
        %v953 = vld [vmem:[#allocation3 + $0x30] sm:$0xff]
        %v954 = vld [vmem:[#allocation3 + $0x38] sm:$0xff]
        %v955 = vld [vmem:[#allocation3 + $0x40] sm:$0xff]
        %v956 = vld [vmem:[#allocation3 + $0x48] sm:$0xff]
        %v957 = vld [vmem:[#allocation3 + $0x50] sm:$0xff]
        %v958 = vld [vmem:[#allocation3 + $0x58] sm:$0xff]
        %v959 = vld [vmem:[#allocation3 + $0x60] sm:$0xff]
        %v960 = vld [vmem:[#allocation3 + $0x68] sm:$0xff]
        %v961 = vld [vmem:[#allocation3 + $0x70] sm:$0xff]
        %v962 = vld [vmem:[#allocation3 + $0x78] sm:$0xff]
        %v963 = vld [vmem:[#allocation3 + $0x80] sm:$0xff]
        %v964 = vld [vmem:[#allocation3 + $0x88] sm:$0xff]
        %v965 = vld [vmem:[#allocation3 + $0x90] sm:$0xff]
        %v966 = vld [vmem:[#allocation3 + $0x98] sm:$0xff]
        %v967 = vld [vmem:[#allocation3 + $0xa0] sm:$0xff]
        %v968 = vld [vmem:[#allocation3 + $0xa8] sm:$0xff]
        %v969 = vld [vmem:[#allocation3 + $0xb0] sm:$0xff]
        %v970 = vld [vmem:[#allocation3 + $0xb8] sm:$0xff]
        %v971 = vld [vmem:[#allocation3 + $0xc0] sm:$0xff]
        %v972 = vld [vmem:[#allocation3 + $0xc8] sm:$0xff]
        %v973 = vld [vmem:[#allocation3 + $0xd0] sm:$0xff]
        %v974 = vld [vmem:[#allocation3 + $0xd8] sm:$0xff]
        %v975 = vld [vmem:[#allocation3 + $0xe0] sm:$0xff]
        %v976 = vld [vmem:[#allocation3 + $0xe8] sm:$0xff]
        %v977 = vld [vmem:[#allocation3 + $0xf0] sm:$0xff]
        %v978 = vld [vmem:[#allocation3 + $0xf8] sm:$0xff]
        %979 = vmax.xlane.f32.xlu0 %v915
        %v980 = vpop.xlane.xlu0 %979
        %981 = vmax.xlane.f32.xlu0 %v916
        %v982 = vpop.xlane.xlu0 %981
        %983 = vmax.xlane.f32.xlu0 %v917
        %v984 = vpop.xlane.xlu0 %983
        %985 = vmax.xlane.f32.xlu0 %v918
        %v986 = vpop.xlane.xlu0 %985
        %987 = vmax.xlane.f32.xlu0 %v919
        %v988 = vpop.xlane.xlu0 %987
        %989 = vmax.xlane.f32.xlu0 %v920
        %v990 = vpop.xlane.xlu0 %989
        %991 = vmax.xlane.f32.xlu0 %v921
        %v992 = vpop.xlane.xlu0 %991
        %993 = vmax.xlane.f32.xlu0 %v922
        %v994 = vpop.xlane.xlu0 %993
        %995 = vmax.xlane.f32.xlu0 %v923
        %v996 = vpop.xlane.xlu0 %995
        %997 = vmax.xlane.f32.xlu0 %v924
        %v998 = vpop.xlane.xlu0 %997
        %999 = vmax.xlane.f32.xlu0 %v925
        %v1000 = vpop.xlane.xlu0 %999
        %1001 = vmax.xlane.f32.xlu0 %v926
        %v1002 = vpop.xlane.xlu0 %1001
        %1003 = vmax.xlane.f32.xlu0 %v927
        %v1004 = vpop.xlane.xlu0 %1003
        %1005 = vmax.xlane.f32.xlu0 %v928
        %v1006 = vpop.xlane.xlu0 %1005
        %1007 = vmax.xlane.f32.xlu0 %v929
        %v1008 = vpop.xlane.xlu0 %1007
        %1009 = vmax.xlane.f32.xlu0 %v930
        %v1010 = vpop.xlane.xlu0 %1009
        %1011 = vmax.xlane.f32.xlu0 %v931
        %v1012 = vpop.xlane.xlu0 %1011
        %1013 = vmax.xlane.f32.xlu0 %v932
        %v1014 = vpop.xlane.xlu0 %1013
        %1015 = vmax.xlane.f32.xlu0 %v933
        %v1016 = vpop.xlane.xlu0 %1015
        %1017 = vmax.xlane.f32.xlu0 %v934
        %v1018 = vpop.xlane.xlu0 %1017
        %1019 = vmax.xlane.f32.xlu0 %v935
        %v1020 = vpop.xlane.xlu0 %1019
        %1021 = vmax.xlane.f32.xlu0 %v936
        %v1022 = vpop.xlane.xlu0 %1021
        %1023 = vmax.xlane.f32.xlu0 %v937
        %v1024 = vpop.xlane.xlu0 %1023
        %1025 = vmax.xlane.f32.xlu0 %v938
        %v1026 = vpop.xlane.xlu0 %1025
        %1027 = vmax.xlane.f32.xlu0 %v939
        %v1028 = vpop.xlane.xlu0 %1027
        %1029 = vmax.xlane.f32.xlu0 %v940
        %v1030 = vpop.xlane.xlu0 %1029
        %1031 = vmax.xlane.f32.xlu0 %v941
        %v1032 = vpop.xlane.xlu0 %1031
        %1033 = vmax.xlane.f32.xlu0 %v942
        %v1034 = vpop.xlane.xlu0 %1033
        %1035 = vmax.xlane.f32.xlu0 %v943
        %v1036 = vpop.xlane.xlu0 %1035
        %1037 = vmax.xlane.f32.xlu0 %v944
        %v1038 = vpop.xlane.xlu0 %1037
        %1039 = vmax.xlane.f32.xlu0 %v945
        %v1040 = vpop.xlane.xlu0 %1039
        %1041 = vmax.xlane.f32.xlu0 %v946
        %v1042 = vpop.xlane.xlu0 %1041
        %v1043 = vmax.f32 %v947, %v980
        %v1044 = vmax.f32 %v948, %v982
        %v1045 = vmax.f32 %v949, %v984
        %v1046 = vmax.f32 %v950, %v986
        %v1047 = vmax.f32 %v951, %v988
        %v1048 = vmax.f32 %v952, %v990
        %v1049 = vmax.f32 %v953, %v992
        %v1050 = vmax.f32 %v954, %v994
        %v1051 = vmax.f32 %v955, %v996
        %v1052 = vmax.f32 %v956, %v998
        %v1053 = vmax.f32 %v957, %v1000
        %v1054 = vmax.f32 %v958, %v1002
        %v1055 = vmax.f32 %v959, %v1004
        %v1056 = vmax.f32 %v960, %v1006
        %v1057 = vmax.f32 %v961, %v1008
        %v1058 = vmax.f32 %v962, %v1010
        %v1059 = vmax.f32 %v963, %v1012
        %v1060 = vmax.f32 %v964, %v1014
        %v1061 = vmax.f32 %v965, %v1016
        %v1062 = vmax.f32 %v966, %v1018
        %v1063 = vmax.f32 %v967, %v1020
        %v1064 = vmax.f32 %v968, %v1022
        %v1065 = vmax.f32 %v969, %v1024
        %v1066 = vmax.f32 %v970, %v1026
        %v1067 = vmax.f32 %v971, %v1028
        %v1068 = vmax.f32 %v972, %v1030
        %v1069 = vmax.f32 %v973, %v1032
        %v1070 = vmax.f32 %v974, %v1034
        %v1071 = vmax.f32 %v975, %v1036
        %v1072 = vmax.f32 %v976, %v1038
        %v1073 = vmax.f32 %v977, %v1040
        %v1074 = vmax.f32 %v978, %v1042
        %v1075 = vsub.f32 %v947, %v1043
        %v1076 = vsub.f32 %v948, %v1044
        %v1077 = vsub.f32 %v949, %v1045
        %v1078 = vsub.f32 %v950, %v1046
        %v1079 = vsub.f32 %v951, %v1047
        %v1080 = vsub.f32 %v952, %v1048
        %v1081 = vsub.f32 %v953, %v1049
        %v1082 = vsub.f32 %v954, %v1050
        %v1083 = vsub.f32 %v955, %v1051
        %v1084 = vsub.f32 %v956, %v1052
        %v1085 = vsub.f32 %v957, %v1053
        %v1086 = vsub.f32 %v958, %v1054
        %v1087 = vsub.f32 %v959, %v1055
        %v1088 = vsub.f32 %v960, %v1056
        %v1089 = vsub.f32 %v961, %v1057
        %v1090 = vsub.f32 %v962, %v1058
        %v1091 = vsub.f32 %v963, %v1059
        %v1092 = vsub.f32 %v964, %v1060
        %v1093 = vsub.f32 %v965, %v1061
        %v1094 = vsub.f32 %v966, %v1062
        %v1095 = vsub.f32 %v967, %v1063
        %v1096 = vsub.f32 %v968, %v1064
        %v1097 = vsub.f32 %v969, %v1065
        %v1098 = vsub.f32 %v970, %v1066
        %v1099 = vsub.f32 %v971, %v1067
        %v1100 = vsub.f32 %v972, %v1068
        %v1101 = vsub.f32 %v973, %v1069
        %v1102 = vsub.f32 %v974, %v1070
        %v1103 = vsub.f32 %v975, %v1071
        %v1104 = vsub.f32 %v976, %v1072
        %v1105 = vsub.f32 %v977, %v1073
        %v1106 = vsub.f32 %v978, %v1074
        %v1107 = vmul.f32 %v1075, 1.442695
        %v1108 = vpow.pop %v1107
        %v1109 = vmul.f32 %v1076, 1.442695
        %v1110 = vpow.pop %v1109
        %v1111 = vmul.f32 %v1077, 1.442695
        %v1112 = vpow.pop %v1111
        %v1113 = vmul.f32 %v1078, 1.442695
        %v1114 = vpow.pop %v1113
        %v1115 = vmul.f32 %v1079, 1.442695
        %v1116 = vpow.pop %v1115
        %v1117 = vmul.f32 %v1080, 1.442695
        %v1118 = vpow.pop %v1117
        %v1119 = vmul.f32 %v1081, 1.442695
        %v1120 = vpow.pop %v1119
        %v1121 = vmul.f32 %v1082, 1.442695
        %v1122 = vpow.pop %v1121
        %v1123 = vmul.f32 %v1083, 1.442695
        %v1124 = vpow.pop %v1123
        %v1125 = vmul.f32 %v1084, 1.442695
        %v1126 = vpow.pop %v1125
        %v1127 = vmul.f32 %v1085, 1.442695
        %v1128 = vpow.pop %v1127
        %v1129 = vmul.f32 %v1086, 1.442695
        %v1130 = vpow.pop %v1129
        %v1131 = vmul.f32 %v1087, 1.442695
        %v1132 = vpow.pop %v1131
        %v1133 = vmul.f32 %v1088, 1.442695
        %v1134 = vpow.pop %v1133
        %v1135 = vmul.f32 %v1089, 1.442695
        %v1136 = vpow.pop %v1135
        %v1137 = vmul.f32 %v1090, 1.442695
        %v1138 = vpow.pop %v1137
        %v1139 = vmul.f32 %v1091, 1.442695
        %v1140 = vpow.pop %v1139
        %v1141 = vmul.f32 %v1092, 1.442695
        %v1142 = vpow.pop %v1141
        %v1143 = vmul.f32 %v1093, 1.442695
        %v1144 = vpow.pop %v1143
        %v1145 = vmul.f32 %v1094, 1.442695
        %v1146 = vpow.pop %v1145
        %v1147 = vmul.f32 %v1095, 1.442695
        %v1148 = vpow.pop %v1147
        %v1149 = vmul.f32 %v1096, 1.442695
        %v1150 = vpow.pop %v1149
        %v1151 = vmul.f32 %v1097, 1.442695
        %v1152 = vpow.pop %v1151
        %v1153 = vmul.f32 %v1098, 1.442695
        %v1154 = vpow.pop %v1153
        %v1155 = vmul.f32 %v1099, 1.442695
        %v1156 = vpow.pop %v1155
        %v1157 = vmul.f32 %v1100, 1.442695
        %v1158 = vpow.pop %v1157
        %v1159 = vmul.f32 %v1101, 1.442695
        %v1160 = vpow.pop %v1159
        %v1161 = vmul.f32 %v1102, 1.442695
        %v1162 = vpow.pop %v1161
        %v1163 = vmul.f32 %v1103, 1.442695
        %v1164 = vpow.pop %v1163
        %v1165 = vmul.f32 %v1104, 1.442695
        %v1166 = vpow.pop %v1165
        %v1167 = vmul.f32 %v1105, 1.442695
        %v1168 = vpow.pop %v1167
        %v1169 = vmul.f32 %v1106, 1.442695
        %v1170 = vpow.pop %v1169
        %1172 = vset.pattern.permute.xlu0 0
        %1173 = vperm.xlu0 %1172, %v1043
        %v1174 = vpop.permute.xlu0 %1173
        %1177 = vset.pattern.permute.xlu0 0
        %1178 = vperm.xlu0 %1177, %v1044
        %v1179 = vpop.permute.xlu0 %1178
        %1182 = vset.pattern.permute.xlu0 0
        %1183 = vperm.xlu0 %1182, %v1045
        %v1184 = vpop.permute.xlu0 %1183
        %1187 = vset.pattern.permute.xlu0 0
        %1188 = vperm.xlu0 %1187, %v1046
        %v1189 = vpop.permute.xlu0 %1188
        %1192 = vset.pattern.permute.xlu0 0
        %1193 = vperm.xlu0 %1192, %v1047
        %v1194 = vpop.permute.xlu0 %1193
        %1197 = vset.pattern.permute.xlu0 0
        %1198 = vperm.xlu0 %1197, %v1048
        %v1199 = vpop.permute.xlu0 %1198
        %1202 = vset.pattern.permute.xlu0 0
        %1203 = vperm.xlu0 %1202, %v1049
        %v1204 = vpop.permute.xlu0 %1203
        %1207 = vset.pattern.permute.xlu0 0
        %1208 = vperm.xlu0 %1207, %v1050
        %v1209 = vpop.permute.xlu0 %1208
        %1212 = vset.pattern.permute.xlu0 0
        %1213 = vperm.xlu0 %1212, %v1051
        %v1214 = vpop.permute.xlu0 %1213
        %1217 = vset.pattern.permute.xlu0 0
        %1218 = vperm.xlu0 %1217, %v1052
        %v1219 = vpop.permute.xlu0 %1218
        %1222 = vset.pattern.permute.xlu0 0
        %1223 = vperm.xlu0 %1222, %v1053
        %v1224 = vpop.permute.xlu0 %1223
        %1227 = vset.pattern.permute.xlu0 0
        %1228 = vperm.xlu0 %1227, %v1054
        %v1229 = vpop.permute.xlu0 %1228
        %1232 = vset.pattern.permute.xlu0 0
        %1233 = vperm.xlu0 %1232, %v1055
        %v1234 = vpop.permute.xlu0 %1233
        %1237 = vset.pattern.permute.xlu0 0
        %1238 = vperm.xlu0 %1237, %v1056
        %v1239 = vpop.permute.xlu0 %1238
        %1242 = vset.pattern.permute.xlu0 0
        %1243 = vperm.xlu0 %1242, %v1057
        %v1244 = vpop.permute.xlu0 %1243
        %1247 = vset.pattern.permute.xlu0 0
        %1248 = vperm.xlu0 %1247, %v1058
        %v1249 = vpop.permute.xlu0 %1248
        %1252 = vset.pattern.permute.xlu0 0
        %1253 = vperm.xlu0 %1252, %v1059
        %v1254 = vpop.permute.xlu0 %1253
        %1257 = vset.pattern.permute.xlu0 0
        %1258 = vperm.xlu0 %1257, %v1060
        %v1259 = vpop.permute.xlu0 %1258
        %1262 = vset.pattern.permute.xlu0 0
        %1263 = vperm.xlu0 %1262, %v1061
        %v1264 = vpop.permute.xlu0 %1263
        %1267 = vset.pattern.permute.xlu0 0
        %1268 = vperm.xlu0 %1267, %v1062
        %v1269 = vpop.permute.xlu0 %1268
        %1272 = vset.pattern.permute.xlu0 0
        %1273 = vperm.xlu0 %1272, %v1063
        %v1274 = vpop.permute.xlu0 %1273
        %1277 = vset.pattern.permute.xlu0 0
        %1278 = vperm.xlu0 %1277, %v1064
        %v1279 = vpop.permute.xlu0 %1278
        %1282 = vset.pattern.permute.xlu0 0
        %1283 = vperm.xlu0 %1282, %v1065
        %v1284 = vpop.permute.xlu0 %1283
        %1287 = vset.pattern.permute.xlu0 0
        %1288 = vperm.xlu0 %1287, %v1066
        %v1289 = vpop.permute.xlu0 %1288
        %1292 = vset.pattern.permute.xlu0 0
        %1293 = vperm.xlu0 %1292, %v1067
        %v1294 = vpop.permute.xlu0 %1293
        %1297 = vset.pattern.permute.xlu0 0
        %1298 = vperm.xlu0 %1297, %v1068
        %v1299 = vpop.permute.xlu0 %1298
        %1302 = vset.pattern.permute.xlu0 0
        %1303 = vperm.xlu0 %1302, %v1069
        %v1304 = vpop.permute.xlu0 %1303
        %1307 = vset.pattern.permute.xlu0 0
        %1308 = vperm.xlu0 %1307, %v1070
        %v1309 = vpop.permute.xlu0 %1308
        %1312 = vset.pattern.permute.xlu0 0
        %1313 = vperm.xlu0 %1312, %v1071
        %v1314 = vpop.permute.xlu0 %1313
        %1317 = vset.pattern.permute.xlu0 0
        %1318 = vperm.xlu0 %1317, %v1072
        %v1319 = vpop.permute.xlu0 %1318
        %1322 = vset.pattern.permute.xlu0 0
        %1323 = vperm.xlu0 %1322, %v1073
        %v1324 = vpop.permute.xlu0 %1323
        %1327 = vset.pattern.permute.xlu0 0
        %1328 = vperm.xlu0 %1327, %v1074
        %v1329 = vpop.permute.xlu0 %1328
        %v1331 = vsub.f32 %v915, %v1174
        %v1332 = vsub.f32 %v916, %v1179
        %v1333 = vsub.f32 %v917, %v1184
        %v1334 = vsub.f32 %v918, %v1189
        %v1335 = vsub.f32 %v919, %v1194
        %v1336 = vsub.f32 %v920, %v1199
        %v1337 = vsub.f32 %v921, %v1204
        %v1338 = vsub.f32 %v922, %v1209
        %v1339 = vsub.f32 %v923, %v1214
        %v1340 = vsub.f32 %v924, %v1219
        %v1341 = vsub.f32 %v925, %v1224
        %v1342 = vsub.f32 %v926, %v1229
        %v1343 = vsub.f32 %v927, %v1234
        %v1344 = vsub.f32 %v928, %v1239
        %v1345 = vsub.f32 %v929, %v1244
        %v1346 = vsub.f32 %v930, %v1249
        %v1347 = vsub.f32 %v931, %v1254
        %v1348 = vsub.f32 %v932, %v1259
        %v1349 = vsub.f32 %v933, %v1264
        %v1350 = vsub.f32 %v934, %v1269
        %v1351 = vsub.f32 %v935, %v1274
        %v1352 = vsub.f32 %v936, %v1279
        %v1353 = vsub.f32 %v937, %v1284
        %v1354 = vsub.f32 %v938, %v1289
        %v1355 = vsub.f32 %v939, %v1294
        %v1356 = vsub.f32 %v940, %v1299
        %v1357 = vsub.f32 %v941, %v1304
        %v1358 = vsub.f32 %v942, %v1309
        %v1359 = vsub.f32 %v943, %v1314
        %v1360 = vsub.f32 %v944, %v1319
        %v1361 = vsub.f32 %v945, %v1324
        %v1362 = vsub.f32 %v946, %v1329
        %v1363 = vmul.f32 %v1331, 1.442695
        %v1364 = vpow.pop %v1363
        %v1365 = vmul.f32 %v1332, 1.442695
        %v1366 = vpow.pop %v1365
        %v1367 = vmul.f32 %v1333, 1.442695
        %v1368 = vpow.pop %v1367
        %v1369 = vmul.f32 %v1334, 1.442695
        %v1370 = vpow.pop %v1369
        %v1371 = vmul.f32 %v1335, 1.442695
        %v1372 = vpow.pop %v1371
        %v1373 = vmul.f32 %v1336, 1.442695
        %v1374 = vpow.pop %v1373
        %v1375 = vmul.f32 %v1337, 1.442695
        %v1376 = vpow.pop %v1375
        %v1377 = vmul.f32 %v1338, 1.442695
        %v1378 = vpow.pop %v1377
        %v1379 = vmul.f32 %v1339, 1.442695
        %v1380 = vpow.pop %v1379
        %v1381 = vmul.f32 %v1340, 1.442695
        %v1382 = vpow.pop %v1381
        %v1383 = vmul.f32 %v1341, 1.442695
        %v1384 = vpow.pop %v1383
        %v1385 = vmul.f32 %v1342, 1.442695
        %v1386 = vpow.pop %v1385
        %v1387 = vmul.f32 %v1343, 1.442695
        %v1388 = vpow.pop %v1387
        %v1389 = vmul.f32 %v1344, 1.442695
        %v1390 = vpow.pop %v1389
        %v1391 = vmul.f32 %v1345, 1.442695
        %v1392 = vpow.pop %v1391
        %v1393 = vmul.f32 %v1346, 1.442695
        %v1394 = vpow.pop %v1393
        %v1395 = vmul.f32 %v1347, 1.442695
        %v1396 = vpow.pop %v1395
        %v1397 = vmul.f32 %v1348, 1.442695
        %v1398 = vpow.pop %v1397
        %v1399 = vmul.f32 %v1349, 1.442695
        %v1400 = vpow.pop %v1399
        %v1401 = vmul.f32 %v1350, 1.442695
        %v1402 = vpow.pop %v1401
        %v1403 = vmul.f32 %v1351, 1.442695
        %v1404 = vpow.pop %v1403
        %v1405 = vmul.f32 %v1352, 1.442695
        %v1406 = vpow.pop %v1405
        %v1407 = vmul.f32 %v1353, 1.442695
        %v1408 = vpow.pop %v1407
        %v1409 = vmul.f32 %v1354, 1.442695
        %v1410 = vpow.pop %v1409
        %v1411 = vmul.f32 %v1355, 1.442695
        %v1412 = vpow.pop %v1411
        %v1413 = vmul.f32 %v1356, 1.442695
        %v1414 = vpow.pop %v1413
        %v1415 = vmul.f32 %v1357, 1.442695
        %v1416 = vpow.pop %v1415
        %v1417 = vmul.f32 %v1358, 1.442695
        %v1418 = vpow.pop %v1417
        %v1419 = vmul.f32 %v1359, 1.442695
        %v1420 = vpow.pop %v1419
        %v1421 = vmul.f32 %v1360, 1.442695
        %v1422 = vpow.pop %v1421
        %v1423 = vmul.f32 %v1361, 1.442695
        %v1424 = vpow.pop %v1423
        %v1425 = vmul.f32 %v1362, 1.442695
        %v1426 = vpow.pop %v1425
        %v1427 = vld [vmem:[#allocation4] sm:$0xff]
        %v1428 = vld [vmem:[#allocation4 + $0x8] sm:$0xff]
        %v1429 = vld [vmem:[#allocation4 + $0x10] sm:$0xff]
        %v1430 = vld [vmem:[#allocation4 + $0x18] sm:$0xff]
        %v1431 = vld [vmem:[#allocation4 + $0x20] sm:$0xff]
        %v1432 = vld [vmem:[#allocation4 + $0x28] sm:$0xff]
        %v1433 = vld [vmem:[#allocation4 + $0x30] sm:$0xff]
        %v1434 = vld [vmem:[#allocation4 + $0x38] sm:$0xff]
        %v1435 = vld [vmem:[#allocation4 + $0x40] sm:$0xff]
        %v1436 = vld [vmem:[#allocation4 + $0x48] sm:$0xff]
        %v1437 = vld [vmem:[#allocation4 + $0x50] sm:$0xff]
        %v1438 = vld [vmem:[#allocation4 + $0x58] sm:$0xff]
        %v1439 = vld [vmem:[#allocation4 + $0x60] sm:$0xff]
        %v1440 = vld [vmem:[#allocation4 + $0x68] sm:$0xff]
        %v1441 = vld [vmem:[#allocation4 + $0x70] sm:$0xff]
        %v1442 = vld [vmem:[#allocation4 + $0x78] sm:$0xff]
        %v1443 = vld [vmem:[#allocation4 + $0x80] sm:$0xff]
        %v1444 = vld [vmem:[#allocation4 + $0x88] sm:$0xff]
        %v1445 = vld [vmem:[#allocation4 + $0x90] sm:$0xff]
        %v1446 = vld [vmem:[#allocation4 + $0x98] sm:$0xff]
        %v1447 = vld [vmem:[#allocation4 + $0xa0] sm:$0xff]
        %v1448 = vld [vmem:[#allocation4 + $0xa8] sm:$0xff]
        %v1449 = vld [vmem:[#allocation4 + $0xb0] sm:$0xff]
        %v1450 = vld [vmem:[#allocation4 + $0xb8] sm:$0xff]
        %v1451 = vld [vmem:[#allocation4 + $0xc0] sm:$0xff]
        %v1452 = vld [vmem:[#allocation4 + $0xc8] sm:$0xff]
        %v1453 = vld [vmem:[#allocation4 + $0xd0] sm:$0xff]
        %v1454 = vld [vmem:[#allocation4 + $0xd8] sm:$0xff]
        %v1455 = vld [vmem:[#allocation4 + $0xe0] sm:$0xff]
        %v1456 = vld [vmem:[#allocation4 + $0xe8] sm:$0xff]
        %v1457 = vld [vmem:[#allocation4 + $0xf0] sm:$0xff]
        %v1458 = vld [vmem:[#allocation4 + $0xf8] sm:$0xff]
        %v1459 = vmul.f32 %v1108, %v1427
        %v1460 = vmul.f32 %v1110, %v1428
        %v1461 = vmul.f32 %v1112, %v1429
        %v1462 = vmul.f32 %v1114, %v1430
        %v1463 = vmul.f32 %v1116, %v1431
        %v1464 = vmul.f32 %v1118, %v1432
        %v1465 = vmul.f32 %v1120, %v1433
        %v1466 = vmul.f32 %v1122, %v1434
        %v1467 = vmul.f32 %v1124, %v1435
        %v1468 = vmul.f32 %v1126, %v1436
        %v1469 = vmul.f32 %v1128, %v1437
        %v1470 = vmul.f32 %v1130, %v1438
        %v1471 = vmul.f32 %v1132, %v1439
        %v1472 = vmul.f32 %v1134, %v1440
        %v1473 = vmul.f32 %v1136, %v1441
        %v1474 = vmul.f32 %v1138, %v1442
        %v1475 = vmul.f32 %v1140, %v1443
        %v1476 = vmul.f32 %v1142, %v1444
        %v1477 = vmul.f32 %v1144, %v1445
        %v1478 = vmul.f32 %v1146, %v1446
        %v1479 = vmul.f32 %v1148, %v1447
        %v1480 = vmul.f32 %v1150, %v1448
        %v1481 = vmul.f32 %v1152, %v1449
        %v1482 = vmul.f32 %v1154, %v1450
        %v1483 = vmul.f32 %v1156, %v1451
        %v1484 = vmul.f32 %v1158, %v1452
        %v1485 = vmul.f32 %v1160, %v1453
        %v1486 = vmul.f32 %v1162, %v1454
        %v1487 = vmul.f32 %v1164, %v1455
        %v1488 = vmul.f32 %v1166, %v1456
        %v1489 = vmul.f32 %v1168, %v1457
        %v1490 = vmul.f32 %v1170, %v1458
        %1491 = vadd.xlane.f32.xlu0 %v1364
        %v1492 = vpop.xlane.xlu0 %1491
        %1493 = vadd.xlane.f32.xlu0 %v1366
        %v1494 = vpop.xlane.xlu0 %1493
        %1495 = vadd.xlane.f32.xlu0 %v1368
        %v1496 = vpop.xlane.xlu0 %1495
        %1497 = vadd.xlane.f32.xlu0 %v1370
        %v1498 = vpop.xlane.xlu0 %1497
        %1499 = vadd.xlane.f32.xlu0 %v1372
        %v1500 = vpop.xlane.xlu0 %1499
        %1501 = vadd.xlane.f32.xlu0 %v1374
        %v1502 = vpop.xlane.xlu0 %1501
        %1503 = vadd.xlane.f32.xlu0 %v1376
        %v1504 = vpop.xlane.xlu0 %1503
        %1505 = vadd.xlane.f32.xlu0 %v1378
        %v1506 = vpop.xlane.xlu0 %1505
        %1507 = vadd.xlane.f32.xlu0 %v1380
        %v1508 = vpop.xlane.xlu0 %1507
        %1509 = vadd.xlane.f32.xlu0 %v1382
        %v1510 = vpop.xlane.xlu0 %1509
        %1511 = vadd.xlane.f32.xlu0 %v1384
        %v1512 = vpop.xlane.xlu0 %1511
        %1513 = vadd.xlane.f32.xlu0 %v1386
        %v1514 = vpop.xlane.xlu0 %1513
        %1515 = vadd.xlane.f32.xlu0 %v1388
        %v1516 = vpop.xlane.xlu0 %1515
        %1517 = vadd.xlane.f32.xlu0 %v1390
        %v1518 = vpop.xlane.xlu0 %1517
        %1519 = vadd.xlane.f32.xlu0 %v1392
        %v1520 = vpop.xlane.xlu0 %1519
        %1521 = vadd.xlane.f32.xlu0 %v1394
        %v1522 = vpop.xlane.xlu0 %1521
        %1523 = vadd.xlane.f32.xlu0 %v1396
        %v1524 = vpop.xlane.xlu0 %1523
        %1525 = vadd.xlane.f32.xlu0 %v1398
        %v1526 = vpop.xlane.xlu0 %1525
        %1527 = vadd.xlane.f32.xlu0 %v1400
        %v1528 = vpop.xlane.xlu0 %1527
        %1529 = vadd.xlane.f32.xlu0 %v1402
        %v1530 = vpop.xlane.xlu0 %1529
        %1531 = vadd.xlane.f32.xlu0 %v1404
        %v1532 = vpop.xlane.xlu0 %1531
        %1533 = vadd.xlane.f32.xlu0 %v1406
        %v1534 = vpop.xlane.xlu0 %1533
        %1535 = vadd.xlane.f32.xlu0 %v1408
        %v1536 = vpop.xlane.xlu0 %1535
        %1537 = vadd.xlane.f32.xlu0 %v1410
        %v1538 = vpop.xlane.xlu0 %1537
        %1539 = vadd.xlane.f32.xlu0 %v1412
        %v1540 = vpop.xlane.xlu0 %1539
        %1541 = vadd.xlane.f32.xlu0 %v1414
        %v1542 = vpop.xlane.xlu0 %1541
        %1543 = vadd.xlane.f32.xlu0 %v1416
        %v1544 = vpop.xlane.xlu0 %1543
        %1545 = vadd.xlane.f32.xlu0 %v1418
        %v1546 = vpop.xlane.xlu0 %1545
        %1547 = vadd.xlane.f32.xlu0 %v1420
        %v1548 = vpop.xlane.xlu0 %1547
        %1549 = vadd.xlane.f32.xlu0 %v1422
        %v1550 = vpop.xlane.xlu0 %1549
        %1551 = vadd.xlane.f32.xlu0 %v1424
        %v1552 = vpop.xlane.xlu0 %1551
        %1553 = vadd.xlane.f32.xlu0 %v1426
        %v1554 = vpop.xlane.xlu0 %1553
        %v1555 = vadd.f32 %v1459, %v1492
        %v1556 = vadd.f32 %v1460, %v1494
        %v1557 = vadd.f32 %v1461, %v1496
        %v1558 = vadd.f32 %v1462, %v1498
        %v1559 = vadd.f32 %v1463, %v1500
        %v1560 = vadd.f32 %v1464, %v1502
        %v1561 = vadd.f32 %v1465, %v1504
        %v1562 = vadd.f32 %v1466, %v1506
        %v1563 = vadd.f32 %v1467, %v1508
        %v1564 = vadd.f32 %v1468, %v1510
        %v1565 = vadd.f32 %v1469, %v1512
        %v1566 = vadd.f32 %v1470, %v1514
        %v1567 = vadd.f32 %v1471, %v1516
        %v1568 = vadd.f32 %v1472, %v1518
        %v1569 = vadd.f32 %v1473, %v1520
        %v1570 = vadd.f32 %v1474, %v1522
        %v1571 = vadd.f32 %v1475, %v1524
        %v1572 = vadd.f32 %v1476, %v1526
        %v1573 = vadd.f32 %v1477, %v1528
        %v1574 = vadd.f32 %v1478, %v1530
        %v1575 = vadd.f32 %v1479, %v1532
        %v1576 = vadd.f32 %v1480, %v1534
        %v1577 = vadd.f32 %v1481, %v1536
        %v1578 = vadd.f32 %v1482, %v1538
        %v1579 = vadd.f32 %v1483, %v1540
        %v1580 = vadd.f32 %v1484, %v1542
        %v1581 = vadd.f32 %v1485, %v1544
        %v1582 = vadd.f32 %v1486, %v1546
        %v1583 = vadd.f32 %v1487, %v1548
        %v1584 = vadd.f32 %v1488, %v1550
        %v1585 = vadd.f32 %v1489, %v1552
        %v1586 = vadd.f32 %v1490, %v1554
        %vm1587 = vcmask 7168
        %1588 = vst.msk [vmem:[#allocation4] sm:$0xff] %vm1587, %v1555
        %1589 = vst.msk [vmem:[#allocation4 + $0x8] sm:$0xff] %vm1587, %v1556
        %1590 = vst.msk [vmem:[#allocation4 + $0x10] sm:$0xff] %vm1587, %v1557
        %1591 = vst.msk [vmem:[#allocation4 + $0x18] sm:$0xff] %vm1587, %v1558
        %1592 = vst.msk [vmem:[#allocation4 + $0x20] sm:$0xff] %vm1587, %v1559
        %1593 = vst.msk [vmem:[#allocation4 + $0x28] sm:$0xff] %vm1587, %v1560
        %1594 = vst.msk [vmem:[#allocation4 + $0x30] sm:$0xff] %vm1587, %v1561
        %1595 = vst.msk [vmem:[#allocation4 + $0x38] sm:$0xff] %vm1587, %v1562
        %1596 = vst.msk [vmem:[#allocation4 + $0x40] sm:$0xff] %vm1587, %v1563
        %1597 = vst.msk [vmem:[#allocation4 + $0x48] sm:$0xff] %vm1587, %v1564
        %1598 = vst.msk [vmem:[#allocation4 + $0x50] sm:$0xff] %vm1587, %v1565
        %1599 = vst.msk [vmem:[#allocation4 + $0x58] sm:$0xff] %vm1587, %v1566
        %1600 = vst.msk [vmem:[#allocation4 + $0x60] sm:$0xff] %vm1587, %v1567
        %1601 = vst.msk [vmem:[#allocation4 + $0x68] sm:$0xff] %vm1587, %v1568
        %1602 = vst.msk [vmem:[#allocation4 + $0x70] sm:$0xff] %vm1587, %v1569
        %1603 = vst.msk [vmem:[#allocation4 + $0x78] sm:$0xff] %vm1587, %v1570
        %1604 = vst.msk [vmem:[#allocation4 + $0x80] sm:$0xff] %vm1587, %v1571
        %1605 = vst.msk [vmem:[#allocation4 + $0x88] sm:$0xff] %vm1587, %v1572
        %1606 = vst.msk [vmem:[#allocation4 + $0x90] sm:$0xff] %vm1587, %v1573
        %1607 = vst.msk [vmem:[#allocation4 + $0x98] sm:$0xff] %vm1587, %v1574
        %1608 = vst.msk [vmem:[#allocation4 + $0xa0] sm:$0xff] %vm1587, %v1575
        %1609 = vst.msk [vmem:[#allocation4 + $0xa8] sm:$0xff] %vm1587, %v1576
        %1610 = vst.msk [vmem:[#allocation4 + $0xb0] sm:$0xff] %vm1587, %v1577
        %1611 = vst.msk [vmem:[#allocation4 + $0xb8] sm:$0xff] %vm1587, %v1578
        %1612 = vst.msk [vmem:[#allocation4 + $0xc0] sm:$0xff] %vm1587, %v1579
        %1613 = vst.msk [vmem:[#allocation4 + $0xc8] sm:$0xff] %vm1587, %v1580
        %1614 = vst.msk [vmem:[#allocation4 + $0xd0] sm:$0xff] %vm1587, %v1581
        %1615 = vst.msk [vmem:[#allocation4 + $0xd8] sm:$0xff] %vm1587, %v1582
        %1616 = vst.msk [vmem:[#allocation4 + $0xe0] sm:$0xff] %vm1587, %v1583
        %1617 = vst.msk [vmem:[#allocation4 + $0xe8] sm:$0xff] %vm1587, %v1584
        %1618 = vst.msk [vmem:[#allocation4 + $0xf0] sm:$0xff] %vm1587, %v1585
        %1619 = vst.msk [vmem:[#allocation4 + $0xf8] sm:$0xff] %vm1587, %v1586
        %v1620 = vld [vmem:[#allocation5] sm:$0xff]
        %v1621 = vld [vmem:[#allocation5 + $0x8] sm:$0xff]
        %v1622 = vld [vmem:[#allocation5 + $0x10] sm:$0xff]
        %v1623 = vld [vmem:[#allocation5 + $0x18] sm:$0xff]
        %v1624 = vld [vmem:[#allocation5 + $0x20] sm:$0xff]
        %v1625 = vld [vmem:[#allocation5 + $0x28] sm:$0xff]
        %v1626 = vld [vmem:[#allocation5 + $0x30] sm:$0xff]
        %v1627 = vld [vmem:[#allocation5 + $0x38] sm:$0xff]
        %v1628 = vld [vmem:[#allocation5 + $0x40] sm:$0xff]
        %v1629 = vld [vmem:[#allocation5 + $0x48] sm:$0xff]
        %v1630 = vld [vmem:[#allocation5 + $0x50] sm:$0xff]
        %v1631 = vld [vmem:[#allocation5 + $0x58] sm:$0xff]
        %v1632 = vld [vmem:[#allocation5 + $0x60] sm:$0xff]
        %v1633 = vld [vmem:[#allocation5 + $0x68] sm:$0xff]
        %v1634 = vld [vmem:[#allocation5 + $0x70] sm:$0xff]
        %v1635 = vld [vmem:[#allocation5 + $0x78] sm:$0xff]
        %v1636 = vld [vmem:[#allocation5 + $0x80] sm:$0xff]
        %v1637 = vld [vmem:[#allocation5 + $0x88] sm:$0xff]
        %v1638 = vld [vmem:[#allocation5 + $0x90] sm:$0xff]
        %v1639 = vld [vmem:[#allocation5 + $0x98] sm:$0xff]
        %v1640 = vld [vmem:[#allocation5 + $0xa0] sm:$0xff]
        %v1641 = vld [vmem:[#allocation5 + $0xa8] sm:$0xff]
        %v1642 = vld [vmem:[#allocation5 + $0xb0] sm:$0xff]
        %v1643 = vld [vmem:[#allocation5 + $0xb8] sm:$0xff]
        %v1644 = vld [vmem:[#allocation5 + $0xc0] sm:$0xff]
        %v1645 = vld [vmem:[#allocation5 + $0xc8] sm:$0xff]
        %v1646 = vld [vmem:[#allocation5 + $0xd0] sm:$0xff]
        %v1647 = vld [vmem:[#allocation5 + $0xd8] sm:$0xff]
        %v1648 = vld [vmem:[#allocation5 + $0xe0] sm:$0xff]
        %v1649 = vld [vmem:[#allocation5 + $0xe8] sm:$0xff]
        %v1650 = vld [vmem:[#allocation5 + $0xf0] sm:$0xff]
        %v1651 = vld [vmem:[#allocation5 + $0xf8] sm:$0xff]
        %1653 = vset.pattern.permute.xlu0 0
        %1654 = vperm.xlu0 %1653, %v1108
        %v1655 = vpop.permute.xlu0 %1654
        %1658 = vset.pattern.permute.xlu0 0
        %1659 = vperm.xlu0 %1658, %v1110
        %v1660 = vpop.permute.xlu0 %1659
        %1663 = vset.pattern.permute.xlu0 0
        %1664 = vperm.xlu0 %1663, %v1112
        %v1665 = vpop.permute.xlu0 %1664
        %1668 = vset.pattern.permute.xlu0 0
        %1669 = vperm.xlu0 %1668, %v1114
        %v1670 = vpop.permute.xlu0 %1669
        %1673 = vset.pattern.permute.xlu0 0
        %1674 = vperm.xlu0 %1673, %v1116
        %v1675 = vpop.permute.xlu0 %1674
        %1678 = vset.pattern.permute.xlu0 0
        %1679 = vperm.xlu0 %1678, %v1118
        %v1680 = vpop.permute.xlu0 %1679
        %1683 = vset.pattern.permute.xlu0 0
        %1684 = vperm.xlu0 %1683, %v1120
        %v1685 = vpop.permute.xlu0 %1684
        %1688 = vset.pattern.permute.xlu0 0
        %1689 = vperm.xlu0 %1688, %v1122
        %v1690 = vpop.permute.xlu0 %1689
        %1693 = vset.pattern.permute.xlu0 0
        %1694 = vperm.xlu0 %1693, %v1124
        %v1695 = vpop.permute.xlu0 %1694
        %1698 = vset.pattern.permute.xlu0 0
        %1699 = vperm.xlu0 %1698, %v1126
        %v1700 = vpop.permute.xlu0 %1699
        %1703 = vset.pattern.permute.xlu0 0
        %1704 = vperm.xlu0 %1703, %v1128
        %v1705 = vpop.permute.xlu0 %1704
        %1708 = vset.pattern.permute.xlu0 0
        %1709 = vperm.xlu0 %1708, %v1130
        %v1710 = vpop.permute.xlu0 %1709
        %1713 = vset.pattern.permute.xlu0 0
        %1714 = vperm.xlu0 %1713, %v1132
        %v1715 = vpop.permute.xlu0 %1714
        %1718 = vset.pattern.permute.xlu0 0
        %1719 = vperm.xlu0 %1718, %v1134
        %v1720 = vpop.permute.xlu0 %1719
        %1723 = vset.pattern.permute.xlu0 0
        %1724 = vperm.xlu0 %1723, %v1136
        %v1725 = vpop.permute.xlu0 %1724
        %1728 = vset.pattern.permute.xlu0 0
        %1729 = vperm.xlu0 %1728, %v1138
        %v1730 = vpop.permute.xlu0 %1729
        %1733 = vset.pattern.permute.xlu0 0
        %1734 = vperm.xlu0 %1733, %v1140
        %v1735 = vpop.permute.xlu0 %1734
        %1738 = vset.pattern.permute.xlu0 0
        %1739 = vperm.xlu0 %1738, %v1142
        %v1740 = vpop.permute.xlu0 %1739
        %1743 = vset.pattern.permute.xlu0 0
        %1744 = vperm.xlu0 %1743, %v1144
        %v1745 = vpop.permute.xlu0 %1744
        %1748 = vset.pattern.permute.xlu0 0
        %1749 = vperm.xlu0 %1748, %v1146
        %v1750 = vpop.permute.xlu0 %1749
        %1753 = vset.pattern.permute.xlu0 0
        %1754 = vperm.xlu0 %1753, %v1148
        %v1755 = vpop.permute.xlu0 %1754
        %1758 = vset.pattern.permute.xlu0 0
        %1759 = vperm.xlu0 %1758, %v1150
        %v1760 = vpop.permute.xlu0 %1759
        %1763 = vset.pattern.permute.xlu0 0
        %1764 = vperm.xlu0 %1763, %v1152
        %v1765 = vpop.permute.xlu0 %1764
        %1768 = vset.pattern.permute.xlu0 0
        %1769 = vperm.xlu0 %1768, %v1154
        %v1770 = vpop.permute.xlu0 %1769
        %1773 = vset.pattern.permute.xlu0 0
        %1774 = vperm.xlu0 %1773, %v1156
        %v1775 = vpop.permute.xlu0 %1774
        %1778 = vset.pattern.permute.xlu0 0
        %1779 = vperm.xlu0 %1778, %v1158
        %v1780 = vpop.permute.xlu0 %1779
        %1783 = vset.pattern.permute.xlu0 0
        %1784 = vperm.xlu0 %1783, %v1160
        %v1785 = vpop.permute.xlu0 %1784
        %1788 = vset.pattern.permute.xlu0 0
        %1789 = vperm.xlu0 %1788, %v1162
        %v1790 = vpop.permute.xlu0 %1789
        %1793 = vset.pattern.permute.xlu0 0
        %1794 = vperm.xlu0 %1793, %v1164
        %v1795 = vpop.permute.xlu0 %1794
        %1798 = vset.pattern.permute.xlu0 0
        %1799 = vperm.xlu0 %1798, %v1166
        %v1800 = vpop.permute.xlu0 %1799
        %1803 = vset.pattern.permute.xlu0 0
        %1804 = vperm.xlu0 %1803, %v1168
        %v1805 = vpop.permute.xlu0 %1804
        %1808 = vset.pattern.permute.xlu0 0
        %1809 = vperm.xlu0 %1808, %v1170
        %v1810 = vpop.permute.xlu0 %1809
        %v1812 = vmul.f32 %v1655, %v1620
        %v1813 = vmul.f32 %v1660, %v1621
        %v1814 = vmul.f32 %v1665, %v1622
        %v1815 = vmul.f32 %v1670, %v1623
        %v1816 = vmul.f32 %v1675, %v1624
        %v1817 = vmul.f32 %v1680, %v1625
        %v1818 = vmul.f32 %v1685, %v1626
        %v1819 = vmul.f32 %v1690, %v1627
        %v1820 = vmul.f32 %v1695, %v1628
        %v1821 = vmul.f32 %v1700, %v1629
        %v1822 = vmul.f32 %v1705, %v1630
        %v1823 = vmul.f32 %v1710, %v1631
        %v1824 = vmul.f32 %v1715, %v1632
        %v1825 = vmul.f32 %v1720, %v1633
        %v1826 = vmul.f32 %v1725, %v1634
        %v1827 = vmul.f32 %v1730, %v1635
        %v1828 = vmul.f32 %v1735, %v1636
        %v1829 = vmul.f32 %v1740, %v1637
        %v1830 = vmul.f32 %v1745, %v1638
        %v1831 = vmul.f32 %v1750, %v1639
        %v1832 = vmul.f32 %v1755, %v1640
        %v1833 = vmul.f32 %v1760, %v1641
        %v1834 = vmul.f32 %v1765, %v1642
        %v1835 = vmul.f32 %v1770, %v1643
        %v1836 = vmul.f32 %v1775, %v1644
        %v1837 = vmul.f32 %v1780, %v1645
        %v1838 = vmul.f32 %v1785, %v1646
        %v1839 = vmul.f32 %v1790, %v1647
        %v1840 = vmul.f32 %v1795, %v1648
        %v1841 = vmul.f32 %v1800, %v1649
        %v1842 = vmul.f32 %v1805, %v1650
        %v1843 = vmul.f32 %v1810, %v1651
        %v1844 = vpack.c.bf16 %v1366, %v1364
        %v1845 = vpack.c.bf16 %v1370, %v1368
        %v1846 = vpack.c.bf16 %v1374, %v1372
        %v1847 = vpack.c.bf16 %v1378, %v1376
        %v1848 = vpack.c.bf16 %v1382, %v1380
        %v1849 = vpack.c.bf16 %v1386, %v1384
        %v1850 = vpack.c.bf16 %v1390, %v1388
        %v1851 = vpack.c.bf16 %v1394, %v1392
        %v1852 = vpack.c.bf16 %v1398, %v1396
        %v1853 = vpack.c.bf16 %v1402, %v1400
        %v1854 = vpack.c.bf16 %v1406, %v1404
        %v1855 = vpack.c.bf16 %v1410, %v1408
        %v1856 = vpack.c.bf16 %v1414, %v1412
        %v1857 = vpack.c.bf16 %v1418, %v1416
        %v1858 = vpack.c.bf16 %v1422, %v1420
        %v1859 = vpack.c.bf16 %v1426, %v1424
        %1860 = vmatprep.subr.bf16.mxu0 0
        %1861 = vmatpush1.bf16.msra.mxu0 %v671
        %1862 = vmatprep.subr.bf16.mxu0 0
        %1863 = vmatpush1.bf16.msra.mxu0 %v672
        %1864 = vmatprep.subr.bf16.mxu0 0
        %1865 = vmatpush1.bf16.msra.mxu0 %v673
        %1866 = vmatprep.subr.bf16.mxu0 0
        %1867 = vmatpush1.bf16.msra.mxu0 %v674
        %1868 = vmatprep.subr.bf16.mxu0 0
        %1869 = vmatpush1.bf16.msra.mxu0 %v675
        %1870 = vmatprep.subr.bf16.mxu0 0
        %1871 = vmatpush1.bf16.msra.mxu0 %v676
        %1872 = vmatprep.subr.bf16.mxu0 0
        %1873 = vmatpush1.bf16.msra.mxu0 %v677
        %1874 = vmatprep.subr.bf16.mxu0 0
        %1875 = vmatpush1.bf16.msra.mxu0 %v678
        %1876 = vmatprep.subr.bf16.mxu0 0
        %1877 = vmatpush1.bf16.msra.mxu0 0
        %1878 = vmatprep.subr.bf16.mxu0 0
        %1879 = vmatpush1.bf16.msra.mxu0 0
        %1880 = vmatprep.subr.bf16.mxu0 0
        %1881 = vmatpush1.bf16.msra.mxu0 0
        %1882 = vmatprep.subr.bf16.mxu0 0
        %1883 = vmatpush1.bf16.msra.mxu0 0
        %1884 = vmatprep.subr.bf16.mxu0 0
        %1885 = vmatpush1.bf16.msra.mxu0 0
        %1886 = vmatprep.subr.bf16.mxu0 0
        %1887 = vmatpush1.bf16.msra.mxu0 0
        %1888 = vmatprep.subr.bf16.mxu0 0
        %1889 = vmatpush1.bf16.msra.mxu0 0
        %1890 = vmatprep.subr.bf16.mxu0 0
        %1891 = vmatpush1.bf16.msra.mxu0 0
        %1892 = vmatprep.mubr.bf16.mxu0 0
        %1893 = vmatmul.mubr.bf16.gmra.mrb[0].mxu0 %v1844
        %v1894 = vpop.f32.mrb[0].mxu0
        %v1895 = vadd.f32 0.0, %v1894
        %v1896 = vpop.f32.mrb[0].mxu0
        %v1897 = vpop.f32.mrb[0].mxu0
        %v1898 = vadd.f32 0.0, %v1897
        %v1899 = vpop.f32.mrb[0].mxu0
        %1900 = vmatprep.mubr.bf16.mxu0 0
        %1901 = vmatmul.mubr.bf16.gmra.mrb[0].mxu0 %v1845
        %v1902 = vpop.f32.mrb[0].mxu0
        %v1903 = vadd.f32 0.0, %v1902
        %v1904 = vpop.f32.mrb[0].mxu0
        %v1905 = vpop.f32.mrb[0].mxu0
        %v1906 = vadd.f32 0.0, %v1905
        %v1907 = vpop.f32.mrb[0].mxu0
        %1908 = vmatprep.mubr.bf16.mxu0 0
        %1909 = vmatmul.mubr.bf16.gmra.mrb[0].mxu0 %v1846
        %v1910 = vpop.f32.mrb[0].mxu0
        %v1911 = vadd.f32 0.0, %v1910
        %v1912 = vpop.f32.mrb[0].mxu0
        %v1913 = vpop.f32.mrb[0].mxu0
        %v1914 = vadd.f32 0.0, %v1913
        %v1915 = vpop.f32.mrb[0].mxu0
        %1916 = vmatprep.mubr.bf16.mxu0 0
        %1917 = vmatmul.mubr.bf16.gmra.mrb[0].mxu0 %v1847
        %v1918 = vpop.f32.mrb[0].mxu0
        %v1919 = vadd.f32 0.0, %v1918
        %v1920 = vpop.f32.mrb[0].mxu0
        %v1921 = vpop.f32.mrb[0].mxu0
        %v1922 = vadd.f32 0.0, %v1921
        %v1923 = vpop.f32.mrb[0].mxu0
        %1924 = vmatprep.mubr.bf16.mxu0 0
        %1925 = vmatmul.mubr.bf16.gmra.mrb[0].mxu0 %v1848
        %v1926 = vpop.f32.mrb[0].mxu0
        %v1927 = vadd.f32 0.0, %v1926
        %v1928 = vpop.f32.mrb[0].mxu0
        %v1929 = vpop.f32.mrb[0].mxu0
        %v1930 = vadd.f32 0.0, %v1929
        %v1931 = vpop.f32.mrb[0].mxu0
        %1932 = vmatprep.mubr.bf16.mxu0 0
        %1933 = vmatmul.mubr.bf16.gmra.mrb[0].mxu0 %v1849
        %v1934 = vpop.f32.mrb[0].mxu0
        %v1935 = vadd.f32 0.0, %v1934
        %v1936 = vpop.f32.mrb[0].mxu0
        %v1937 = vpop.f32.mrb[0].mxu0
        %v1938 = vadd.f32 0.0, %v1937
        %v1939 = vpop.f32.mrb[0].mxu0
        %1940 = vmatprep.mubr.bf16.mxu0 0
        %1941 = vmatmul.mubr.bf16.gmra.mrb[0].mxu0 %v1850
        %v1942 = vpop.f32.mrb[0].mxu0
        %v1943 = vadd.f32 0.0, %v1942
        %v1944 = vpop.f32.mrb[0].mxu0
        %v1945 = vpop.f32.mrb[0].mxu0
        %v1946 = vadd.f32 0.0, %v1945
        %v1947 = vpop.f32.mrb[0].mxu0
        %1948 = vmatprep.mubr.bf16.mxu0 0
        %1949 = vmatmul.mubr.bf16.gmra.mrb[0].mxu0 %v1851
        %v1950 = vpop.f32.mrb[0].mxu0
        %v1951 = vadd.f32 0.0, %v1950
        %v1952 = vpop.f32.mrb[0].mxu0
        %v1953 = vpop.f32.mrb[0].mxu0
        %v1954 = vadd.f32 0.0, %v1953
        %v1955 = vpop.f32.mrb[0].mxu0
        %1956 = vdwg.mxu0
        %1957 = vmatprep.subr.bf16.mxu0 0
        %1958 = vmatpush1.bf16.msra.mxu0 %v679
        %1959 = vmatprep.subr.bf16.mxu0 0
        %1960 = vmatpush1.bf16.msra.mxu0 %v680
        %1961 = vmatprep.subr.bf16.mxu0 0
        %1962 = vmatpush1.bf16.msra.mxu0 %v681
        %1963 = vmatprep.subr.bf16.mxu0 0
        %1964 = vmatpush1.bf16.msra.mxu0 %v682
        %1965 = vmatprep.subr.bf16.mxu0 0
        %1966 = vmatpush1.bf16.msra.mxu0 %v683
        %1967 = vmatprep.subr.bf16.mxu0 0
        %1968 = vmatpush1.bf16.msra.mxu0 %v684
        %1969 = vmatprep.subr.bf16.mxu0 0
        %1970 = vmatpush1.bf16.msra.mxu0 %v685
        %1971 = vmatprep.subr.bf16.mxu0 0
        %1972 = vmatpush1.bf16.msra.mxu0 %v686
        %1973 = vmatprep.subr.bf16.mxu0 0
        %1974 = vmatpush1.bf16.msra.mxu0 0
        %1975 = vmatprep.subr.bf16.mxu0 0
        %1976 = vmatpush1.bf16.msra.mxu0 0
        %1977 = vmatprep.subr.bf16.mxu0 0
        %1978 = vmatpush1.bf16.msra.mxu0 0
        %1979 = vmatprep.subr.bf16.mxu0 0
        %1980 = vmatpush1.bf16.msra.mxu0 0
        %1981 = vmatprep.subr.bf16.mxu0 0
        %1982 = vmatpush1.bf16.msra.mxu0 0
        %1983 = vmatprep.subr.bf16.mxu0 0
        %1984 = vmatpush1.bf16.msra.mxu0 0
        %1985 = vmatprep.subr.bf16.mxu0 0
        %1986 = vmatpush1.bf16.msra.mxu0 0
        %1987 = vmatprep.subr.bf16.mxu0 0
        %1988 = vmatpush1.bf16.msra.mxu0 0
        %1989 = vmatprep.mubr.bf16.mxu0 0
        %1990 = vmatmul.mubr.bf16.gmra.mrb[0].mxu0 %v1852
        %v1991 = vpop.f32.mrb[0].mxu0
        %v1992 = vadd.f32 0.0, %v1991
        %v1993 = vpop.f32.mrb[0].mxu0
        %v1994 = vpop.f32.mrb[0].mxu0
        %v1995 = vadd.f32 0.0, %v1994
        %v1996 = vpop.f32.mrb[0].mxu0
        %1997 = vmatprep.mubr.bf16.mxu0 0
        %1998 = vmatmul.mubr.bf16.gmra.mrb[0].mxu0 %v1853
        %v1999 = vpop.f32.mrb[0].mxu0
        %v2000 = vadd.f32 0.0, %v1999
        %v2001 = vpop.f32.mrb[0].mxu0
        %v2002 = vpop.f32.mrb[0].mxu0
        %v2003 = vadd.f32 0.0, %v2002
        %v2004 = vpop.f32.mrb[0].mxu0
        %2005 = vmatprep.mubr.bf16.mxu0 0
        %2006 = vmatmul.mubr.bf16.gmra.mrb[0].mxu0 %v1854
        %v2007 = vpop.f32.mrb[0].mxu0
        %v2008 = vadd.f32 0.0, %v2007
        %v2009 = vpop.f32.mrb[0].mxu0
        %v2010 = vpop.f32.mrb[0].mxu0
        %v2011 = vadd.f32 0.0, %v2010
        %v2012 = vpop.f32.mrb[0].mxu0
        %2013 = vmatprep.mubr.bf16.mxu0 0
        %2014 = vmatmul.mubr.bf16.gmra.mrb[0].mxu0 %v1855
        %v2015 = vpop.f32.mrb[0].mxu0
        %v2016 = vadd.f32 0.0, %v2015
        %v2017 = vpop.f32.mrb[0].mxu0
        %v2018 = vpop.f32.mrb[0].mxu0
        %v2019 = vadd.f32 0.0, %v2018
        %v2020 = vpop.f32.mrb[0].mxu0
        %2021 = vmatprep.mubr.bf16.mxu0 0
        %2022 = vmatmul.mubr.bf16.gmra.mrb[0].mxu0 %v1856
        %v2023 = vpop.f32.mrb[0].mxu0
        %v2024 = vadd.f32 0.0, %v2023
        %v2025 = vpop.f32.mrb[0].mxu0
        %v2026 = vpop.f32.mrb[0].mxu0
        %v2027 = vadd.f32 0.0, %v2026
        %v2028 = vpop.f32.mrb[0].mxu0
        %2029 = vmatprep.mubr.bf16.mxu0 0
        %2030 = vmatmul.mubr.bf16.gmra.mrb[0].mxu0 %v1857
        %v2031 = vpop.f32.mrb[0].mxu0
        %v2032 = vadd.f32 0.0, %v2031
        %v2033 = vpop.f32.mrb[0].mxu0
        %v2034 = vpop.f32.mrb[0].mxu0
        %v2035 = vadd.f32 0.0, %v2034
        %v2036 = vpop.f32.mrb[0].mxu0
        %2037 = vmatprep.mubr.bf16.mxu0 0
        %2038 = vmatmul.mubr.bf16.gmra.mrb[0].mxu0 %v1858
        %v2039 = vpop.f32.mrb[0].mxu0
        %v2040 = vadd.f32 0.0, %v2039
        %v2041 = vpop.f32.mrb[0].mxu0
        %v2042 = vpop.f32.mrb[0].mxu0
        %v2043 = vadd.f32 0.0, %v2042
        %v2044 = vpop.f32.mrb[0].mxu0
        %2045 = vmatprep.mubr.bf16.mxu0 0
        %2046 = vmatmul.mubr.bf16.gmra.mrb[0].mxu0 %v1859
        %v2047 = vpop.f32.mrb[0].mxu0
        %v2048 = vadd.f32 0.0, %v2047
        %v2049 = vpop.f32.mrb[0].mxu0
        %v2050 = vpop.f32.mrb[0].mxu0
        %v2051 = vadd.f32 0.0, %v2050
        %v2052 = vpop.f32.mrb[0].mxu0
        %2053 = vdwg.mxu0
        %v2054 = vadd.f32 %v1812, %v1895
        %v2055 = vadd.f32 %v1813, %v1898
        %v2056 = vadd.f32 %v1814, %v1903
        %v2057 = vadd.f32 %v1815, %v1906
        %v2058 = vadd.f32 %v1816, %v1911
        %v2059 = vadd.f32 %v1817, %v1914
        %v2060 = vadd.f32 %v1818, %v1919
        %v2061 = vadd.f32 %v1819, %v1922
        %v2062 = vadd.f32 %v1820, %v1927
        %v2063 = vadd.f32 %v1821, %v1930
        %v2064 = vadd.f32 %v1822, %v1935
        %v2065 = vadd.f32 %v1823, %v1938
        %v2066 = vadd.f32 %v1824, %v1943
        %v2067 = vadd.f32 %v1825, %v1946
        %v2068 = vadd.f32 %v1826, %v1951
        %v2069 = vadd.f32 %v1827, %v1954
        %v2070 = vadd.f32 %v1828, %v1992
        %v2071 = vadd.f32 %v1829, %v1995
        %v2072 = vadd.f32 %v1830, %v2000
        %v2073 = vadd.f32 %v1831, %v2003
        %v2074 = vadd.f32 %v1832, %v2008
        %v2075 = vadd.f32 %v1833, %v2011
        %v2076 = vadd.f32 %v1834, %v2016
        %v2077 = vadd.f32 %v1835, %v2019
        %v2078 = vadd.f32 %v1836, %v2024
        %v2079 = vadd.f32 %v1837, %v2027
        %v2080 = vadd.f32 %v1838, %v2032
        %v2081 = vadd.f32 %v1839, %v2035
        %v2082 = vadd.f32 %v1840, %v2040
        %v2083 = vadd.f32 %v1841, %v2043
        %v2084 = vadd.f32 %v1842, %v2048
        %v2085 = vadd.f32 %v1843, %v2051
        %2086 = vst [vmem:[#allocation5] sm:$0xff] %v2054
        %2087 = vst [vmem:[#allocation5 + $0x8] sm:$0xff] %v2055
        %2088 = vst [vmem:[#allocation5 + $0x10] sm:$0xff] %v2056
        %2089 = vst [vmem:[#allocation5 + $0x18] sm:$0xff] %v2057
        %2090 = vst [vmem:[#allocation5 + $0x20] sm:$0xff] %v2058
        %2091 = vst [vmem:[#allocation5 + $0x28] sm:$0xff] %v2059
        %2092 = vst [vmem:[#allocation5 + $0x30] sm:$0xff] %v2060
        %2093 = vst [vmem:[#allocation5 + $0x38] sm:$0xff] %v2061
        %2094 = vst [vmem:[#allocation5 + $0x40] sm:$0xff] %v2062
        %2095 = vst [vmem:[#allocation5 + $0x48] sm:$0xff] %v2063
        %2096 = vst [vmem:[#allocation5 + $0x50] sm:$0xff] %v2064
        %2097 = vst [vmem:[#allocation5 + $0x58] sm:$0xff] %v2065
        %2098 = vst [vmem:[#allocation5 + $0x60] sm:$0xff] %v2066
        %2099 = vst [vmem:[#allocation5 + $0x68] sm:$0xff] %v2067
        %2100 = vst [vmem:[#allocation5 + $0x70] sm:$0xff] %v2068
        %2101 = vst [vmem:[#allocation5 + $0x78] sm:$0xff] %v2069
        %2102 = vst [vmem:[#allocation5 + $0x80] sm:$0xff] %v2070
        %2103 = vst [vmem:[#allocation5 + $0x88] sm:$0xff] %v2071
        %2104 = vst [vmem:[#allocation5 + $0x90] sm:$0xff] %v2072
        %2105 = vst [vmem:[#allocation5 + $0x98] sm:$0xff] %v2073
        %2106 = vst [vmem:[#allocation5 + $0xa0] sm:$0xff] %v2074
        %2107 = vst [vmem:[#allocation5 + $0xa8] sm:$0xff] %v2075
        %2108 = vst [vmem:[#allocation5 + $0xb0] sm:$0xff] %v2076
        %2109 = vst [vmem:[#allocation5 + $0xb8] sm:$0xff] %v2077
        %2110 = vst [vmem:[#allocation5 + $0xc0] sm:$0xff] %v2078
        %2111 = vst [vmem:[#allocation5 + $0xc8] sm:$0xff] %v2079
        %2112 = vst [vmem:[#allocation5 + $0xd0] sm:$0xff] %v2080
        %2113 = vst [vmem:[#allocation5 + $0xd8] sm:$0xff] %v2081
        %2114 = vst [vmem:[#allocation5 + $0xe0] sm:$0xff] %v2082
        %2115 = vst [vmem:[#allocation5 + $0xe8] sm:$0xff] %v2083
        %2116 = vst [vmem:[#allocation5 + $0xf0] sm:$0xff] %v2084
        %2117 = vst [vmem:[#allocation5 + $0xf8] sm:$0xff] %v2085
        %2118 = vst.msk [vmem:[#allocation3] sm:$0xff] %vm1587, %v1043
        %2119 = vst.msk [vmem:[#allocation3 + $0x8] sm:$0xff] %vm1587, %v1044
        %2120 = vst.msk [vmem:[#allocation3 + $0x10] sm:$0xff] %vm1587, %v1045
        %2121 = vst.msk [vmem:[#allocation3 + $0x18] sm:$0xff] %vm1587, %v1046
        %2122 = vst.msk [vmem:[#allocation3 + $0x20] sm:$0xff] %vm1587, %v1047
        %2123 = vst.msk [vmem:[#allocation3 + $0x28] sm:$0xff] %vm1587, %v1048
        %2124 = vst.msk [vmem:[#allocation3 + $0x30] sm:$0xff] %vm1587, %v1049
        %2125 = vst.msk [vmem:[#allocation3 + $0x38] sm:$0xff] %vm1587, %v1050
        %2126 = vst.msk [vmem:[#allocation3 + $0x40] sm:$0xff] %vm1587, %v1051
        %2127 = vst.msk [vmem:[#allocation3 + $0x48] sm:$0xff] %vm1587, %v1052
        %2128 = vst.msk [vmem:[#allocation3 + $0x50] sm:$0xff] %vm1587, %v1053
        %2129 = vst.msk [vmem:[#allocation3 + $0x58] sm:$0xff] %vm1587, %v1054
        %2130 = vst.msk [vmem:[#allocation3 + $0x60] sm:$0xff] %vm1587, %v1055
        %2131 = vst.msk [vmem:[#allocation3 + $0x68] sm:$0xff] %vm1587, %v1056
        %2132 = vst.msk [vmem:[#allocation3 + $0x70] sm:$0xff] %vm1587, %v1057
        %2133 = vst.msk [vmem:[#allocation3 + $0x78] sm:$0xff] %vm1587, %v1058
        %2134 = vst.msk [vmem:[#allocation3 + $0x80] sm:$0xff] %vm1587, %v1059
        %2135 = vst.msk [vmem:[#allocation3 + $0x88] sm:$0xff] %vm1587, %v1060
        %2136 = vst.msk [vmem:[#allocation3 + $0x90] sm:$0xff] %vm1587, %v1061
        %2137 = vst.msk [vmem:[#allocation3 + $0x98] sm:$0xff] %vm1587, %v1062
        %2138 = vst.msk [vmem:[#allocation3 + $0xa0] sm:$0xff] %vm1587, %v1063
        %2139 = vst.msk [vmem:[#allocation3 + $0xa8] sm:$0xff] %vm1587, %v1064
        %2140 = vst.msk [vmem:[#allocation3 + $0xb0] sm:$0xff] %vm1587, %v1065
        %2141 = vst.msk [vmem:[#allocation3 + $0xb8] sm:$0xff] %vm1587, %v1066
        %2142 = vst.msk [vmem:[#allocation3 + $0xc0] sm:$0xff] %vm1587, %v1067
        %2143 = vst.msk [vmem:[#allocation3 + $0xc8] sm:$0xff] %vm1587, %v1068
        %2144 = vst.msk [vmem:[#allocation3 + $0xd0] sm:$0xff] %vm1587, %v1069
        %2145 = vst.msk [vmem:[#allocation3 + $0xd8] sm:$0xff] %vm1587, %v1070
        %2146 = vst.msk [vmem:[#allocation3 + $0xe0] sm:$0xff] %vm1587, %v1071
        %2147 = vst.msk [vmem:[#allocation3 + $0xe8] sm:$0xff] %vm1587, %v1072
        %2148 = vst.msk [vmem:[#allocation3 + $0xf0] sm:$0xff] %vm1587, %v1073
        %2149 = vst.msk [vmem:[#allocation3 + $0xf8] sm:$0xff] %vm1587, %v1074
        %p2150 = scmp.eq.s32.totalorder %s27, 1
        // Predicated region
        $region91: #{tpu_custom_call.1} parent=73 // pred_check
          %p2151 = pneg %p2150
        $region92: #{tpu_custom_call.1} parent=73 // pred_check_branch
          %2153 = sbr.rel (%p2151) target = $region94
        $region93: #{tpu_custom_call.1} parent=73 // pred_region
          %v2154 = vld [vmem:[#allocation6] sm:$0xff]
          %v2155 = vld [vmem:[#allocation6 + $0x8] sm:$0xff]
          %v2156 = vld [vmem:[#allocation6 + $0x10] sm:$0xff]
          %v2157 = vld [vmem:[#allocation6 + $0x18] sm:$0xff]
          %v2158 = vld [vmem:[#allocation6 + $0x20] sm:$0xff]
          %v2159 = vld [vmem:[#allocation6 + $0x28] sm:$0xff]
          %v2160 = vld [vmem:[#allocation6 + $0x30] sm:$0xff]
          %v2161 = vld [vmem:[#allocation6 + $0x38] sm:$0xff]
          %v2162 = vld [vmem:[#allocation6 + $0x40] sm:$0xff]
          %v2163 = vld [vmem:[#allocation6 + $0x48] sm:$0xff]
          %v2164 = vld [vmem:[#allocation6 + $0x50] sm:$0xff]
          %v2165 = vld [vmem:[#allocation6 + $0x58] sm:$0xff]
          %v2166 = vld [vmem:[#allocation6 + $0x60] sm:$0xff]
          %v2167 = vld [vmem:[#allocation6 + $0x68] sm:$0xff]
          %v2168 = vld [vmem:[#allocation6 + $0x70] sm:$0xff]
          %v2169 = vld [vmem:[#allocation6 + $0x78] sm:$0xff]
          %v2170 = vld [vmem:[#allocation6 + $0x80] sm:$0xff]
          %v2171 = vld [vmem:[#allocation6 + $0x88] sm:$0xff]
          %v2172 = vld [vmem:[#allocation6 + $0x90] sm:$0xff]
          %v2173 = vld [vmem:[#allocation6 + $0x98] sm:$0xff]
          %v2174 = vld [vmem:[#allocation6 + $0xa0] sm:$0xff]
          %v2175 = vld [vmem:[#allocation6 + $0xa8] sm:$0xff]
          %v2176 = vld [vmem:[#allocation6 + $0xb0] sm:$0xff]
          %v2177 = vld [vmem:[#allocation6 + $0xb8] sm:$0xff]
          %v2178 = vld [vmem:[#allocation6 + $0xc0] sm:$0xff]
          %v2179 = vld [vmem:[#allocation6 + $0xc8] sm:$0xff]
          %v2180 = vld [vmem:[#allocation6 + $0xd0] sm:$0xff]
          %v2181 = vld [vmem:[#allocation6 + $0xd8] sm:$0xff]
          %v2182 = vld [vmem:[#allocation6 + $0xe0] sm:$0xff]
          %v2183 = vld [vmem:[#allocation6 + $0xe8] sm:$0xff]
          %v2184 = vld [vmem:[#allocation6 + $0xf0] sm:$0xff]
          %v2185 = vld [vmem:[#allocation6 + $0xf8] sm:$0xff]
          %v2186 = vld [vmem:[%s3] sm:$0x1]
          %v2187 = vld [vmem:[#allocation5] sm:$0xff]
          %v2188 = vld [vmem:[#allocation5 + $0x8] sm:$0xff]
          %v2189 = vld [vmem:[#allocation5 + $0x10] sm:$0xff]
          %v2190 = vld [vmem:[#allocation5 + $0x18] sm:$0xff]
          %v2191 = vld [vmem:[#allocation5 + $0x20] sm:$0xff]
          %v2192 = vld [vmem:[#allocation5 + $0x28] sm:$0xff]
          %v2193 = vld [vmem:[#allocation5 + $0x30] sm:$0xff]
          %v2194 = vld [vmem:[#allocation5 + $0x38] sm:$0xff]
          %v2195 = vld [vmem:[#allocation5 + $0x40] sm:$0xff]
          %v2196 = vld [vmem:[#allocation5 + $0x48] sm:$0xff]
          %v2197 = vld [vmem:[#allocation5 + $0x50] sm:$0xff]
          %v2198 = vld [vmem:[#allocation5 + $0x58] sm:$0xff]
          %v2199 = vld [vmem:[#allocation5 + $0x60] sm:$0xff]
          %v2200 = vld [vmem:[#allocation5 + $0x68] sm:$0xff]
          %v2201 = vld [vmem:[#allocation5 + $0x70] sm:$0xff]
          %v2202 = vld [vmem:[#allocation5 + $0x78] sm:$0xff]
          %v2203 = vld [vmem:[#allocation5 + $0x80] sm:$0xff]
          %v2204 = vld [vmem:[#allocation5 + $0x88] sm:$0xff]
          %v2205 = vld [vmem:[#allocation5 + $0x90] sm:$0xff]
          %v2206 = vld [vmem:[#allocation5 + $0x98] sm:$0xff]
          %v2207 = vld [vmem:[#allocation5 + $0xa0] sm:$0xff]
          %v2208 = vld [vmem:[#allocation5 + $0xa8] sm:$0xff]
          %v2209 = vld [vmem:[#allocation5 + $0xb0] sm:$0xff]
          %v2210 = vld [vmem:[#allocation5 + $0xb8] sm:$0xff]
          %v2211 = vld [vmem:[#allocation5 + $0xc0] sm:$0xff]
          %v2212 = vld [vmem:[#allocation5 + $0xc8] sm:$0xff]
          %v2213 = vld [vmem:[#allocation5 + $0xd0] sm:$0xff]
          %v2214 = vld [vmem:[#allocation5 + $0xd8] sm:$0xff]
          %v2215 = vld [vmem:[#allocation5 + $0xe0] sm:$0xff]
          %v2216 = vld [vmem:[#allocation5 + $0xe8] sm:$0xff]
          %v2217 = vld [vmem:[#allocation5 + $0xf0] sm:$0xff]
          %v2218 = vld [vmem:[#allocation5 + $0xf8] sm:$0xff]
          %v2219 = vld [vmem:[#allocation4] sm:$0xff]
          %v2220 = vld [vmem:[#allocation4 + $0x8] sm:$0xff]
          %v2221 = vld [vmem:[#allocation4 + $0x10] sm:$0xff]
          %v2222 = vld [vmem:[#allocation4 + $0x18] sm:$0xff]
          %v2223 = vld [vmem:[#allocation4 + $0x20] sm:$0xff]
          %v2224 = vld [vmem:[#allocation4 + $0x28] sm:$0xff]
          %v2225 = vld [vmem:[#allocation4 + $0x30] sm:$0xff]
          %v2226 = vld [vmem:[#allocation4 + $0x38] sm:$0xff]
          %v2227 = vld [vmem:[#allocation4 + $0x40] sm:$0xff]
          %v2228 = vld [vmem:[#allocation4 + $0x48] sm:$0xff]
          %v2229 = vld [vmem:[#allocation4 + $0x50] sm:$0xff]
          %v2230 = vld [vmem:[#allocation4 + $0x58] sm:$0xff]
          %v2231 = vld [vmem:[#allocation4 + $0x60] sm:$0xff]
          %v2232 = vld [vmem:[#allocation4 + $0x68] sm:$0xff]
          %v2233 = vld [vmem:[#allocation4 + $0x70] sm:$0xff]
          %v2234 = vld [vmem:[#allocation4 + $0x78] sm:$0xff]
          %v2235 = vld [vmem:[#allocation4 + $0x80] sm:$0xff]
          %v2236 = vld [vmem:[#allocation4 + $0x88] sm:$0xff]
          %v2237 = vld [vmem:[#allocation4 + $0x90] sm:$0xff]
          %v2238 = vld [vmem:[#allocation4 + $0x98] sm:$0xff]
          %v2239 = vld [vmem:[#allocation4 + $0xa0] sm:$0xff]
          %v2240 = vld [vmem:[#allocation4 + $0xa8] sm:$0xff]
          %v2241 = vld [vmem:[#allocation4 + $0xb0] sm:$0xff]
          %v2242 = vld [vmem:[#allocation4 + $0xb8] sm:$0xff]
          %v2243 = vld [vmem:[#allocation4 + $0xc0] sm:$0xff]
          %v2244 = vld [vmem:[#allocation4 + $0xc8] sm:$0xff]
          %v2245 = vld [vmem:[#allocation4 + $0xd0] sm:$0xff]
          %v2246 = vld [vmem:[#allocation4 + $0xd8] sm:$0xff]
          %v2247 = vld [vmem:[#allocation4 + $0xe0] sm:$0xff]
          %v2248 = vld [vmem:[#allocation4 + $0xe8] sm:$0xff]
          %v2249 = vld [vmem:[#allocation4 + $0xf0] sm:$0xff]
          %v2250 = vld [vmem:[#allocation4 + $0xf8] sm:$0xff]
          %v2251 = vrcp.pop %v2219
          %v2252 = vrcp.pop %v2220
          %v2253 = vrcp.pop %v2221
          %v2254 = vrcp.pop %v2222
          %v2255 = vrcp.pop %v2223
          %v2256 = vrcp.pop %v2224
          %v2257 = vrcp.pop %v2225
          %v2258 = vrcp.pop %v2226
          %v2259 = vrcp.pop %v2227
          %v2260 = vrcp.pop %v2228
          %v2261 = vrcp.pop %v2229
          %v2262 = vrcp.pop %v2230
          %v2263 = vrcp.pop %v2231
          %v2264 = vrcp.pop %v2232
          %v2265 = vrcp.pop %v2233
          %v2266 = vrcp.pop %v2234
          %v2267 = vrcp.pop %v2235
          %v2268 = vrcp.pop %v2236
          %v2269 = vrcp.pop %v2237
          %v2270 = vrcp.pop %v2238
          %v2271 = vrcp.pop %v2239
          %v2272 = vrcp.pop %v2240
          %v2273 = vrcp.pop %v2241
          %v2274 = vrcp.pop %v2242
          %v2275 = vrcp.pop %v2243
          %v2276 = vrcp.pop %v2244
          %v2277 = vrcp.pop %v2245
          %v2278 = vrcp.pop %v2246
          %v2279 = vrcp.pop %v2247
          %v2280 = vrcp.pop %v2248
          %v2281 = vrcp.pop %v2249
          %v2282 = vrcp.pop %v2250
          %v2283 = vmul.f32 %v2219, %v2251
          %v2284 = vmul.f32 %v2220, %v2252
          %v2285 = vmul.f32 %v2221, %v2253
          %v2286 = vmul.f32 %v2222, %v2254
          %v2287 = vmul.f32 %v2223, %v2255
          %v2288 = vmul.f32 %v2224, %v2256
          %v2289 = vmul.f32 %v2225, %v2257
          %v2290 = vmul.f32 %v2226, %v2258
          %v2291 = vmul.f32 %v2227, %v2259
          %v2292 = vmul.f32 %v2228, %v2260
          %v2293 = vmul.f32 %v2229, %v2261
          %v2294 = vmul.f32 %v2230, %v2262
          %v2295 = vmul.f32 %v2231, %v2263
          %v2296 = vmul.f32 %v2232, %v2264
          %v2297 = vmul.f32 %v2233, %v2265
          %v2298 = vmul.f32 %v2234, %v2266
          %v2299 = vmul.f32 %v2235, %v2267
          %v2300 = vmul.f32 %v2236, %v2268
          %v2301 = vmul.f32 %v2237, %v2269
          %v2302 = vmul.f32 %v2238, %v2270
          %v2303 = vmul.f32 %v2239, %v2271
          %v2304 = vmul.f32 %v2240, %v2272
          %v2305 = vmul.f32 %v2241, %v2273
          %v2306 = vmul.f32 %v2242, %v2274
          %v2307 = vmul.f32 %v2243, %v2275
          %v2308 = vmul.f32 %v2244, %v2276
          %v2309 = vmul.f32 %v2245, %v2277
          %v2310 = vmul.f32 %v2246, %v2278
          %v2311 = vmul.f32 %v2247, %v2279
          %v2312 = vmul.f32 %v2248, %v2280
          %v2313 = vmul.f32 %v2249, %v2281
          %v2314 = vmul.f32 %v2250, %v2282
          %v2315 = vsub.f32 2.0, %v2283
          %v2316 = vsub.f32 2.0, %v2284
          %v2317 = vsub.f32 2.0, %v2285
          %v2318 = vsub.f32 2.0, %v2286
          %v2319 = vsub.f32 2.0, %v2287
          %v2320 = vsub.f32 2.0, %v2288
          %v2321 = vsub.f32 2.0, %v2289
          %v2322 = vsub.f32 2.0, %v2290
          %v2323 = vsub.f32 2.0, %v2291
          %v2324 = vsub.f32 2.0, %v2292
          %v2325 = vsub.f32 2.0, %v2293
          %v2326 = vsub.f32 2.0, %v2294
          %v2327 = vsub.f32 2.0, %v2295
          %v2328 = vsub.f32 2.0, %v2296
          %v2329 = vsub.f32 2.0, %v2297
          %v2330 = vsub.f32 2.0, %v2298
          %v2331 = vsub.f32 2.0, %v2299
          %v2332 = vsub.f32 2.0, %v2300
          %v2333 = vsub.f32 2.0, %v2301
          %v2334 = vsub.f32 2.0, %v2302
          %v2335 = vsub.f32 2.0, %v2303
          %v2336 = vsub.f32 2.0, %v2304
          %v2337 = vsub.f32 2.0, %v2305
          %v2338 = vsub.f32 2.0, %v2306
          %v2339 = vsub.f32 2.0, %v2307
          %v2340 = vsub.f32 2.0, %v2308
          %v2341 = vsub.f32 2.0, %v2309
          %v2342 = vsub.f32 2.0, %v2310
          %v2343 = vsub.f32 2.0, %v2311
          %v2344 = vsub.f32 2.0, %v2312
          %v2345 = vsub.f32 2.0, %v2313
          %v2346 = vsub.f32 2.0, %v2314
          %v2347 = vmul.f32 %v2251, %v2315
          %v2348 = vmul.f32 %v2252, %v2316
          %v2349 = vmul.f32 %v2253, %v2317
          %v2350 = vmul.f32 %v2254, %v2318
          %v2351 = vmul.f32 %v2255, %v2319
          %v2352 = vmul.f32 %v2256, %v2320
          %v2353 = vmul.f32 %v2257, %v2321
          %v2354 = vmul.f32 %v2258, %v2322
          %v2355 = vmul.f32 %v2259, %v2323
          %v2356 = vmul.f32 %v2260, %v2324
          %v2357 = vmul.f32 %v2261, %v2325
          %v2358 = vmul.f32 %v2262, %v2326
          %v2359 = vmul.f32 %v2263, %v2327
          %v2360 = vmul.f32 %v2264, %v2328
          %v2361 = vmul.f32 %v2265, %v2329
          %v2362 = vmul.f32 %v2266, %v2330
          %v2363 = vmul.f32 %v2267, %v2331
          %v2364 = vmul.f32 %v2268, %v2332
          %v2365 = vmul.f32 %v2269, %v2333
          %v2366 = vmul.f32 %v2270, %v2334
          %v2367 = vmul.f32 %v2271, %v2335
          %v2368 = vmul.f32 %v2272, %v2336
          %v2369 = vmul.f32 %v2273, %v2337
          %v2370 = vmul.f32 %v2274, %v2338
          %v2371 = vmul.f32 %v2275, %v2339
          %v2372 = vmul.f32 %v2276, %v2340
          %v2373 = vmul.f32 %v2277, %v2341
          %v2374 = vmul.f32 %v2278, %v2342
          %v2375 = vmul.f32 %v2279, %v2343
          %v2376 = vmul.f32 %v2280, %v2344
          %v2377 = vmul.f32 %v2281, %v2345
          %v2378 = vmul.f32 %v2282, %v2346
          %2380 = vset.pattern.permute.xlu0 0
          %2381 = vperm.xlu0 %2380, %v2347
          %v2382 = vpop.permute.xlu0 %2381
          %2385 = vset.pattern.permute.xlu0 0
          %2386 = vperm.xlu0 %2385, %v2348
          %v2387 = vpop.permute.xlu0 %2386
          %2390 = vset.pattern.permute.xlu0 0
          %2391 = vperm.xlu0 %2390, %v2349
          %v2392 = vpop.permute.xlu0 %2391
          %2395 = vset.pattern.permute.xlu0 0
          %2396 = vperm.xlu0 %2395, %v2350
          %v2397 = vpop.permute.xlu0 %2396
          %2400 = vset.pattern.permute.xlu0 0
          %2401 = vperm.xlu0 %2400, %v2351
          %v2402 = vpop.permute.xlu0 %2401
          %2405 = vset.pattern.permute.xlu0 0
          %2406 = vperm.xlu0 %2405, %v2352
          %v2407 = vpop.permute.xlu0 %2406
          %2410 = vset.pattern.permute.xlu0 0
          %2411 = vperm.xlu0 %2410, %v2353
          %v2412 = vpop.permute.xlu0 %2411
          %2415 = vset.pattern.permute.xlu0 0
          %2416 = vperm.xlu0 %2415, %v2354
          %v2417 = vpop.permute.xlu0 %2416
          %2420 = vset.pattern.permute.xlu0 0
          %2421 = vperm.xlu0 %2420, %v2355
          %v2422 = vpop.permute.xlu0 %2421
          %2425 = vset.pattern.permute.xlu0 0
          %2426 = vperm.xlu0 %2425, %v2356
          %v2427 = vpop.permute.xlu0 %2426
          %2430 = vset.pattern.permute.xlu0 0
          %2431 = vperm.xlu0 %2430, %v2357
          %v2432 = vpop.permute.xlu0 %2431
          %2435 = vset.pattern.permute.xlu0 0
          %2436 = vperm.xlu0 %2435, %v2358
          %v2437 = vpop.permute.xlu0 %2436
          %2440 = vset.pattern.permute.xlu0 0
          %2441 = vperm.xlu0 %2440, %v2359
          %v2442 = vpop.permute.xlu0 %2441
          %2445 = vset.pattern.permute.xlu0 0
          %2446 = vperm.xlu0 %2445, %v2360
          %v2447 = vpop.permute.xlu0 %2446
          %2450 = vset.pattern.permute.xlu0 0
          %2451 = vperm.xlu0 %2450, %v2361
          %v2452 = vpop.permute.xlu0 %2451
          %2455 = vset.pattern.permute.xlu0 0
          %2456 = vperm.xlu0 %2455, %v2362
          %v2457 = vpop.permute.xlu0 %2456
          %2460 = vset.pattern.permute.xlu0 0
          %2461 = vperm.xlu0 %2460, %v2363
          %v2462 = vpop.permute.xlu0 %2461
          %2465 = vset.pattern.permute.xlu0 0
          %2466 = vperm.xlu0 %2465, %v2364
          %v2467 = vpop.permute.xlu0 %2466
          %2470 = vset.pattern.permute.xlu0 0
          %2471 = vperm.xlu0 %2470, %v2365
          %v2472 = vpop.permute.xlu0 %2471
          %2475 = vset.pattern.permute.xlu0 0
          %2476 = vperm.xlu0 %2475, %v2366
          %v2477 = vpop.permute.xlu0 %2476
          %2480 = vset.pattern.permute.xlu0 0
          %2481 = vperm.xlu0 %2480, %v2367
          %v2482 = vpop.permute.xlu0 %2481
          %2485 = vset.pattern.permute.xlu0 0
          %2486 = vperm.xlu0 %2485, %v2368
          %v2487 = vpop.permute.xlu0 %2486
          %2490 = vset.pattern.permute.xlu0 0
          %2491 = vperm.xlu0 %2490, %v2369
          %v2492 = vpop.permute.xlu0 %2491
          %2495 = vset.pattern.permute.xlu0 0
          %2496 = vperm.xlu0 %2495, %v2370
          %v2497 = vpop.permute.xlu0 %2496
          %2500 = vset.pattern.permute.xlu0 0
          %2501 = vperm.xlu0 %2500, %v2371
          %v2502 = vpop.permute.xlu0 %2501
          %2505 = vset.pattern.permute.xlu0 0
          %2506 = vperm.xlu0 %2505, %v2372
          %v2507 = vpop.permute.xlu0 %2506
          %2510 = vset.pattern.permute.xlu0 0
          %2511 = vperm.xlu0 %2510, %v2373
          %v2512 = vpop.permute.xlu0 %2511
          %2515 = vset.pattern.permute.xlu0 0
          %2516 = vperm.xlu0 %2515, %v2374
          %v2517 = vpop.permute.xlu0 %2516
          %2520 = vset.pattern.permute.xlu0 0
          %2521 = vperm.xlu0 %2520, %v2375
          %v2522 = vpop.permute.xlu0 %2521
          %2525 = vset.pattern.permute.xlu0 0
          %2526 = vperm.xlu0 %2525, %v2376
          %v2527 = vpop.permute.xlu0 %2526
          %2530 = vset.pattern.permute.xlu0 0
          %2531 = vperm.xlu0 %2530, %v2377
          %v2532 = vpop.permute.xlu0 %2531
          %2535 = vset.pattern.permute.xlu0 0
          %2536 = vperm.xlu0 %2535, %v2378
          %v2537 = vpop.permute.xlu0 %2536
          %v2539 = vmul.f32 %v2187, %v2382
          %v2540 = vmul.f32 %v2188, %v2387
          %v2541 = vmul.f32 %v2189, %v2392
          %v2542 = vmul.f32 %v2190, %v2397
          %v2543 = vmul.f32 %v2191, %v2402
          %v2544 = vmul.f32 %v2192, %v2407
          %v2545 = vmul.f32 %v2193, %v2412
          %v2546 = vmul.f32 %v2194, %v2417
          %v2547 = vmul.f32 %v2195, %v2422
          %v2548 = vmul.f32 %v2196, %v2427
          %v2549 = vmul.f32 %v2197, %v2432
          %v2550 = vmul.f32 %v2198, %v2437
          %v2551 = vmul.f32 %v2199, %v2442
          %v2552 = vmul.f32 %v2200, %v2447
          %v2553 = vmul.f32 %v2201, %v2452
          %v2554 = vmul.f32 %v2202, %v2457
          %v2555 = vmul.f32 %v2203, %v2462
          %v2556 = vmul.f32 %v2204, %v2467
          %v2557 = vmul.f32 %v2205, %v2472
          %v2558 = vmul.f32 %v2206, %v2477
          %v2559 = vmul.f32 %v2207, %v2482
          %v2560 = vmul.f32 %v2208, %v2487
          %v2561 = vmul.f32 %v2209, %v2492
          %v2562 = vmul.f32 %v2210, %v2497
          %v2563 = vmul.f32 %v2211, %v2502
          %v2564 = vmul.f32 %v2212, %v2507
          %v2565 = vmul.f32 %v2213, %v2512
          %v2566 = vmul.f32 %v2214, %v2517
          %v2567 = vmul.f32 %v2215, %v2522
          %v2568 = vmul.f32 %v2216, %v2527
          %v2569 = vmul.f32 %v2217, %v2532
          %v2570 = vmul.f32 %v2218, %v2537
          %v2572 = vlaneseq
          %v2573 = vshrl.u32 %v2572, 7
          %v2574 = vsub.s32 0, %v2573
          %v2575 = vrot.slane %v2186, %v2574
          %v2577 = vmul.f32 %v2154, %v2575
          %v2578 = vmul.f32 %v2155, %v2575
          %v2579 = vmul.f32 %v2156, %v2575
          %v2580 = vmul.f32 %v2157, %v2575
          %v2581 = vmul.f32 %v2158, %v2575
          %v2582 = vmul.f32 %v2159, %v2575
          %v2583 = vmul.f32 %v2160, %v2575
          %v2584 = vmul.f32 %v2161, %v2575
          %v2585 = vmul.f32 %v2162, %v2575
          %v2586 = vmul.f32 %v2163, %v2575
          %v2587 = vmul.f32 %v2164, %v2575
          %v2588 = vmul.f32 %v2165, %v2575
          %v2589 = vmul.f32 %v2166, %v2575
          %v2590 = vmul.f32 %v2167, %v2575
          %v2591 = vmul.f32 %v2168, %v2575
          %v2592 = vmul.f32 %v2169, %v2575
          %v2593 = vmul.f32 %v2170, %v2575
          %v2594 = vmul.f32 %v2171, %v2575
          %v2595 = vmul.f32 %v2172, %v2575
          %v2596 = vmul.f32 %v2173, %v2575
          %v2597 = vmul.f32 %v2174, %v2575
          %v2598 = vmul.f32 %v2175, %v2575
          %v2599 = vmul.f32 %v2176, %v2575
          %v2600 = vmul.f32 %v2177, %v2575
          %v2601 = vmul.f32 %v2178, %v2575
          %v2602 = vmul.f32 %v2179, %v2575
          %v2603 = vmul.f32 %v2180, %v2575
          %v2604 = vmul.f32 %v2181, %v2575
          %v2605 = vmul.f32 %v2182, %v2575
          %v2606 = vmul.f32 %v2183, %v2575
          %v2607 = vmul.f32 %v2184, %v2575
          %v2608 = vmul.f32 %v2185, %v2575
          %2609 = vadd.xlane.f32.xlu0 %v2577
          %v2610 = vpop.xlane.xlu0 %2609
          %2611 = vadd.xlane.f32.xlu0 %v2578
          %v2612 = vpop.xlane.xlu0 %2611
          %2613 = vadd.xlane.f32.xlu0 %v2579
          %v2614 = vpop.xlane.xlu0 %2613
          %2615 = vadd.xlane.f32.xlu0 %v2580
          %v2616 = vpop.xlane.xlu0 %2615
          %2617 = vadd.xlane.f32.xlu0 %v2581
          %v2618 = vpop.xlane.xlu0 %2617
          %2619 = vadd.xlane.f32.xlu0 %v2582
          %v2620 = vpop.xlane.xlu0 %2619
          %2621 = vadd.xlane.f32.xlu0 %v2583
          %v2622 = vpop.xlane.xlu0 %2621
          %2623 = vadd.xlane.f32.xlu0 %v2584
          %v2624 = vpop.xlane.xlu0 %2623
          %2625 = vadd.xlane.f32.xlu0 %v2585
          %v2626 = vpop.xlane.xlu0 %2625
          %2627 = vadd.xlane.f32.xlu0 %v2586
          %v2628 = vpop.xlane.xlu0 %2627
          %2629 = vadd.xlane.f32.xlu0 %v2587
          %v2630 = vpop.xlane.xlu0 %2629
          %2631 = vadd.xlane.f32.xlu0 %v2588
          %v2632 = vpop.xlane.xlu0 %2631
          %2633 = vadd.xlane.f32.xlu0 %v2589
          %v2634 = vpop.xlane.xlu0 %2633
          %2635 = vadd.xlane.f32.xlu0 %v2590
          %v2636 = vpop.xlane.xlu0 %2635
          %2637 = vadd.xlane.f32.xlu0 %v2591
          %v2638 = vpop.xlane.xlu0 %2637
          %2639 = vadd.xlane.f32.xlu0 %v2592
          %v2640 = vpop.xlane.xlu0 %2639
          %2641 = vadd.xlane.f32.xlu0 %v2593
          %v2642 = vpop.xlane.xlu0 %2641
          %2643 = vadd.xlane.f32.xlu0 %v2594
          %v2644 = vpop.xlane.xlu0 %2643
          %2645 = vadd.xlane.f32.xlu0 %v2595
          %v2646 = vpop.xlane.xlu0 %2645
          %2647 = vadd.xlane.f32.xlu0 %v2596
          %v2648 = vpop.xlane.xlu0 %2647
          %2649 = vadd.xlane.f32.xlu0 %v2597
          %v2650 = vpop.xlane.xlu0 %2649
          %2651 = vadd.xlane.f32.xlu0 %v2598
          %v2652 = vpop.xlane.xlu0 %2651
          %2653 = vadd.xlane.f32.xlu0 %v2599
          %v2654 = vpop.xlane.xlu0 %2653
          %2655 = vadd.xlane.f32.xlu0 %v2600
          %v2656 = vpop.xlane.xlu0 %2655
          %2657 = vadd.xlane.f32.xlu0 %v2601
          %v2658 = vpop.xlane.xlu0 %2657
          %2659 = vadd.xlane.f32.xlu0 %v2602
          %v2660 = vpop.xlane.xlu0 %2659
          %2661 = vadd.xlane.f32.xlu0 %v2603
          %v2662 = vpop.xlane.xlu0 %2661
          %2663 = vadd.xlane.f32.xlu0 %v2604
          %v2664 = vpop.xlane.xlu0 %2663
          %2665 = vadd.xlane.f32.xlu0 %v2605
          %v2666 = vpop.xlane.xlu0 %2665
          %2667 = vadd.xlane.f32.xlu0 %v2606
          %v2668 = vpop.xlane.xlu0 %2667
          %2669 = vadd.xlane.f32.xlu0 %v2607
          %v2670 = vpop.xlane.xlu0 %2669
          %2671 = vadd.xlane.f32.xlu0 %v2608
          %v2672 = vpop.xlane.xlu0 %2671
          %v2673 = vld [vmem:[#allocation3] sm:$0xff]
          %v2674 = vld [vmem:[#allocation3 + $0x8] sm:$0xff]
          %v2675 = vld [vmem:[#allocation3 + $0x10] sm:$0xff]
          %v2676 = vld [vmem:[#allocation3 + $0x18] sm:$0xff]
          %v2677 = vld [vmem:[#allocation3 + $0x20] sm:$0xff]
          %v2678 = vld [vmem:[#allocation3 + $0x28] sm:$0xff]
          %v2679 = vld [vmem:[#allocation3 + $0x30] sm:$0xff]
          %v2680 = vld [vmem:[#allocation3 + $0x38] sm:$0xff]
          %v2681 = vld [vmem:[#allocation3 + $0x40] sm:$0xff]
          %v2682 = vld [vmem:[#allocation3 + $0x48] sm:$0xff]
          %v2683 = vld [vmem:[#allocation3 + $0x50] sm:$0xff]
          %v2684 = vld [vmem:[#allocation3 + $0x58] sm:$0xff]
          %v2685 = vld [vmem:[#allocation3 + $0x60] sm:$0xff]
          %v2686 = vld [vmem:[#allocation3 + $0x68] sm:$0xff]
          %v2687 = vld [vmem:[#allocation3 + $0x70] sm:$0xff]
          %v2688 = vld [vmem:[#allocation3 + $0x78] sm:$0xff]
          %v2689 = vld [vmem:[#allocation3 + $0x80] sm:$0xff]
          %v2690 = vld [vmem:[#allocation3 + $0x88] sm:$0xff]
          %v2691 = vld [vmem:[#allocation3 + $0x90] sm:$0xff]
          %v2692 = vld [vmem:[#allocation3 + $0x98] sm:$0xff]
          %v2693 = vld [vmem:[#allocation3 + $0xa0] sm:$0xff]
          %v2694 = vld [vmem:[#allocation3 + $0xa8] sm:$0xff]
          %v2695 = vld [vmem:[#allocation3 + $0xb0] sm:$0xff]
          %v2696 = vld [vmem:[#allocation3 + $0xb8] sm:$0xff]
          %v2697 = vld [vmem:[#allocation3 + $0xc0] sm:$0xff]
          %v2698 = vld [vmem:[#allocation3 + $0xc8] sm:$0xff]
          %v2699 = vld [vmem:[#allocation3 + $0xd0] sm:$0xff]
          %v2700 = vld [vmem:[#allocation3 + $0xd8] sm:$0xff]
          %v2701 = vld [vmem:[#allocation3 + $0xe0] sm:$0xff]
          %v2702 = vld [vmem:[#allocation3 + $0xe8] sm:$0xff]
          %v2703 = vld [vmem:[#allocation3 + $0xf0] sm:$0xff]
          %v2704 = vld [vmem:[#allocation3 + $0xf8] sm:$0xff]
          %v2705 = vadd.f32 %v2673, %v2610
          %v2706 = vadd.f32 %v2674, %v2612
          %v2707 = vadd.f32 %v2675, %v2614
          %v2708 = vadd.f32 %v2676, %v2616
          %v2709 = vadd.f32 %v2677, %v2618
          %v2710 = vadd.f32 %v2678, %v2620
          %v2711 = vadd.f32 %v2679, %v2622
          %v2712 = vadd.f32 %v2680, %v2624
          %v2713 = vadd.f32 %v2681, %v2626
          %v2714 = vadd.f32 %v2682, %v2628
          %v2715 = vadd.f32 %v2683, %v2630
          %v2716 = vadd.f32 %v2684, %v2632
          %v2717 = vadd.f32 %v2685, %v2634
          %v2718 = vadd.f32 %v2686, %v2636
          %v2719 = vadd.f32 %v2687, %v2638
          %v2720 = vadd.f32 %v2688, %v2640
          %v2721 = vadd.f32 %v2689, %v2642
          %v2722 = vadd.f32 %v2690, %v2644
          %v2723 = vadd.f32 %v2691, %v2646
          %v2724 = vadd.f32 %v2692, %v2648
          %v2725 = vadd.f32 %v2693, %v2650
          %v2726 = vadd.f32 %v2694, %v2652
          %v2727 = vadd.f32 %v2695, %v2654
          %v2728 = vadd.f32 %v2696, %v2656
          %v2729 = vadd.f32 %v2697, %v2658
          %v2730 = vadd.f32 %v2698, %v2660
          %v2731 = vadd.f32 %v2699, %v2662
          %v2732 = vadd.f32 %v2700, %v2664
          %v2733 = vadd.f32 %v2701, %v2666
          %v2734 = vadd.f32 %v2702, %v2668
          %v2735 = vadd.f32 %v2703, %v2670
          %v2736 = vadd.f32 %v2704, %v2672
          %v2737 = vsel %vm1587, %v2705, -inf
          %v2738 = vsel %vm1587, %v2706, -inf
          %v2739 = vsel %vm1587, %v2707, -inf
          %v2740 = vmax.f32 %v2737, %v2739
          %v2741 = vsel %vm1587, %v2708, -inf
          %v2742 = vmax.f32 %v2738, %v2741
          %v2743 = vsel %vm1587, %v2709, -inf
          %v2744 = vmax.f32 %v2740, %v2743
          %v2745 = vsel %vm1587, %v2710, -inf
          %v2746 = vmax.f32 %v2742, %v2745
          %v2747 = vsel %vm1587, %v2711, -inf
          %v2748 = vmax.f32 %v2744, %v2747
          %v2749 = vsel %vm1587, %v2712, -inf
          %v2750 = vmax.f32 %v2746, %v2749
          %v2751 = vsel %vm1587, %v2713, -inf
          %v2752 = vmax.f32 %v2748, %v2751
          %v2753 = vsel %vm1587, %v2714, -inf
          %v2754 = vmax.f32 %v2750, %v2753
          %v2755 = vsel %vm1587, %v2715, -inf
          %v2756 = vmax.f32 %v2752, %v2755
          %v2757 = vsel %vm1587, %v2716, -inf
          %v2758 = vmax.f32 %v2754, %v2757
          %v2759 = vsel %vm1587, %v2717, -inf
          %v2760 = vmax.f32 %v2756, %v2759
          %v2761 = vsel %vm1587, %v2718, -inf
          %v2762 = vmax.f32 %v2758, %v2761
          %v2763 = vsel %vm1587, %v2719, -inf
          %v2764 = vmax.f32 %v2760, %v2763
          %v2765 = vsel %vm1587, %v2720, -inf
          %v2766 = vmax.f32 %v2762, %v2765
          %v2767 = vmax.f32 %v2764, %v2766
          %v2768 = vrot.slane %v2767, 4
          %v2769 = vmax.f32 %v2767, %v2768
          %v2770 = vrot.slane %v2769, 2
          %v2771 = vmax.f32 %v2769, %v2770
          %v2772 = vrot.slane %v2771, 1
          %v2773 = vmax.f32 %v2771, %v2772
          %v2774 = vsel %vm1587, %v2721, -inf
          %v2775 = vsel %vm1587, %v2722, -inf
          %v2776 = vsel %vm1587, %v2723, -inf
          %v2777 = vmax.f32 %v2774, %v2776
          %v2778 = vsel %vm1587, %v2724, -inf
          %v2779 = vmax.f32 %v2775, %v2778
          %v2780 = vsel %vm1587, %v2725, -inf
          %v2781 = vmax.f32 %v2777, %v2780
          %v2782 = vsel %vm1587, %v2726, -inf
          %v2783 = vmax.f32 %v2779, %v2782
          %v2784 = vsel %vm1587, %v2727, -inf
          %v2785 = vmax.f32 %v2781, %v2784
          %v2786 = vsel %vm1587, %v2728, -inf
          %v2787 = vmax.f32 %v2783, %v2786
          %v2788 = vsel %vm1587, %v2729, -inf
          %v2789 = vmax.f32 %v2785, %v2788
          %v2790 = vsel %vm1587, %v2730, -inf
          %v2791 = vmax.f32 %v2787, %v2790
          %v2792 = vsel %vm1587, %v2731, -inf
          %v2793 = vmax.f32 %v2789, %v2792
          %v2794 = vsel %vm1587, %v2732, -inf
          %v2795 = vmax.f32 %v2791, %v2794
          %v2796 = vsel %vm1587, %v2733, -inf
          %v2797 = vmax.f32 %v2793, %v2796
          %v2798 = vsel %vm1587, %v2734, -inf
          %v2799 = vmax.f32 %v2795, %v2798
          %v2800 = vsel %vm1587, %v2735, -inf
          %v2801 = vmax.f32 %v2797, %v2800
          %v2802 = vsel %vm1587, %v2736, -inf
          %v2803 = vmax.f32 %v2799, %v2802
          %v2804 = vmax.f32 %v2801, %v2803
          %v2805 = vrot.slane %v2804, 4
          %v2806 = vmax.f32 %v2804, %v2805
          %v2807 = vrot.slane %v2806, 2
          %v2808 = vmax.f32 %v2806, %v2807
          %v2809 = vrot.slane %v2808, 1
          %v2810 = vmax.f32 %v2808, %v2809
          %v2811 = vsub.f32 %v2705, %v2773
          %v2812 = vsub.f32 %v2706, %v2773
          %v2813 = vsub.f32 %v2707, %v2773
          %v2814 = vsub.f32 %v2708, %v2773
          %v2815 = vsub.f32 %v2709, %v2773
          %v2816 = vsub.f32 %v2710, %v2773
          %v2817 = vsub.f32 %v2711, %v2773
          %v2818 = vsub.f32 %v2712, %v2773
          %v2819 = vsub.f32 %v2713, %v2773
          %v2820 = vsub.f32 %v2714, %v2773
          %v2821 = vsub.f32 %v2715, %v2773
          %v2822 = vsub.f32 %v2716, %v2773
          %v2823 = vsub.f32 %v2717, %v2773
          %v2824 = vsub.f32 %v2718, %v2773
          %v2825 = vsub.f32 %v2719, %v2773
          %v2826 = vsub.f32 %v2720, %v2773
          %v2827 = vsub.f32 %v2721, %v2810
          %v2828 = vsub.f32 %v2722, %v2810
          %v2829 = vsub.f32 %v2723, %v2810
          %v2830 = vsub.f32 %v2724, %v2810
          %v2831 = vsub.f32 %v2725, %v2810
          %v2832 = vsub.f32 %v2726, %v2810
          %v2833 = vsub.f32 %v2727, %v2810
          %v2834 = vsub.f32 %v2728, %v2810
          %v2835 = vsub.f32 %v2729, %v2810
          %v2836 = vsub.f32 %v2730, %v2810
          %v2837 = vsub.f32 %v2731, %v2810
          %v2838 = vsub.f32 %v2732, %v2810
          %v2839 = vsub.f32 %v2733, %v2810
          %v2840 = vsub.f32 %v2734, %v2810
          %v2841 = vsub.f32 %v2735, %v2810
          %v2842 = vsub.f32 %v2736, %v2810
          %v2843 = vmul.f32 %v2811, 1.442695
          %v2844 = vpow.pop %v2843
          %v2845 = vmul.f32 %v2812, 1.442695
          %v2846 = vpow.pop %v2845
          %v2847 = vmul.f32 %v2813, 1.442695
          %v2848 = vpow.pop %v2847
          %v2849 = vmul.f32 %v2814, 1.442695
          %v2850 = vpow.pop %v2849
          %v2851 = vmul.f32 %v2815, 1.442695
          %v2852 = vpow.pop %v2851
          %v2853 = vmul.f32 %v2816, 1.442695
          %v2854 = vpow.pop %v2853
          %v2855 = vmul.f32 %v2817, 1.442695
          %v2856 = vpow.pop %v2855
          %v2857 = vmul.f32 %v2818, 1.442695
          %v2858 = vpow.pop %v2857
          %v2859 = vmul.f32 %v2819, 1.442695
          %v2860 = vpow.pop %v2859
          %v2861 = vmul.f32 %v2820, 1.442695
          %v2862 = vpow.pop %v2861
          %v2863 = vmul.f32 %v2821, 1.442695
          %v2864 = vpow.pop %v2863
          %v2865 = vmul.f32 %v2822, 1.442695
          %v2866 = vpow.pop %v2865
          %v2867 = vmul.f32 %v2823, 1.442695
          %v2868 = vpow.pop %v2867
          %v2869 = vmul.f32 %v2824, 1.442695
          %v2870 = vpow.pop %v2869
          %v2871 = vmul.f32 %v2825, 1.442695
          %v2872 = vpow.pop %v2871
          %v2873 = vmul.f32 %v2826, 1.442695
          %v2874 = vpow.pop %v2873
          %v2875 = vmul.f32 %v2827, 1.442695
          %v2876 = vpow.pop %v2875
          %v2877 = vmul.f32 %v2828, 1.442695
          %v2878 = vpow.pop %v2877
          %v2879 = vmul.f32 %v2829, 1.442695
          %v2880 = vpow.pop %v2879
          %v2881 = vmul.f32 %v2830, 1.442695
          %v2882 = vpow.pop %v2881
          %v2883 = vmul.f32 %v2831, 1.442695
          %v2884 = vpow.pop %v2883
          %v2885 = vmul.f32 %v2832, 1.442695
          %v2886 = vpow.pop %v2885
          %v2887 = vmul.f32 %v2833, 1.442695
          %v2888 = vpow.pop %v2887
          %v2889 = vmul.f32 %v2834, 1.442695
          %v2890 = vpow.pop %v2889
          %v2891 = vmul.f32 %v2835, 1.442695
          %v2892 = vpow.pop %v2891
          %v2893 = vmul.f32 %v2836, 1.442695
          %v2894 = vpow.pop %v2893
          %v2895 = vmul.f32 %v2837, 1.442695
          %v2896 = vpow.pop %v2895
          %v2897 = vmul.f32 %v2838, 1.442695
          %v2898 = vpow.pop %v2897
          %v2899 = vmul.f32 %v2839, 1.442695
          %v2900 = vpow.pop %v2899
          %v2901 = vmul.f32 %v2840, 1.442695
          %v2902 = vpow.pop %v2901
          %v2903 = vmul.f32 %v2841, 1.442695
          %v2904 = vpow.pop %v2903
          %v2905 = vmul.f32 %v2842, 1.442695
          %v2906 = vpow.pop %v2905
          %v2907 = vsel %vm1587, %v2844, 0.0
          %v2908 = vsel %vm1587, %v2846, 0.0
          %v2909 = vadd.f32 %v2907, %v2908
          %v2910 = vsel %vm1587, %v2848, 0.0
          %v2911 = vadd.f32 %v2909, %v2910
          %v2912 = vsel %vm1587, %v2850, 0.0
          %v2913 = vadd.f32 %v2911, %v2912
          %v2914 = vsel %vm1587, %v2852, 0.0
          %v2915 = vadd.f32 %v2913, %v2914
          %v2916 = vsel %vm1587, %v2854, 0.0
          %v2917 = vadd.f32 %v2915, %v2916
          %v2918 = vsel %vm1587, %v2856, 0.0
          %v2919 = vadd.f32 %v2917, %v2918
          %v2920 = vsel %vm1587, %v2858, 0.0
          %v2921 = vadd.f32 %v2919, %v2920
          %v2922 = vsel %vm1587, %v2860, 0.0
          %v2923 = vadd.f32 %v2921, %v2922
          %v2924 = vsel %vm1587, %v2862, 0.0
          %v2925 = vadd.f32 %v2923, %v2924
          %v2926 = vsel %vm1587, %v2864, 0.0
          %v2927 = vadd.f32 %v2925, %v2926
          %v2928 = vsel %vm1587, %v2866, 0.0
          %v2929 = vadd.f32 %v2927, %v2928
          %v2930 = vsel %vm1587, %v2868, 0.0
          %v2931 = vadd.f32 %v2929, %v2930
          %v2932 = vsel %vm1587, %v2870, 0.0
          %v2933 = vadd.f32 %v2931, %v2932
          %v2934 = vsel %vm1587, %v2872, 0.0
          %v2935 = vadd.f32 %v2933, %v2934
          %v2936 = vsel %vm1587, %v2874, 0.0
          %v2937 = vadd.f32 %v2935, %v2936
          %v2938 = vrot.slane %v2937, 4
          %v2939 = vadd.f32 %v2937, %v2938
          %v2940 = vrot.slane %v2939, 2
          %v2941 = vadd.f32 %v2939, %v2940
          %v2942 = vrot.slane %v2941, 1
          %v2943 = vadd.f32 %v2941, %v2942
          %v2944 = vsel %vm1587, %v2876, 0.0
          %v2945 = vsel %vm1587, %v2878, 0.0
          %v2946 = vadd.f32 %v2944, %v2945
          %v2947 = vsel %vm1587, %v2880, 0.0
          %v2948 = vadd.f32 %v2946, %v2947
          %v2949 = vsel %vm1587, %v2882, 0.0
          %v2950 = vadd.f32 %v2948, %v2949
          %v2951 = vsel %vm1587, %v2884, 0.0
          %v2952 = vadd.f32 %v2950, %v2951
          %v2953 = vsel %vm1587, %v2886, 0.0
          %v2954 = vadd.f32 %v2952, %v2953
          %v2955 = vsel %vm1587, %v2888, 0.0
          %v2956 = vadd.f32 %v2954, %v2955
          %v2957 = vsel %vm1587, %v2890, 0.0
          %v2958 = vadd.f32 %v2956, %v2957
          %v2959 = vsel %vm1587, %v2892, 0.0
          %v2960 = vadd.f32 %v2958, %v2959
          %v2961 = vsel %vm1587, %v2894, 0.0
          %v2962 = vadd.f32 %v2960, %v2961
          %v2963 = vsel %vm1587, %v2896, 0.0
          %v2964 = vadd.f32 %v2962, %v2963
          %v2965 = vsel %vm1587, %v2898, 0.0
          %v2966 = vadd.f32 %v2964, %v2965
          %v2967 = vsel %vm1587, %v2900, 0.0
          %v2968 = vadd.f32 %v2966, %v2967
          %v2969 = vsel %vm1587, %v2902, 0.0
          %v2970 = vadd.f32 %v2968, %v2969
          %v2971 = vsel %vm1587, %v2904, 0.0
          %v2972 = vadd.f32 %v2970, %v2971
          %v2973 = vsel %vm1587, %v2906, 0.0
          %v2974 = vadd.f32 %v2972, %v2973
          %v2975 = vrot.slane %v2974, 4
          %v2976 = vadd.f32 %v2974, %v2975
          %v2977 = vrot.slane %v2976, 2
          %v2978 = vadd.f32 %v2976, %v2977
          %v2979 = vrot.slane %v2978, 1
          %v2980 = vadd.f32 %v2978, %v2979
          %2982 = vset.pattern.permute.xlu0 0
          %2983 = vperm.xlu0 %2982, %v2844
          %v2984 = vpop.permute.xlu0 %2983
          %2987 = vset.pattern.permute.xlu0 0
          %2988 = vperm.xlu0 %2987, %v2846
          %v2989 = vpop.permute.xlu0 %2988
          %2992 = vset.pattern.permute.xlu0 0
          %2993 = vperm.xlu0 %2992, %v2848
          %v2994 = vpop.permute.xlu0 %2993
          %2997 = vset.pattern.permute.xlu0 0
          %2998 = vperm.xlu0 %2997, %v2850
          %v2999 = vpop.permute.xlu0 %2998
          %3002 = vset.pattern.permute.xlu0 0
          %3003 = vperm.xlu0 %3002, %v2852
          %v3004 = vpop.permute.xlu0 %3003
          %3007 = vset.pattern.permute.xlu0 0
          %3008 = vperm.xlu0 %3007, %v2854
          %v3009 = vpop.permute.xlu0 %3008
          %3012 = vset.pattern.permute.xlu0 0
          %3013 = vperm.xlu0 %3012, %v2856
          %v3014 = vpop.permute.xlu0 %3013
          %3017 = vset.pattern.permute.xlu0 0
          %3018 = vperm.xlu0 %3017, %v2858
          %v3019 = vpop.permute.xlu0 %3018
          %3022 = vset.pattern.permute.xlu0 0
          %3023 = vperm.xlu0 %3022, %v2860
          %v3024 = vpop.permute.xlu0 %3023
          %3027 = vset.pattern.permute.xlu0 0
          %3028 = vperm.xlu0 %3027, %v2862
          %v3029 = vpop.permute.xlu0 %3028
          %3032 = vset.pattern.permute.xlu0 0
          %3033 = vperm.xlu0 %3032, %v2864
          %v3034 = vpop.permute.xlu0 %3033
          %3037 = vset.pattern.permute.xlu0 0
          %3038 = vperm.xlu0 %3037, %v2866
          %v3039 = vpop.permute.xlu0 %3038
          %3042 = vset.pattern.permute.xlu0 0
          %3043 = vperm.xlu0 %3042, %v2868
          %v3044 = vpop.permute.xlu0 %3043
          %3047 = vset.pattern.permute.xlu0 0
          %3048 = vperm.xlu0 %3047, %v2870
          %v3049 = vpop.permute.xlu0 %3048
          %3052 = vset.pattern.permute.xlu0 0
          %3053 = vperm.xlu0 %3052, %v2872
          %v3054 = vpop.permute.xlu0 %3053
          %3057 = vset.pattern.permute.xlu0 0
          %3058 = vperm.xlu0 %3057, %v2874
          %v3059 = vpop.permute.xlu0 %3058
          %3062 = vset.pattern.permute.xlu0 0
          %3063 = vperm.xlu0 %3062, %v2876
          %v3064 = vpop.permute.xlu0 %3063
          %3067 = vset.pattern.permute.xlu0 0
          %3068 = vperm.xlu0 %3067, %v2878
          %v3069 = vpop.permute.xlu0 %3068
          %3072 = vset.pattern.permute.xlu0 0
          %3073 = vperm.xlu0 %3072, %v2880
          %v3074 = vpop.permute.xlu0 %3073
          %3077 = vset.pattern.permute.xlu0 0
          %3078 = vperm.xlu0 %3077, %v2882
          %v3079 = vpop.permute.xlu0 %3078
          %3082 = vset.pattern.permute.xlu0 0
          %3083 = vperm.xlu0 %3082, %v2884
          %v3084 = vpop.permute.xlu0 %3083
          %3087 = vset.pattern.permute.xlu0 0
          %3088 = vperm.xlu0 %3087, %v2886
          %v3089 = vpop.permute.xlu0 %3088
          %3092 = vset.pattern.permute.xlu0 0
          %3093 = vperm.xlu0 %3092, %v2888
          %v3094 = vpop.permute.xlu0 %3093
          %3097 = vset.pattern.permute.xlu0 0
          %3098 = vperm.xlu0 %3097, %v2890
          %v3099 = vpop.permute.xlu0 %3098
          %3102 = vset.pattern.permute.xlu0 0
          %3103 = vperm.xlu0 %3102, %v2892
          %v3104 = vpop.permute.xlu0 %3103
          %3107 = vset.pattern.permute.xlu0 0
          %3108 = vperm.xlu0 %3107, %v2894
          %v3109 = vpop.permute.xlu0 %3108
          %3112 = vset.pattern.permute.xlu0 0
          %3113 = vperm.xlu0 %3112, %v2896
          %v3114 = vpop.permute.xlu0 %3113
          %3117 = vset.pattern.permute.xlu0 0
          %3118 = vperm.xlu0 %3117, %v2898
          %v3119 = vpop.permute.xlu0 %3118
          %3122 = vset.pattern.permute.xlu0 0
          %3123 = vperm.xlu0 %3122, %v2900
          %v3124 = vpop.permute.xlu0 %3123
          %3127 = vset.pattern.permute.xlu0 0
          %3128 = vperm.xlu0 %3127, %v2902
          %v3129 = vpop.permute.xlu0 %3128
          %3132 = vset.pattern.permute.xlu0 0
          %3133 = vperm.xlu0 %3132, %v2904
          %v3134 = vpop.permute.xlu0 %3133
          %3137 = vset.pattern.permute.xlu0 0
          %3138 = vperm.xlu0 %3137, %v2906
          %v3139 = vpop.permute.xlu0 %3138
          %v3141 = vmul.f32 %v2984, %v2154
          %v3142 = vmul.f32 %v2989, %v2155
          %v3143 = vmul.f32 %v2994, %v2156
          %v3144 = vmul.f32 %v2999, %v2157
          %v3145 = vmul.f32 %v3004, %v2158
          %v3146 = vmul.f32 %v3009, %v2159
          %v3147 = vmul.f32 %v3014, %v2160
          %v3148 = vmul.f32 %v3019, %v2161
          %v3149 = vmul.f32 %v3024, %v2162
          %v3150 = vmul.f32 %v3029, %v2163
          %v3151 = vmul.f32 %v3034, %v2164
          %v3152 = vmul.f32 %v3039, %v2165
          %v3153 = vmul.f32 %v3044, %v2166
          %v3154 = vmul.f32 %v3049, %v2167
          %v3155 = vmul.f32 %v3054, %v2168
          %v3156 = vmul.f32 %v3059, %v2169
          %v3157 = vmul.f32 %v3064, %v2170
          %v3158 = vmul.f32 %v3069, %v2171
          %v3159 = vmul.f32 %v3074, %v2172
          %v3160 = vmul.f32 %v3079, %v2173
          %v3161 = vmul.f32 %v3084, %v2174
          %v3162 = vmul.f32 %v3089, %v2175
          %v3163 = vmul.f32 %v3094, %v2176
          %v3164 = vmul.f32 %v3099, %v2177
          %v3165 = vmul.f32 %v3104, %v2178
          %v3166 = vmul.f32 %v3109, %v2179
          %v3167 = vmul.f32 %v3114, %v2180
          %v3168 = vmul.f32 %v3119, %v2181
          %v3169 = vmul.f32 %v3124, %v2182
          %v3170 = vmul.f32 %v3129, %v2183
          %v3171 = vmul.f32 %v3134, %v2184
          %v3172 = vmul.f32 %v3139, %v2185
          %v3173 = vadd.f32 %v3141, %v3142
          %v3174 = vadd.f32 %v3173, %v3143
          %v3175 = vadd.f32 %v3174, %v3144
          %v3176 = vadd.f32 %v3175, %v3145
          %v3177 = vadd.f32 %v3176, %v3146
          %v3178 = vadd.f32 %v3177, %v3147
          %v3179 = vadd.f32 %v3178, %v3148
          %v3180 = vadd.f32 %v3179, %v3149
          %v3181 = vadd.f32 %v3180, %v3150
          %v3182 = vadd.f32 %v3181, %v3151
          %v3183 = vadd.f32 %v3182, %v3152
          %v3184 = vadd.f32 %v3183, %v3153
          %v3185 = vadd.f32 %v3184, %v3154
          %v3186 = vadd.f32 %v3185, %v3155
          %v3187 = vadd.f32 %v3186, %v3156
          %v3188 = vrot.slane %v3187, 4
          %v3189 = vadd.f32 %v3187, %v3188
          %v3190 = vrot.slane %v3189, 2
          %v3191 = vadd.f32 %v3189, %v3190
          %v3192 = vrot.slane %v3191, 1
          %v3193 = vadd.f32 %v3191, %v3192
          %v3194 = vadd.f32 %v3157, %v3158
          %v3195 = vadd.f32 %v3194, %v3159
          %v3196 = vadd.f32 %v3195, %v3160
          %v3197 = vadd.f32 %v3196, %v3161
          %v3198 = vadd.f32 %v3197, %v3162
          %v3199 = vadd.f32 %v3198, %v3163
          %v3200 = vadd.f32 %v3199, %v3164
          %v3201 = vadd.f32 %v3200, %v3165
          %v3202 = vadd.f32 %v3201, %v3166
          %v3203 = vadd.f32 %v3202, %v3167
          %v3204 = vadd.f32 %v3203, %v3168
          %v3205 = vadd.f32 %v3204, %v3169
          %v3206 = vadd.f32 %v3205, %v3170
          %v3207 = vadd.f32 %v3206, %v3171
          %v3208 = vadd.f32 %v3207, %v3172
          %v3209 = vrot.slane %v3208, 4
          %v3210 = vadd.f32 %v3208, %v3209
          %v3211 = vrot.slane %v3210, 2
          %v3212 = vadd.f32 %v3210, %v3211
          %v3213 = vrot.slane %v3212, 1
          %v3214 = vadd.f32 %v3212, %v3213
          %v3215 = vrcp.pop %v2943
          %v3216 = vrcp.pop %v2980
          %v3217 = vmul.f32 %v2943, %v3215
          %v3218 = vmul.f32 %v2980, %v3216
          %v3219 = vsub.f32 2.0, %v3217
          %v3220 = vsub.f32 2.0, %v3218
          %v3221 = vmul.f32 %v3215, %v3219
          %v3222 = vmul.f32 %v3216, %v3220
          %3224 = vset.pattern.permute.xlu0 0
          %3225 = vperm.xlu0 %3224, %v3221
          %v3226 = vpop.permute.xlu0 %3225
          %3229 = vset.pattern.permute.xlu0 0
          %3230 = vperm.xlu0 %3229, %v3222
          %v3231 = vpop.permute.xlu0 %3230
          %v3233 = vmul.f32 %v3193, %v3226
          %v3234 = vmul.f32 %v3214, %v3231
          %3235 = vst [vmem:[#allocation12] sm:$0xff] %v2154
          %3236 = vst [vmem:[#allocation12 + $0x20] sm:$0xff] %v2155
          %3237 = vst [vmem:[#allocation12 + $0x40] sm:$0xff] %v2156
          %3238 = vst [vmem:[#allocation12 + $0x60] sm:$0xff] %v2157
          %3239 = vst [vmem:[#allocation12 + $0x80] sm:$0xff] %v2158
          %3240 = vst [vmem:[#allocation12 + $0xa0] sm:$0xff] %v2159
          %3241 = vst [vmem:[#allocation12 + $0xc0] sm:$0xff] %v2160
          %3242 = vst [vmem:[#allocation12 + $0xe0] sm:$0xff] %v2161
          %3243 = vst [vmem:[#allocation12 + $0x100] sm:$0xff] %v2162
          %3244 = vst [vmem:[#allocation12 + $0x120] sm:$0xff] %v2163
          %3245 = vst [vmem:[#allocation12 + $0x140] sm:$0xff] %v2164
          %3246 = vst [vmem:[#allocation12 + $0x160] sm:$0xff] %v2165
          %3247 = vst [vmem:[#allocation12 + $0x180] sm:$0xff] %v2166
          %3248 = vst [vmem:[#allocation12 + $0x1a0] sm:$0xff] %v2167
          %3249 = vst [vmem:[#allocation12 + $0x1c0] sm:$0xff] %v2168
          %3250 = vst [vmem:[#allocation12 + $0x1e0] sm:$0xff] %v2169
          %3251 = vst [vmem:[#allocation12 + $0x200] sm:$0xff] %v2170
          %3252 = vst [vmem:[#allocation12 + $0x220] sm:$0xff] %v2171
          %3253 = vst [vmem:[#allocation12 + $0x240] sm:$0xff] %v2172
          %3254 = vst [vmem:[#allocation12 + $0x260] sm:$0xff] %v2173
          %3255 = vst [vmem:[#allocation12 + $0x280] sm:$0xff] %v2174
          %3256 = vst [vmem:[#allocation12 + $0x2a0] sm:$0xff] %v2175
          %3257 = vst [vmem:[#allocation12 + $0x2c0] sm:$0xff] %v2176
          %3258 = vst [vmem:[#allocation12 + $0x2e0] sm:$0xff] %v2177
          %3259 = vst [vmem:[#allocation12 + $0x300] sm:$0xff] %v2178
          %3260 = vst [vmem:[#allocation12 + $0x320] sm:$0xff] %v2179
          %3261 = vst [vmem:[#allocation12 + $0x340] sm:$0xff] %v2180
          %3262 = vst [vmem:[#allocation12 + $0x360] sm:$0xff] %v2181
          %3263 = vst [vmem:[#allocation12 + $0x380] sm:$0xff] %v2182
          %3264 = vst [vmem:[#allocation12 + $0x3a0] sm:$0xff] %v2183
          %3265 = vst [vmem:[#allocation12 + $0x3c0] sm:$0xff] %v2184
          %3266 = vst [vmem:[#allocation12 + $0x3e0] sm:$0xff] %v2185
          %3267 = vst [vmem:[#allocation12 + $0x8] sm:$0xff] %v2539
          %3268 = vst [vmem:[#allocation12 + $0x28] sm:$0xff] %v2540
          %3269 = vst [vmem:[#allocation12 + $0x48] sm:$0xff] %v2541
          %3270 = vst [vmem:[#allocation12 + $0x68] sm:$0xff] %v2542
          %3271 = vst [vmem:[#allocation12 + $0x88] sm:$0xff] %v2543
          %3272 = vst [vmem:[#allocation12 + $0xa8] sm:$0xff] %v2544
          %3273 = vst [vmem:[#allocation12 + $0xc8] sm:$0xff] %v2545
          %3274 = vst [vmem:[#allocation12 + $0xe8] sm:$0xff] %v2546
          %3275 = vst [vmem:[#allocation12 + $0x108] sm:$0xff] %v2547
          %3276 = vst [vmem:[#allocation12 + $0x128] sm:$0xff] %v2548
          %3277 = vst [vmem:[#allocation12 + $0x148] sm:$0xff] %v2549
          %3278 = vst [vmem:[#allocation12 + $0x168] sm:$0xff] %v2550
          %3279 = vst [vmem:[#allocation12 + $0x188] sm:$0xff] %v2551
          %3280 = vst [vmem:[#allocation12 + $0x1a8] sm:$0xff] %v2552
          %3281 = vst [vmem:[#allocation12 + $0x1c8] sm:$0xff] %v2553
          %3282 = vst [vmem:[#allocation12 + $0x1e8] sm:$0xff] %v2554
          %3283 = vst [vmem:[#allocation12 + $0x208] sm:$0xff] %v2555
          %3284 = vst [vmem:[#allocation12 + $0x228] sm:$0xff] %v2556
          %3285 = vst [vmem:[#allocation12 + $0x248] sm:$0xff] %v2557
          %3286 = vst [vmem:[#allocation12 + $0x268] sm:$0xff] %v2558
          %3287 = vst [vmem:[#allocation12 + $0x288] sm:$0xff] %v2559
          %3288 = vst [vmem:[#allocation12 + $0x2a8] sm:$0xff] %v2560
          %3289 = vst [vmem:[#allocation12 + $0x2c8] sm:$0xff] %v2561
          %3290 = vst [vmem:[#allocation12 + $0x2e8] sm:$0xff] %v2562
          %3291 = vst [vmem:[#allocation12 + $0x308] sm:$0xff] %v2563
          %3292 = vst [vmem:[#allocation12 + $0x328] sm:$0xff] %v2564
          %3293 = vst [vmem:[#allocation12 + $0x348] sm:$0xff] %v2565
          %3294 = vst [vmem:[#allocation12 + $0x368] sm:$0xff] %v2566
          %3295 = vst [vmem:[#allocation12 + $0x388] sm:$0xff] %v2567
          %3296 = vst [vmem:[#allocation12 + $0x3a8] sm:$0xff] %v2568
          %3297 = vst [vmem:[#allocation12 + $0x3c8] sm:$0xff] %v2569
          %3298 = vst [vmem:[#allocation12 + $0x3e8] sm:$0xff] %v2570
          %v3299 = vmul.f32 %v2154, %v2539
          %v3300 = vmul.f32 %v2155, %v2540
          %v3301 = vmul.f32 %v2156, %v2541
          %v3302 = vmul.f32 %v2157, %v2542
          %v3303 = vmul.f32 %v2158, %v2543
          %v3304 = vmul.f32 %v2159, %v2544
          %v3305 = vmul.f32 %v2160, %v2545
          %v3306 = vmul.f32 %v2161, %v2546
          %v3307 = vmul.f32 %v2162, %v2547
          %v3308 = vmul.f32 %v2163, %v2548
          %v3309 = vmul.f32 %v2164, %v2549
          %v3310 = vmul.f32 %v2165, %v2550
          %v3311 = vmul.f32 %v2166, %v2551
          %v3312 = vmul.f32 %v2167, %v2552
          %v3313 = vmul.f32 %v2168, %v2553
          %v3314 = vmul.f32 %v2169, %v2554
          %v3315 = vmul.f32 %v2170, %v2555
          %v3316 = vmul.f32 %v2171, %v2556
          %v3317 = vmul.f32 %v2172, %v2557
          %v3318 = vmul.f32 %v2173, %v2558
          %v3319 = vmul.f32 %v2174, %v2559
          %v3320 = vmul.f32 %v2175, %v2560
          %v3321 = vmul.f32 %v2176, %v2561
          %v3322 = vmul.f32 %v2177, %v2562
          %v3323 = vmul.f32 %v2178, %v2563
          %v3324 = vmul.f32 %v2179, %v2564
          %v3325 = vmul.f32 %v2180, %v2565
          %v3326 = vmul.f32 %v2181, %v2566
          %v3327 = vmul.f32 %v2182, %v2567
          %v3328 = vmul.f32 %v2183, %v2568
          %v3329 = vmul.f32 %v2184, %v2569
          %v3330 = vmul.f32 %v2185, %v2570
          %3331 = vst [vmem:[#allocation12 + $0x10] sm:$0xff] %v3299
          %3332 = vst [vmem:[#allocation12 + $0x30] sm:$0xff] %v3300
          %3333 = vst [vmem:[#allocation12 + $0x50] sm:$0xff] %v3301
          %3334 = vst [vmem:[#allocation12 + $0x70] sm:$0xff] %v3302
          %3335 = vst [vmem:[#allocation12 + $0x90] sm:$0xff] %v3303
          %3336 = vst [vmem:[#allocation12 + $0xb0] sm:$0xff] %v3304
          %3337 = vst [vmem:[#allocation12 + $0xd0] sm:$0xff] %v3305
          %3338 = vst [vmem:[#allocation12 + $0xf0] sm:$0xff] %v3306
          %3339 = vst [vmem:[#allocation12 + $0x110] sm:$0xff] %v3307
          %3340 = vst [vmem:[#allocation12 + $0x130] sm:$0xff] %v3308
          %3341 = vst [vmem:[#allocation12 + $0x150] sm:$0xff] %v3309
          %3342 = vst [vmem:[#allocation12 + $0x170] sm:$0xff] %v3310
          %3343 = vst [vmem:[#allocation12 + $0x190] sm:$0xff] %v3311
          %3344 = vst [vmem:[#allocation12 + $0x1b0] sm:$0xff] %v3312
          %3345 = vst [vmem:[#allocation12 + $0x1d0] sm:$0xff] %v3313
          %3346 = vst [vmem:[#allocation12 + $0x1f0] sm:$0xff] %v3314
          %3347 = vst [vmem:[#allocation12 + $0x210] sm:$0xff] %v3315
          %3348 = vst [vmem:[#allocation12 + $0x230] sm:$0xff] %v3316
          %3349 = vst [vmem:[#allocation12 + $0x250] sm:$0xff] %v3317
          %3350 = vst [vmem:[#allocation12 + $0x270] sm:$0xff] %v3318
          %3351 = vst [vmem:[#allocation12 + $0x290] sm:$0xff] %v3319
          %3352 = vst [vmem:[#allocation12 + $0x2b0] sm:$0xff] %v3320
          %3353 = vst [vmem:[#allocation12 + $0x2d0] sm:$0xff] %v3321
          %3354 = vst [vmem:[#allocation12 + $0x2f0] sm:$0xff] %v3322
          %3355 = vst [vmem:[#allocation12 + $0x310] sm:$0xff] %v3323
          %3356 = vst [vmem:[#allocation12 + $0x330] sm:$0xff] %v3324
          %3357 = vst [vmem:[#allocation12 + $0x350] sm:$0xff] %v3325
          %3358 = vst [vmem:[#allocation12 + $0x370] sm:$0xff] %v3326
          %3359 = vst [vmem:[#allocation12 + $0x390] sm:$0xff] %v3327
          %3360 = vst [vmem:[#allocation12 + $0x3b0] sm:$0xff] %v3328
          %3361 = vst [vmem:[#allocation12 + $0x3d0] sm:$0xff] %v3329
          %3362 = vst [vmem:[#allocation12 + $0x3f0] sm:$0xff] %v3330
          %v3363 = vmul.f32 %v3233, %v2539
          %v3364 = vmul.f32 %v3233, %v2540
          %v3365 = vmul.f32 %v3233, %v2541
          %v3366 = vmul.f32 %v3233, %v2542
          %v3367 = vmul.f32 %v3233, %v2543
          %v3368 = vmul.f32 %v3233, %v2544
          %v3369 = vmul.f32 %v3233, %v2545
          %v3370 = vmul.f32 %v3233, %v2546
          %v3371 = vmul.f32 %v3233, %v2547
          %v3372 = vmul.f32 %v3233, %v2548
          %v3373 = vmul.f32 %v3233, %v2549
          %v3374 = vmul.f32 %v3233, %v2550
          %v3375 = vmul.f32 %v3233, %v2551
          %v3376 = vmul.f32 %v3233, %v2552
          %v3377 = vmul.f32 %v3233, %v2553
          %v3378 = vmul.f32 %v3233, %v2554
          %v3379 = vmul.f32 %v3234, %v2555
          %v3380 = vmul.f32 %v3234, %v2556
          %v3381 = vmul.f32 %v3234, %v2557
          %v3382 = vmul.f32 %v3234, %v2558
          %v3383 = vmul.f32 %v3234, %v2559
          %v3384 = vmul.f32 %v3234, %v2560
          %v3385 = vmul.f32 %v3234, %v2561
          %v3386 = vmul.f32 %v3234, %v2562
          %v3387 = vmul.f32 %v3234, %v2563
          %v3388 = vmul.f32 %v3234, %v2564
          %v3389 = vmul.f32 %v3234, %v2565
          %v3390 = vmul.f32 %v3234, %v2566
          %v3391 = vmul.f32 %v3234, %v2567
          %v3392 = vmul.f32 %v3234, %v2568
          %v3393 = vmul.f32 %v3234, %v2569
          %v3394 = vmul.f32 %v3234, %v2570
          %3395 = vst [vmem:[#allocation12 + $0x18] sm:$0xff] %v3363
          %3396 = vst [vmem:[#allocation12 + $0x38] sm:$0xff] %v3364
          %3397 = vst [vmem:[#allocation12 + $0x58] sm:$0xff] %v3365
          %3398 = vst [vmem:[#allocation12 + $0x78] sm:$0xff] %v3366
          %3399 = vst [vmem:[#allocation12 + $0x98] sm:$0xff] %v3367
          %3400 = vst [vmem:[#allocation12 + $0xb8] sm:$0xff] %v3368
          %3401 = vst [vmem:[#allocation12 + $0xd8] sm:$0xff] %v3369
          %3402 = vst [vmem:[#allocation12 + $0xf8] sm:$0xff] %v3370
          %3403 = vst [vmem:[#allocation12 + $0x118] sm:$0xff] %v3371
          %3404 = vst [vmem:[#allocation12 + $0x138] sm:$0xff] %v3372
          %3405 = vst [vmem:[#allocation12 + $0x158] sm:$0xff] %v3373
          %3406 = vst [vmem:[#allocation12 + $0x178] sm:$0xff] %v3374
          %3407 = vst [vmem:[#allocation12 + $0x198] sm:$0xff] %v3375
          %3408 = vst [vmem:[#allocation12 + $0x1b8] sm:$0xff] %v3376
          %3409 = vst [vmem:[#allocation12 + $0x1d8] sm:$0xff] %v3377
          %3410 = vst [vmem:[#allocation12 + $0x1f8] sm:$0xff] %v3378
          %3411 = vst [vmem:[#allocation12 + $0x218] sm:$0xff] %v3379
          %3412 = vst [vmem:[#allocation12 + $0x238] sm:$0xff] %v3380
          %3413 = vst [vmem:[#allocation12 + $0x258] sm:$0xff] %v3381
          %3414 = vst [vmem:[#allocation12 + $0x278] sm:$0xff] %v3382
          %3415 = vst [vmem:[#allocation12 + $0x298] sm:$0xff] %v3383
          %3416 = vst [vmem:[#allocation12 + $0x2b8] sm:$0xff] %v3384
          %3417 = vst [vmem:[#allocation12 + $0x2d8] sm:$0xff] %v3385
          %3418 = vst [vmem:[#allocation12 + $0x2f8] sm:$0xff] %v3386
          %3419 = vst [vmem:[#allocation12 + $0x318] sm:$0xff] %v3387
          %3420 = vst [vmem:[#allocation12 + $0x338] sm:$0xff] %v3388
          %3421 = vst [vmem:[#allocation12 + $0x358] sm:$0xff] %v3389
          %3422 = vst [vmem:[#allocation12 + $0x378] sm:$0xff] %v3390
          %3423 = vst [vmem:[#allocation12 + $0x398] sm:$0xff] %v3391
          %3424 = vst [vmem:[#allocation12 + $0x3b8] sm:$0xff] %v3392
          %3425 = vst [vmem:[#allocation12 + $0x3d8] sm:$0xff] %v3393
          %3426 = vst [vmem:[#allocation12 + $0x3f8] sm:$0xff] %v3394
        $region94: #{tpu_custom_call.1} parent=73 // pred_fallthru
          _
        // Predicated region
        $region95: #{tpu_custom_call.1} parent=73 // pred_check
          %p3427 = pneg %p197
        $region96: #{tpu_custom_call.1} parent=73 // pred_check_branch
          %3429 = sbr.rel (%p3427) target = $region98
        $region97: #{tpu_custom_call.1} parent=73 // pred_region
          %s3430 = smul.u32 2, %s26
          %s3432 = ssub.s32 16384, 16384
          %3433 = vsyncadd [#allocation8], %s3432
          %s3434 = smul.addr %s3430, 64
          %s3435 = smul.addr %s3434, 128
          %s3436 = scalar_lea.hbm %s6, %s3435
          %s3437 = sshll.u32 [#allocation12], 4
          %s3438 = int_to_ptr.vmem [resolvable:$true] %s3437
          %3443 = dma.vmem_to_hbm [thread:$0]  %s3438, 16384, %s3436, [#allocation8], 512, 512, 32
        $region98: #{tpu_custom_call.1} parent=73 // pred_fallthru
          _
        // Predicated region
        $region99: #{tpu_custom_call.1} parent=73 // pred_check
          %p3444 = pneg %p197
        $region100: #{tpu_custom_call.1} parent=73 // pred_check_branch
          %3446 = sbr.rel (%p3444) target = $region102
        $region101: #{tpu_custom_call.1} parent=73 // pred_region
          %3447 = dma.done [#allocation8], 16384
        $region102: #{tpu_custom_call.1} parent=73 // pred_fallthru
          _
      $region74: #{tpu_custom_call.1} parent=5 // pred_fallthru
        _
      %p3448 = scmp.le.s32.totalorder 2, %s17
      // Predicated region
      $region103: #{tpu_custom_call.1} parent=5 // pred_check
        %p3449 = pneg %p3448
      $region104: #{tpu_custom_call.1} parent=5 // pred_check_branch
        %3451 = sbr.rel (%p3449) target = $region106
      $region105: #{tpu_custom_call.1} parent=5 // pred_region
        %s3452 = ssub.s32 %s17, 2
      $region106: #{tpu_custom_call.1} parent=5 // pred_fallthru
        _
    $region6: #{tpu_custom_call.1} parent=1 // loop_footer
      %s21 = sadd.s32 1, %s17
    $region7: #{tpu_custom_call.1} parent=1 // loop_footer_branch
      %16 = sbr.rel target = $region3
    $region8: #{tpu_custom_call.1} parent=1 // loop_exit
      _
    %3453 = vsyncpa [#allocation7], 1
    %s3454 = scalar_lea.sflag [#allocation7], 1
    %3455 = vsyncpa %s3454, 1
    %3456 = vsyncpa [#allocation10], 1
    %s3457 = scalar_lea.sflag [#allocation10], 1
    %3458 = vsyncpa %s3457, 1
    %3459 = vsyncpa [#allocation8], 1
    %s3460 = scalar_lea.sflag [#allocation8], 1
    %3461 = vsyncpa %s3460, 1

</llo_original>
